<compile_context>
chip_gen: v6e
topology: v6e:2x2x1
jax: 0.10.0
libtpu: 0.0.40
codegen_flags: <defaults>
</compile_context>

<pallas_src>
import math
import functools

import numpy as np
import jax
import jax.numpy as jnp
from jax.experimental import pallas as pl
from jax.experimental.pallas import tpu as pltpu


def double_conv_kernel(x_ref, w1_ref, w2_ref, s_ref, o_ref, *, eps: float):
    """x_ref: (1, Cin, HW); w1_ref: (9, Cout, Cin); w2_ref: (9, Cout, Cout);
    s_ref: (9, HW, HW) shift operators; o_ref: (1, Cout, HW)."""
    x = x_ref[0]                      # (Cin, HW), f32
    hw = x.shape[-1]

    def conv3x3(inp, w_ref):
        cout = w_ref.shape[1]
        acc = jnp.zeros((cout, hw), jnp.float32)
        # Static loop over the 9 taps: shift (as an MXU matmul with a 0/1 operator,
        # which also applies the zero-padding boundary mask), then contract channels.
        for k in range(9):
            patch = jnp.dot(inp, s_ref[k], preferred_element_type=jnp.float32)
            acc = acc + jnp.dot(w_ref[k], patch, preferred_element_type=jnp.float32)
        return acc

    def instance_norm_relu(z):
        # Per-channel stats over the spatial (lane) axis; biased variance, like PyTorch.
        mean = jnp.mean(z, axis=-1, keepdims=True)
        cen = z - mean
        var = jnp.mean(cen * cen, axis=-1, keepdims=True)
        return jnp.maximum(cen * jax.lax.rsqrt(var + eps), 0.0)

    y = instance_norm_relu(conv3x3(x, w1_ref))      # (Cout, HW), stays in VMEM/vregs
    out = instance_norm_relu(conv3x3(y, w2_ref))    # (Cout, HW)
    o_ref[...] = out[None].astype(o_ref.dtype)


def _build_shift_operators(H, W):
    """S[k] with S[k, q, p] = 1 iff flat index q is the (zero-padded) 3x3-tap-k source of
    output position p. Host-side constant; (x @ S[k])[c, p] == x[c, h+dy-1, w+dx-1] or 0."""
    HW = H * W
    p = np.arange(HW)
    h, w = p // W, p % W
    ops = []
    for oy in (-1, 0, 1):
        for ox in (-1, 0, 1):
            hs, ws = h + oy, w + ox
            valid = (hs >= 0) & (hs < H) & (ws >= 0) & (ws < W)
            q = hs * W + ws
            s = np.zeros((HW, HW), np.float32)
            s[q[valid], p[valid]] = 1.0
            ops.append(s)
    return jnp.asarray(np.stack(ops))               # (9, HW, HW)


def double_conv_forward(x, w1, w2, *, eps: float = 1e-5):
    """x: (B, Cin, H, W); w1: (Cout, Cin, 3, 3); w2: (Cout, Cout, 3, 3) -> (B, Cout, H, W)."""
    B, Cin, H, W = x.shape
    Cout = w1.shape[0]
    HW = H * W

    # Host-side layout plumbing (free): lane-dense activations, tap-major weights.
    x_flat = x.reshape(B, Cin, HW)
    w1_taps = jnp.transpose(w1, (2, 3, 0, 1)).reshape(9, Cout, Cin)
    w2_taps = jnp.transpose(w2, (2, 3, 0, 1)).reshape(9, Cout, Cout)
    s_ops = _build_shift_operators(H, W)

    kernel = functools.partial(double_conv_kernel, eps=eps)
    full = lambda shape: pl.BlockSpec(shape, lambda b: (0,) * len(shape))

    out_flat = pl.pallas_call(
        kernel,
        out_shape=jax.ShapeDtypeStruct((B, Cout, HW), x.dtype),
        grid_spec=pltpu.PrefetchScalarGridSpec(
            num_scalar_prefetch=0,
            grid=(B,),
            in_specs=[
                pl.BlockSpec((1, Cin, HW), lambda b: (b, 0, 0)),   # x (per batch)
                full((9, Cout, Cin)),                              # conv1 weights (tap-major)
                full((9, Cout, Cout)),                             # conv2 weights (tap-major)
                full((9, HW, HW)),                                 # shift operators
            ],
            out_specs=pl.BlockSpec((1, Cout, HW), lambda b: (b, 0, 0)),
        ),
        compiler_params=pltpu.CompilerParams(
            dimension_semantics=("parallel",)),
    )(x_flat, w1_taps, w2_taps, s_ops)

    return out_flat.reshape(B, Cout, H, W)


def reference_forward(x, w1, w2, *, eps: float = 1e-5):
    """Pure-JAX reference mirroring the PyTorch DoubleConv (for the correctness check)."""
    dn = ("NCHW", "OIHW", "NCHW")

    def block(inp, w):
        y = jax.lax.conv_general_dilated(inp, w, window_strides=(1, 1),
                                         padding="SAME", dimension_numbers=dn)
        mean = y.mean(axis=(2, 3), keepdims=True)
        var = ((y - mean) ** 2).mean(axis=(2, 3), keepdims=True)
        return jnp.maximum((y - mean) * jax.lax.rsqrt(var + eps), 0.0)

    return block(block(x, w1), w2)


if __name__ == "__main__":
    B, Cin, Cout, H, W = 2, 4, 8, 16, 16

    key = jax.random.PRNGKey(0)
    kx, k1, k2 = jax.random.split(key, 3)
    x = jax.random.normal(kx, (B, Cin, H, W), jnp.float32)

    bound1 = 1.0 / math.sqrt(Cin * 9)
    w1 = jax.random.uniform(k1, (Cout, Cin, 3, 3), jnp.float32, -bound1, bound1)
    bound2 = 1.0 / math.sqrt(Cout * 9)
    w2 = jax.random.uniform(k2, (Cout, Cout, 3, 3), jnp.float32, -bound2, bound2)

    out = double_conv_forward(x, w1, w2)
    out = jax.block_until_ready(out)

    ref = reference_forward(x, w1, w2)
    assert out.shape == (B, Cout, H, W)
    assert jnp.allclose(out, ref, atol=1e-4, rtol=1e-4), "mismatch vs reference"

    print("KERNEL_OK")
</pallas_src>

<mosaic_0001>
module attributes {stable_mosaic.version = 11 : i64} {
  func.func @double_conv_kernel(%arg0: i32, %arg1: memref<1x4x256xf32, #tpu.memory_space<vmem>>, %arg2: memref<9x8x4xf32, #tpu.memory_space<vmem>>, %arg3: memref<9x8x8xf32, #tpu.memory_space<vmem>>, %arg4: memref<9x256x256xf32, #tpu.memory_space<vmem>>, %arg5: memref<1x8x256xf32, #tpu.memory_space<vmem>>) attributes {dimension_semantics = [#tpu.dimension_semantics<parallel>], iteration_bounds = array<i64: 2>, scalar_prefetch = 0 : i64, scratch_operands = 0 : i64, tpu.core_type = #tpu.core_type<tc>, window_params = [{transform_indices = @transform_0, window_bounds = array<i64: 1, 4, 256>}, {pipeline_mode = #tpu.pipeline_mode<synchronous>, transform_indices = @transform_1, window_bounds = array<i64: 9, 8, 4>}, {pipeline_mode = #tpu.pipeline_mode<synchronous>, transform_indices = @transform_2, window_bounds = array<i64: 9, 8, 8>}, {pipeline_mode = #tpu.pipeline_mode<synchronous>, transform_indices = @transform_3, window_bounds = array<i64: 9, 256, 256>}, {transform_indices = @transform_4, window_bounds = array<i64: 1, 8, 256>}]} {
    %c0 = arith.constant 0 : index
    %c0_0 = arith.constant 0 : index
    %c0_1 = arith.constant 0 : index
    %0 = vector.load %arg1[%c0, %c0_0, %c0_1] : memref<1x4x256xf32, #tpu.memory_space<vmem>>, vector<1x4x256xf32>
    %1 = vector.shape_cast %0 : vector<1x4x256xf32> to vector<4x256xf32>
    %cst = arith.constant 0.000000e+00 : f32
    %2 = vector.broadcast %cst : f32 to vector<8x256xf32>
    %c0_2 = arith.constant 0 : index
    %c0_3 = arith.constant 0 : index
    %c0_4 = arith.constant 0 : index
    %3 = vector.load %arg4[%c0_2, %c0_3, %c0_4] : memref<9x256x256xf32, #tpu.memory_space<vmem>>, vector<1x256x256xf32>
    %4 = vector.shape_cast %3 : vector<1x256x256xf32> to vector<256x256xf32>
    %cst_5 = arith.constant dense<0.000000e+00> : vector<4x256xf32>
    %5 = tpu.matmul %1, %4, %cst_5 {dimension_numbers = #tpu.dot_dimension_numbers<[1], [0], [0], [1], [0, 0, 1, 1], [], []>} : vector<4x256xf32>, vector<256x256xf32>, vector<4x256xf32> -> vector<4x256xf32>
    %c0_6 = arith.constant 0 : index
    %c0_7 = arith.constant 0 : index
    %c0_8 = arith.constant 0 : index
    %6 = vector.load %arg2[%c0_6, %c0_7, %c0_8] : memref<9x8x4xf32, #tpu.memory_space<vmem>>, vector<1x8x4xf32>
    %7 = vector.shape_cast %6 : vector<1x8x4xf32> to vector<8x4xf32>
    %cst_9 = arith.constant dense<0.000000e+00> : vector<8x256xf32>
    %8 = tpu.matmul %7, %5, %cst_9 {dimension_numbers = #tpu.dot_dimension_numbers<[1], [0], [0], [1], [0, 0, 1, 1], [], []>} : vector<8x4xf32>, vector<4x256xf32>, vector<8x256xf32> -> vector<8x256xf32>
    %9 = arith.addf %2, %8 : vector<8x256xf32>
    %c1 = arith.constant 1 : index
    %c0_10 = arith.constant 0 : index
    %c0_11 = arith.constant 0 : index
    %10 = vector.load %arg4[%c1, %c0_10, %c0_11] : memref<9x256x256xf32, #tpu.memory_space<vmem>>, vector<1x256x256xf32>
    %11 = vector.shape_cast %10 : vector<1x256x256xf32> to vector<256x256xf32>
    %cst_12 = arith.constant dense<0.000000e+00> : vector<4x256xf32>
    %12 = tpu.matmul %1, %11, %cst_12 {dimension_numbers = #tpu.dot_dimension_numbers<[1], [0], [0], [1], [0, 0, 1, 1], [], []>} : vector<4x256xf32>, vector<256x256xf32>, vector<4x256xf32> -> vector<4x256xf32>
    %c1_13 = arith.constant 1 : index
    %c0_14 = arith.constant 0 : index
    %c0_15 = arith.constant 0 : index
    %13 = vector.load %arg2[%c1_13, %c0_14, %c0_15] : memref<9x8x4xf32, #tpu.memory_space<vmem>>, vector<1x8x4xf32>
    %14 = vector.shape_cast %13 : vector<1x8x4xf32> to vector<8x4xf32>
    %cst_16 = arith.constant dense<0.000000e+00> : vector<8x256xf32>
    %15 = tpu.matmul %14, %12, %cst_16 {dimension_numbers = #tpu.dot_dimension_numbers<[1], [0], [0], [1], [0, 0, 1, 1], [], []>} : vector<8x4xf32>, vector<4x256xf32>, vector<8x256xf32> -> vector<8x256xf32>
    %16 = arith.addf %9, %15 : vector<8x256xf32>
    %c2 = arith.constant 2 : index
    %c0_17 = arith.constant 0 : index
    %c0_18 = arith.constant 0 : index
    %17 = vector.load %arg4[%c2, %c0_17, %c0_18] : memref<9x256x256xf32, #tpu.memory_space<vmem>>, vector<1x256x256xf32>
    %18 = vector.shape_cast %17 : vector<1x256x256xf32> to vector<256x256xf32>
    %cst_19 = arith.constant dense<0.000000e+00> : vector<4x256xf32>
    %19 = tpu.matmul %1, %18, %cst_19 {dimension_numbers = #tpu.dot_dimension_numbers<[1], [0], [0], [1], [0, 0, 1, 1], [], []>} : vector<4x256xf32>, vector<256x256xf32>, vector<4x256xf32> -> vector<4x256xf32>
    %c2_20 = arith.constant 2 : index
    %c0_21 = arith.constant 0 : index
    %c0_22 = arith.constant 0 : index
    %20 = vector.load %arg2[%c2_20, %c0_21, %c0_22] : memref<9x8x4xf32, #tpu.memory_space<vmem>>, vector<1x8x4xf32>
    %21 = vector.shape_cast %20 : vector<1x8x4xf32> to vector<8x4xf32>
    %cst_23 = arith.constant dense<0.000000e+00> : vector<8x256xf32>
    %22 = tpu.matmul %21, %19, %cst_23 {dimension_numbers = #tpu.dot_dimension_numbers<[1], [0], [0], [1], [0, 0, 1, 1], [], []>} : vector<8x4xf32>, vector<4x256xf32>, vector<8x256xf32> -> vector<8x256xf32>
    %23 = arith.addf %16, %22 : vector<8x256xf32>
    %c3 = arith.constant 3 : index
    %c0_24 = arith.constant 0 : index
    %c0_25 = arith.constant 0 : index
    %24 = vector.load %arg4[%c3, %c0_24, %c0_25] : memref<9x256x256xf32, #tpu.memory_space<vmem>>, vector<1x256x256xf32>
    %25 = vector.shape_cast %24 : vector<1x256x256xf32> to vector<256x256xf32>
    %cst_26 = arith.constant dense<0.000000e+00> : vector<4x256xf32>
    %26 = tpu.matmul %1, %25, %cst_26 {dimension_numbers = #tpu.dot_dimension_numbers<[1], [0], [0], [1], [0, 0, 1, 1], [], []>} : vector<4x256xf32>, vector<256x256xf32>, vector<4x256xf32> -> vector<4x256xf32>
    %c3_27 = arith.constant 3 : index
    %c0_28 = arith.constant 0 : index
    %c0_29 = arith.constant 0 : index
    %27 = vector.load %arg2[%c3_27, %c0_28, %c0_29] : memref<9x8x4xf32, #tpu.memory_space<vmem>>, vector<1x8x4xf32>
    %28 = vector.shape_cast %27 : vector<1x8x4xf32> to vector<8x4xf32>
    %cst_30 = arith.constant dense<0.000000e+00> : vector<8x256xf32>
    %29 = tpu.matmul %28, %26, %cst_30 {dimension_numbers = #tpu.dot_dimension_numbers<[1], [0], [0], [1], [0, 0, 1, 1], [], []>} : vector<8x4xf32>, vector<4x256xf32>, vector<8x256xf32> -> vector<8x256xf32>
    %30 = arith.addf %23, %29 : vector<8x256xf32>
    %c4 = arith.constant 4 : index
    %c0_31 = arith.constant 0 : index
    %c0_32 = arith.constant 0 : index
    %31 = vector.load %arg4[%c4, %c0_31, %c0_32] : memref<9x256x256xf32, #tpu.memory_space<vmem>>, vector<1x256x256xf32>
    %32 = vector.shape_cast %31 : vector<1x256x256xf32> to vector<256x256xf32>
    %cst_33 = arith.constant dense<0.000000e+00> : vector<4x256xf32>
    %33 = tpu.matmul %1, %32, %cst_33 {dimension_numbers = #tpu.dot_dimension_numbers<[1], [0], [0], [1], [0, 0, 1, 1], [], []>} : vector<4x256xf32>, vector<256x256xf32>, vector<4x256xf32> -> vector<4x256xf32>
    %c4_34 = arith.constant 4 : index
    %c0_35 = arith.constant 0 : index
    %c0_36 = arith.constant 0 : index
    %34 = vector.load %arg2[%c4_34, %c0_35, %c0_36] : memref<9x8x4xf32, #tpu.memory_space<vmem>>, vector<1x8x4xf32>
    %35 = vector.shape_cast %34 : vector<1x8x4xf32> to vector<8x4xf32>
    %cst_37 = arith.constant dense<0.000000e+00> : vector<8x256xf32>
    %36 = tpu.matmul %35, %33, %cst_37 {dimension_numbers = #tpu.dot_dimension_numbers<[1], [0], [0], [1], [0, 0, 1, 1], [], []>} : vector<8x4xf32>, vector<4x256xf32>, vector<8x256xf32> -> vector<8x256xf32>
    %37 = arith.addf %30, %36 : vector<8x256xf32>
    %c5 = arith.constant 5 : index
    %c0_38 = arith.constant 0 : index
    %c0_39 = arith.constant 0 : index
    %38 = vector.load %arg4[%c5, %c0_38, %c0_39] : memref<9x256x256xf32, #tpu.memory_space<vmem>>, vector<1x256x256xf32>
    %39 = vector.shape_cast %38 : vector<1x256x256xf32> to vector<256x256xf32>
    %cst_40 = arith.constant dense<0.000000e+00> : vector<4x256xf32>
    %40 = tpu.matmul %1, %39, %cst_40 {dimension_numbers = #tpu.dot_dimension_numbers<[1], [0], [0], [1], [0, 0, 1, 1], [], []>} : vector<4x256xf32>, vector<256x256xf32>, vector<4x256xf32> -> vector<4x256xf32>
    %c5_41 = arith.constant 5 : index
    %c0_42 = arith.constant 0 : index
    %c0_43 = arith.constant 0 : index
    %41 = vector.load %arg2[%c5_41, %c0_42, %c0_43] : memref<9x8x4xf32, #tpu.memory_space<vmem>>, vector<1x8x4xf32>
    %42 = vector.shape_cast %41 : vector<1x8x4xf32> to vector<8x4xf32>
    %cst_44 = arith.constant dense<0.000000e+00> : vector<8x256xf32>
    %43 = tpu.matmul %42, %40, %cst_44 {dimension_numbers = #tpu.dot_dimension_numbers<[1], [0], [0], [1], [0, 0, 1, 1], [], []>} : vector<8x4xf32>, vector<4x256xf32>, vector<8x256xf32> -> vector<8x256xf32>
    %44 = arith.addf %37, %43 : vector<8x256xf32>
    %c6 = arith.constant 6 : index
    %c0_45 = arith.constant 0 : index
    %c0_46 = arith.constant 0 : index
    %45 = vector.load %arg4[%c6, %c0_45, %c0_46] : memref<9x256x256xf32, #tpu.memory_space<vmem>>, vector<1x256x256xf32>
    %46 = vector.shape_cast %45 : vector<1x256x256xf32> to vector<256x256xf32>
    %cst_47 = arith.constant dense<0.000000e+00> : vector<4x256xf32>
    %47 = tpu.matmul %1, %46, %cst_47 {dimension_numbers = #tpu.dot_dimension_numbers<[1], [0], [0], [1], [0, 0, 1, 1], [], []>} : vector<4x256xf32>, vector<256x256xf32>, vector<4x256xf32> -> vector<4x256xf32>
    %c6_48 = arith.constant 6 : index
    %c0_49 = arith.constant 0 : index
    %c0_50 = arith.constant 0 : index
    %48 = vector.load %arg2[%c6_48, %c0_49, %c0_50] : memref<9x8x4xf32, #tpu.memory_space<vmem>>, vector<1x8x4xf32>
    %49 = vector.shape_cast %48 : vector<1x8x4xf32> to vector<8x4xf32>
    %cst_51 = arith.constant dense<0.000000e+00> : vector<8x256xf32>
    %50 = tpu.matmul %49, %47, %cst_51 {dimension_numbers = #tpu.dot_dimension_numbers<[1], [0], [0], [1], [0, 0, 1, 1], [], []>} : vector<8x4xf32>, vector<4x256xf32>, vector<8x256xf32> -> vector<8x256xf32>
    %51 = arith.addf %44, %50 : vector<8x256xf32>
    %c7 = arith.constant 7 : index
    %c0_52 = arith.constant 0 : index
    %c0_53 = arith.constant 0 : index
    %52 = vector.load %arg4[%c7, %c0_52, %c0_53] : memref<9x256x256xf32, #tpu.memory_space<vmem>>, vector<1x256x256xf32>
    %53 = vector.shape_cast %52 : vector<1x256x256xf32> to vector<256x256xf32>
    %cst_54 = arith.constant dense<0.000000e+00> : vector<4x256xf32>
    %54 = tpu.matmul %1, %53, %cst_54 {dimension_numbers = #tpu.dot_dimension_numbers<[1], [0], [0], [1], [0, 0, 1, 1], [], []>} : vector<4x256xf32>, vector<256x256xf32>, vector<4x256xf32> -> vector<4x256xf32>
    %c7_55 = arith.constant 7 : index
    %c0_56 = arith.constant 0 : index
    %c0_57 = arith.constant 0 : index
    %55 = vector.load %arg2[%c7_55, %c0_56, %c0_57] : memref<9x8x4xf32, #tpu.memory_space<vmem>>, vector<1x8x4xf32>
    %56 = vector.shape_cast %55 : vector<1x8x4xf32> to vector<8x4xf32>
    %cst_58 = arith.constant dense<0.000000e+00> : vector<8x256xf32>
    %57 = tpu.matmul %56, %54, %cst_58 {dimension_numbers = #tpu.dot_dimension_numbers<[1], [0], [0], [1], [0, 0, 1, 1], [], []>} : vector<8x4xf32>, vector<4x256xf32>, vector<8x256xf32> -> vector<8x256xf32>
    %58 = arith.addf %51, %57 : vector<8x256xf32>
    %c8 = arith.constant 8 : index
    %c0_59 = arith.constant 0 : index
    %c0_60 = arith.constant 0 : index
    %59 = vector.load %arg4[%c8, %c0_59, %c0_60] : memref<9x256x256xf32, #tpu.memory_space<vmem>>, vector<1x256x256xf32>
    %60 = vector.shape_cast %59 : vector<1x256x256xf32> to vector<256x256xf32>
    %cst_61 = arith.constant dense<0.000000e+00> : vector<4x256xf32>
    %61 = tpu.matmul %1, %60, %cst_61 {dimension_numbers = #tpu.dot_dimension_numbers<[1], [0], [0], [1], [0, 0, 1, 1], [], []>} : vector<4x256xf32>, vector<256x256xf32>, vector<4x256xf32> -> vector<4x256xf32>
    %c8_62 = arith.constant 8 : index
    %c0_63 = arith.constant 0 : index
    %c0_64 = arith.constant 0 : index
    %62 = vector.load %arg2[%c8_62, %c0_63, %c0_64] : memref<9x8x4xf32, #tpu.memory_space<vmem>>, vector<1x8x4xf32>
    %63 = vector.shape_cast %62 : vector<1x8x4xf32> to vector<8x4xf32>
    %cst_65 = arith.constant dense<0.000000e+00> : vector<8x256xf32>
    %64 = tpu.matmul %63, %61, %cst_65 {dimension_numbers = #tpu.dot_dimension_numbers<[1], [0], [0], [1], [0, 0, 1, 1], [], []>} : vector<8x4xf32>, vector<4x256xf32>, vector<8x256xf32> -> vector<8x256xf32>
    %65 = arith.addf %58, %64 : vector<8x256xf32>
    %cst_66 = arith.constant dense<0.000000e+00> : vector<8xf32>
    %66 = vector.multi_reduction <add>, %65, %cst_66 [1] : vector<8x256xf32> to vector<8xf32>
    %67 = vector.shape_cast %66 : vector<8xf32> to vector<8x1xf32>
    %cst_67 = arith.constant 2.560000e+02 : f32
    %68 = vector.broadcast %cst_67 : f32 to vector<8x1xf32>
    %69 = arith.divf %67, %68 : vector<8x1xf32>
    %70 = vector.broadcast %69 : vector<8x1xf32> to vector<8x256xf32>
    %71 = arith.subf %65, %70 : vector<8x256xf32>
    %72 = arith.mulf %71, %71 : vector<8x256xf32>
    %cst_68 = arith.constant dense<0.000000e+00> : vector<8xf32>
    %73 = vector.multi_reduction <add>, %72, %cst_68 [1] : vector<8x256xf32> to vector<8xf32>
    %74 = vector.shape_cast %73 : vector<8xf32> to vector<8x1xf32>
    %cst_69 = arith.constant 2.560000e+02 : f32
    %75 = vector.broadcast %cst_69 : f32 to vector<8x1xf32>
    %76 = arith.divf %74, %75 : vector<8x1xf32>
    %cst_70 = arith.constant 9.99999974E-6 : f32
    %77 = vector.broadcast %cst_70 : f32 to vector<8x1xf32>
    %78 = arith.addf %76, %77 : vector<8x1xf32>
    %79 = math.rsqrt %78 : vector<8x1xf32>
    %80 = vector.broadcast %79 : vector<8x1xf32> to vector<8x256xf32>
    %81 = arith.mulf %71, %80 : vector<8x256xf32>
    %cst_71 = arith.constant 0.000000e+00 : f32
    %82 = vector.broadcast %cst_71 : f32 to vector<8x256xf32>
    %83 = arith.maximumf %81, %82 : vector<8x256xf32>
    %cst_72 = arith.constant 0.000000e+00 : f32
    %84 = vector.broadcast %cst_72 : f32 to vector<8x256xf32>
    %c0_73 = arith.constant 0 : index
    %c0_74 = arith.constant 0 : index
    %c0_75 = arith.constant 0 : index
    %85 = vector.load %arg4[%c0_73, %c0_74, %c0_75] : memref<9x256x256xf32, #tpu.memory_space<vmem>>, vector<1x256x256xf32>
    %86 = vector.shape_cast %85 : vector<1x256x256xf32> to vector<256x256xf32>
    %cst_76 = arith.constant dense<0.000000e+00> : vector<8x256xf32>
    %87 = tpu.matmul %83, %86, %cst_76 {dimension_numbers = #tpu.dot_dimension_numbers<[1], [0], [0], [1], [0, 0, 1, 1], [], []>} : vector<8x256xf32>, vector<256x256xf32>, vector<8x256xf32> -> vector<8x256xf32>
    %c0_77 = arith.constant 0 : index
    %c0_78 = arith.constant 0 : index
    %c0_79 = arith.constant 0 : index
    %88 = vector.load %arg3[%c0_77, %c0_78, %c0_79] : memref<9x8x8xf32, #tpu.memory_space<vmem>>, vector<1x8x8xf32>
    %89 = vector.shape_cast %88 : vector<1x8x8xf32> to vector<8x8xf32>
    %cst_80 = arith.constant dense<0.000000e+00> : vector<8x256xf32>
    %90 = tpu.matmul %89, %87, %cst_80 {dimension_numbers = #tpu.dot_dimension_numbers<[1], [0], [0], [1], [0, 0, 1, 1], [], []>} : vector<8x8xf32>, vector<8x256xf32>, vector<8x256xf32> -> vector<8x256xf32>
    %91 = arith.addf %84, %90 : vector<8x256xf32>
    %c1_81 = arith.constant 1 : index
    %c0_82 = arith.constant 0 : index
    %c0_83 = arith.constant 0 : index
    %92 = vector.load %arg4[%c1_81, %c0_82, %c0_83] : memref<9x256x256xf32, #tpu.memory_space<vmem>>, vector<1x256x256xf32>
    %93 = vector.shape_cast %92 : vector<1x256x256xf32> to vector<256x256xf32>
    %cst_84 = arith.constant dense<0.000000e+00> : vector<8x256xf32>
    %94 = tpu.matmul %83, %93, %cst_84 {dimension_numbers = #tpu.dot_dimension_numbers<[1], [0], [0], [1], [0, 0, 1, 1], [], []>} : vector<8x256xf32>, vector<256x256xf32>, vector<8x256xf32> -> vector<8x256xf32>
    %c1_85 = arith.constant 1 : index
    %c0_86 = arith.constant 0 : index
    %c0_87 = arith.constant 0 : index
    %95 = vector.load %arg3[%c1_85, %c0_86, %c0_87] : memref<9x8x8xf32, #tpu.memory_space<vmem>>, vector<1x8x8xf32>
    %96 = vector.shape_cast %95 : vector<1x8x8xf32> to vector<8x8xf32>
    %cst_88 = arith.constant dense<0.000000e+00> : vector<8x256xf32>
    %97 = tpu.matmul %96, %94, %cst_88 {dimension_numbers = #tpu.dot_dimension_numbers<[1], [0], [0], [1], [0, 0, 1, 1], [], []>} : vector<8x8xf32>, vector<8x256xf32>, vector<8x256xf32> -> vector<8x256xf32>
    %98 = arith.addf %91, %97 : vector<8x256xf32>
    %c2_89 = arith.constant 2 : index
    %c0_90 = arith.constant 0 : index
    %c0_91 = arith.constant 0 : index
    %99 = vector.load %arg4[%c2_89, %c0_90, %c0_91] : memref<9x256x256xf32, #tpu.memory_space<vmem>>, vector<1x256x256xf32>
    %100 = vector.shape_cast %99 : vector<1x256x256xf32> to vector<256x256xf32>
    %cst_92 = arith.constant dense<0.000000e+00> : vector<8x256xf32>
    %101 = tpu.matmul %83, %100, %cst_92 {dimension_numbers = #tpu.dot_dimension_numbers<[1], [0], [0], [1], [0, 0, 1, 1], [], []>} : vector<8x256xf32>, vector<256x256xf32>, vector<8x256xf32> -> vector<8x256xf32>
    %c2_93 = arith.constant 2 : index
    %c0_94 = arith.constant 0 : index
    %c0_95 = arith.constant 0 : index
    %102 = vector.load %arg3[%c2_93, %c0_94, %c0_95] : memref<9x8x8xf32, #tpu.memory_space<vmem>>, vector<1x8x8xf32>
    %103 = vector.shape_cast %102 : vector<1x8x8xf32> to vector<8x8xf32>
    %cst_96 = arith.constant dense<0.000000e+00> : vector<8x256xf32>
    %104 = tpu.matmul %103, %101, %cst_96 {dimension_numbers = #tpu.dot_dimension_numbers<[1], [0], [0], [1], [0, 0, 1, 1], [], []>} : vector<8x8xf32>, vector<8x256xf32>, vector<8x256xf32> -> vector<8x256xf32>
    %105 = arith.addf %98, %104 : vector<8x256xf32>
    %c3_97 = arith.constant 3 : index
    %c0_98 = arith.constant 0 : index
    %c0_99 = arith.constant 0 : index
    %106 = vector.load %arg4[%c3_97, %c0_98, %c0_99] : memref<9x256x256xf32, #tpu.memory_space<vmem>>, vector<1x256x256xf32>
    %107 = vector.shape_cast %106 : vector<1x256x256xf32> to vector<256x256xf32>
    %cst_100 = arith.constant dense<0.000000e+00> : vector<8x256xf32>
    %108 = tpu.matmul %83, %107, %cst_100 {dimension_numbers = #tpu.dot_dimension_numbers<[1], [0], [0], [1], [0, 0, 1, 1], [], []>} : vector<8x256xf32>, vector<256x256xf32>, vector<8x256xf32> -> vector<8x256xf32>
    %c3_101 = arith.constant 3 : index
    %c0_102 = arith.constant 0 : index
    %c0_103 = arith.constant 0 : index
    %109 = vector.load %arg3[%c3_101, %c0_102, %c0_103] : memref<9x8x8xf32, #tpu.memory_space<vmem>>, vector<1x8x8xf32>
    %110 = vector.shape_cast %109 : vector<1x8x8xf32> to vector<8x8xf32>
    %cst_104 = arith.constant dense<0.000000e+00> : vector<8x256xf32>
    %111 = tpu.matmul %110, %108, %cst_104 {dimension_numbers = #tpu.dot_dimension_numbers<[1], [0], [0], [1], [0, 0, 1, 1], [], []>} : vector<8x8xf32>, vector<8x256xf32>, vector<8x256xf32> -> vector<8x256xf32>
    %112 = arith.addf %105, %111 : vector<8x256xf32>
    %c4_105 = arith.constant 4 : index
    %c0_106 = arith.constant 0 : index
    %c0_107 = arith.constant 0 : index
    %113 = vector.load %arg4[%c4_105, %c0_106, %c0_107] : memref<9x256x256xf32, #tpu.memory_space<vmem>>, vector<1x256x256xf32>
    %114 = vector.shape_cast %113 : vector<1x256x256xf32> to vector<256x256xf32>
    %cst_108 = arith.constant dense<0.000000e+00> : vector<8x256xf32>
    %115 = tpu.matmul %83, %114, %cst_108 {dimension_numbers = #tpu.dot_dimension_numbers<[1], [0], [0], [1], [0, 0, 1, 1], [], []>} : vector<8x256xf32>, vector<256x256xf32>, vector<8x256xf32> -> vector<8x256xf32>
    %c4_109 = arith.constant 4 : index
    %c0_110 = arith.constant 0 : index
    %c0_111 = arith.constant 0 : index
    %116 = vector.load %arg3[%c4_109, %c0_110, %c0_111] : memref<9x8x8xf32, #tpu.memory_space<vmem>>, vector<1x8x8xf32>
    %117 = vector.shape_cast %116 : vector<1x8x8xf32> to vector<8x8xf32>
    %cst_112 = arith.constant dense<0.000000e+00> : vector<8x256xf32>
    %118 = tpu.matmul %117, %115, %cst_112 {dimension_numbers = #tpu.dot_dimension_numbers<[1], [0], [0], [1], [0, 0, 1, 1], [], []>} : vector<8x8xf32>, vector<8x256xf32>, vector<8x256xf32> -> vector<8x256xf32>
    %119 = arith.addf %112, %118 : vector<8x256xf32>
    %c5_113 = arith.constant 5 : index
    %c0_114 = arith.constant 0 : index
    %c0_115 = arith.constant 0 : index
    %120 = vector.load %arg4[%c5_113, %c0_114, %c0_115] : memref<9x256x256xf32, #tpu.memory_space<vmem>>, vector<1x256x256xf32>
    %121 = vector.shape_cast %120 : vector<1x256x256xf32> to vector<256x256xf32>
    %cst_116 = arith.constant dense<0.000000e+00> : vector<8x256xf32>
    %122 = tpu.matmul %83, %121, %cst_116 {dimension_numbers = #tpu.dot_dimension_numbers<[1], [0], [0], [1], [0, 0, 1, 1], [], []>} : vector<8x256xf32>, vector<256x256xf32>, vector<8x256xf32> -> vector<8x256xf32>
    %c5_117 = arith.constant 5 : index
    %c0_118 = arith.constant 0 : index
    %c0_119 = arith.constant 0 : index
    %123 = vector.load %arg3[%c5_117, %c0_118, %c0_119] : memref<9x8x8xf32, #tpu.memory_space<vmem>>, vector<1x8x8xf32>
    %124 = vector.shape_cast %123 : vector<1x8x8xf32> to vector<8x8xf32>
    %cst_120 = arith.constant dense<0.000000e+00> : vector<8x256xf32>
    %125 = tpu.matmul %124, %122, %cst_120 {dimension_numbers = #tpu.dot_dimension_numbers<[1], [0], [0], [1], [0, 0, 1, 1], [], []>} : vector<8x8xf32>, vector<8x256xf32>, vector<8x256xf32> -> vector<8x256xf32>
    %126 = arith.addf %119, %125 : vector<8x256xf32>
    %c6_121 = arith.constant 6 : index
    %c0_122 = arith.constant 0 : index
    %c0_123 = arith.constant 0 : index
    %127 = vector.load %arg4[%c6_121, %c0_122, %c0_123] : memref<9x256x256xf32, #tpu.memory_space<vmem>>, vector<1x256x256xf32>
    %128 = vector.shape_cast %127 : vector<1x256x256xf32> to vector<256x256xf32>
    %cst_124 = arith.constant dense<0.000000e+00> : vector<8x256xf32>
    %129 = tpu.matmul %83, %128, %cst_124 {dimension_numbers = #tpu.dot_dimension_numbers<[1], [0], [0], [1], [0, 0, 1, 1], [], []>} : vector<8x256xf32>, vector<256x256xf32>, vector<8x256xf32> -> vector<8x256xf32>
    %c6_125 = arith.constant 6 : index
    %c0_126 = arith.constant 0 : index
    %c0_127 = arith.constant 0 : index
    %130 = vector.load %arg3[%c6_125, %c0_126, %c0_127] : memref<9x8x8xf32, #tpu.memory_space<vmem>>, vector<1x8x8xf32>
    %131 = vector.shape_cast %130 : vector<1x8x8xf32> to vector<8x8xf32>
    %cst_128 = arith.constant dense<0.000000e+00> : vector<8x256xf32>
    %132 = tpu.matmul %131, %129, %cst_128 {dimension_numbers = #tpu.dot_dimension_numbers<[1], [0], [0], [1], [0, 0, 1, 1], [], []>} : vector<8x8xf32>, vector<8x256xf32>, vector<8x256xf32> -> vector<8x256xf32>
    %133 = arith.addf %126, %132 : vector<8x256xf32>
    %c7_129 = arith.constant 7 : index
    %c0_130 = arith.constant 0 : index
    %c0_131 = arith.constant 0 : index
    %134 = vector.load %arg4[%c7_129, %c0_130, %c0_131] : memref<9x256x256xf32, #tpu.memory_space<vmem>>, vector<1x256x256xf32>
    %135 = vector.shape_cast %134 : vector<1x256x256xf32> to vector<256x256xf32>
    %cst_132 = arith.constant dense<0.000000e+00> : vector<8x256xf32>
    %136 = tpu.matmul %83, %135, %cst_132 {dimension_numbers = #tpu.dot_dimension_numbers<[1], [0], [0], [1], [0, 0, 1, 1], [], []>} : vector<8x256xf32>, vector<256x256xf32>, vector<8x256xf32> -> vector<8x256xf32>
    %c7_133 = arith.constant 7 : index
    %c0_134 = arith.constant 0 : index
    %c0_135 = arith.constant 0 : index
    %137 = vector.load %arg3[%c7_133, %c0_134, %c0_135] : memref<9x8x8xf32, #tpu.memory_space<vmem>>, vector<1x8x8xf32>
    %138 = vector.shape_cast %137 : vector<1x8x8xf32> to vector<8x8xf32>
    %cst_136 = arith.constant dense<0.000000e+00> : vector<8x256xf32>
    %139 = tpu.matmul %138, %136, %cst_136 {dimension_numbers = #tpu.dot_dimension_numbers<[1], [0], [0], [1], [0, 0, 1, 1], [], []>} : vector<8x8xf32>, vector<8x256xf32>, vector<8x256xf32> -> vector<8x256xf32>
    %140 = arith.addf %133, %139 : vector<8x256xf32>
    %c8_137 = arith.constant 8 : index
    %c0_138 = arith.constant 0 : index
    %c0_139 = arith.constant 0 : index
    %141 = vector.load %arg4[%c8_137, %c0_138, %c0_139] : memref<9x256x256xf32, #tpu.memory_space<vmem>>, vector<1x256x256xf32>
    %142 = vector.shape_cast %141 : vector<1x256x256xf32> to vector<256x256xf32>
    %cst_140 = arith.constant dense<0.000000e+00> : vector<8x256xf32>
    %143 = tpu.matmul %83, %142, %cst_140 {dimension_numbers = #tpu.dot_dimension_numbers<[1], [0], [0], [1], [0, 0, 1, 1], [], []>} : vector<8x256xf32>, vector<256x256xf32>, vector<8x256xf32> -> vector<8x256xf32>
    %c8_141 = arith.constant 8 : index
    %c0_142 = arith.constant 0 : index
    %c0_143 = arith.constant 0 : index
    %144 = vector.load %arg3[%c8_141, %c0_142, %c0_143] : memref<9x8x8xf32, #tpu.memory_space<vmem>>, vector<1x8x8xf32>
    %145 = vector.shape_cast %144 : vector<1x8x8xf32> to vector<8x8xf32>
    %cst_144 = arith.constant dense<0.000000e+00> : vector<8x256xf32>
    %146 = tpu.matmul %145, %143, %cst_144 {dimension_numbers = #tpu.dot_dimension_numbers<[1], [0], [0], [1], [0, 0, 1, 1], [], []>} : vector<8x8xf32>, vector<8x256xf32>, vector<8x256xf32> -> vector<8x256xf32>
    %147 = arith.addf %140, %146 : vector<8x256xf32>
    %cst_145 = arith.constant dense<0.000000e+00> : vector<8xf32>
    %148 = vector.multi_reduction <add>, %147, %cst_145 [1] : vector<8x256xf32> to vector<8xf32>
    %149 = vector.shape_cast %148 : vector<8xf32> to vector<8x1xf32>
    %cst_146 = arith.constant 2.560000e+02 : f32
    %150 = vector.broadcast %cst_146 : f32 to vector<8x1xf32>
    %151 = arith.divf %149, %150 : vector<8x1xf32>
    %152 = vector.broadcast %151 : vector<8x1xf32> to vector<8x256xf32>
    %153 = arith.subf %147, %152 : vector<8x256xf32>
    %154 = arith.mulf %153, %153 : vector<8x256xf32>
    %cst_147 = arith.constant dense<0.000000e+00> : vector<8xf32>
    %155 = vector.multi_reduction <add>, %154, %cst_147 [1] : vector<8x256xf32> to vector<8xf32>
    %156 = vector.shape_cast %155 : vector<8xf32> to vector<8x1xf32>
    %cst_148 = arith.constant 2.560000e+02 : f32
    %157 = vector.broadcast %cst_148 : f32 to vector<8x1xf32>
    %158 = arith.divf %156, %157 : vector<8x1xf32>
    %cst_149 = arith.constant 9.99999974E-6 : f32
    %159 = vector.broadcast %cst_149 : f32 to vector<8x1xf32>
    %160 = arith.addf %158, %159 : vector<8x1xf32>
    %161 = math.rsqrt %160 : vector<8x1xf32>
    %162 = vector.broadcast %161 : vector<8x1xf32> to vector<8x256xf32>
    %163 = arith.mulf %153, %162 : vector<8x256xf32>
    %cst_150 = arith.constant 0.000000e+00 : f32
    %164 = vector.broadcast %cst_150 : f32 to vector<8x256xf32>
    %165 = arith.maximumf %163, %164 : vector<8x256xf32>
    %166 = vector.shape_cast %165 : vector<8x256xf32> to vector<1x8x256xf32>
    %c0_151 = arith.constant 0 : index
    %c0_152 = arith.constant 0 : index
    %c0_153 = arith.constant 0 : index
    %167 = vector.load %arg5[%c0_151, %c0_152, %c0_153] : memref<1x8x256xf32, #tpu.memory_space<vmem>>, vector<1x8x256xf32>
    tpu.vector_store %arg5[%c0_151, %c0_152, %c0_153], %166 {strides = array<i32>} : memref<1x8x256xf32, #tpu.memory_space<vmem>>, vector<1x8x256xf32>,
    return
  }
  func.func @transform_0(%arg0: i32) -> (i32, i32, i32) {
    %c0_i32 = arith.constant 0 : i32
    %c0_i32_0 = arith.constant 0 : i32
    %c0_i32_1 = arith.constant 0 : i32
    return %arg0, %c0_i32, %c0_i32_0 : i32, i32, i32
  }
  func.func @transform_1(%arg0: i32) -> (i32, i32, i32) {
    %c0_i32 = arith.constant 0 : i32
    %c0_i32_0 = arith.constant 0 : i32
    %c0_i32_1 = arith.constant 0 : i32
    %c0_i32_2 = arith.constant 0 : i32
    return %c0_i32, %c0_i32_0, %c0_i32_1 : i32, i32, i32
  }
  func.func @transform_2(%arg0: i32) -> (i32, i32, i32) {
    %c0_i32 = arith.constant 0 : i32
    %c0_i32_0 = arith.constant 0 : i32
    %c0_i32_1 = arith.constant 0 : i32
    %c0_i32_2 = arith.constant 0 : i32
    return %c0_i32, %c0_i32_0, %c0_i32_1 : i32, i32, i32
  }
  func.func @transform_3(%arg0: i32) -> (i32, i32, i32) {
    %c0_i32 = arith.constant 0 : i32
    %c0_i32_0 = arith.constant 0 : i32
    %c0_i32_1 = arith.constant 0 : i32
    %c0_i32_2 = arith.constant 0 : i32
    return %c0_i32, %c0_i32_0, %c0_i32_1 : i32, i32, i32
  }
  func.func @transform_4(%arg0: i32) -> (i32, i32, i32) {
    %c0_i32 = arith.constant 0 : i32
    %c0_i32_0 = arith.constant 0 : i32
    %c0_i32_1 = arith.constant 0 : i32
    return %arg0, %c0_i32, %c0_i32_0 : i32, i32, i32
  }
}

</mosaic_0001>

<llo_original>
// kernel: tpu_custom_call.1
$region0: #{tpu_custom_call.1}
  #allocation0 [shape = 'u32[]', space=smem, size = 0x4, offset = 0x4, fixed_abs, tag = 'smem constant byte address 0x4 - core index']
  #allocation1 [shape = 'u32[144,128]{1,0:T(1,128)}', space=vmem, size = 0x12000, scoped, tag = 'internal scratch']
  %s0 = inlined_call_operand.hbm [shape: f32[2,4,256], index: 0, kind: input, shape index: {}]
  %s1 = inlined_call_operand.vmem [shape: f32[9,8,4], index: 1, kind: input, shape index: {}]
  %s2 = inlined_call_operand.vmem [shape: f32[9,8,8], index: 2, kind: input, shape index: {}]
  %s3 = inlined_call_operand.hbm [shape: f32[9,256,256], index: 3, kind: input, shape index: {}]
  %s4 = inlined_call_operand.hbm [shape: f32[2,8,256], index: 4, kind: output, shape index: {}]
  %s5 = sld [smem:[#allocation0]]
  $region57: #{tpu_custom_call.1} parent=0
    _
  %s7 = ssub.s32 1, %s5
  %s8 = scalar_select 0, %s7, %s5
  $region1: #{tpu_custom_call.1} parent=0
    #allocation2 [shape = 'u8[8192]{0}', space=vmem, size = 0x2000, scoped, tag = 'input window, operand 0']
    #allocation3 [shape = 's32[2]{0}', space=sflag, size = 0x8, scoped, tag = 'scoped memory for tpu_custom_call.1']
    #allocation4 [shape = 's32[2]{0}', space=sflag, size = 0x8, scoped, tag = 'scoped memory for tpu_custom_call.1']
    #allocation5 [shape = 'u8[2359296]{0}', space=vmem, size = 0x240000, scoped, tag = 'input window, operand 3, single buffered']
    #allocation6 [shape = 's32[1]{0}', space=sflag, size = 0x4, scoped, tag = 'scoped memory for tpu_custom_call.1']
    #allocation7 [shape = 'u8[16384]{0}', space=vmem, size = 0x4000, scoped, tag = 'output window, operand 0']
    %9 = vsyncpa [#allocation3], 0
    %s10 = scalar_lea.sflag [#allocation3], 1
    %11 = vsyncpa %s10, 0
    %12 = vsyncpa [#allocation6], 0
    %13 = vsyncpa [#allocation4], 0
    %s14 = scalar_lea.sflag [#allocation4], 1
    %15 = vsyncpa %s14, 0
    loop: start=0, step=1, limit=4
    $region2: #{tpu_custom_call.1} parent=1 // loop_pre_header
      _
    $region3: #{tpu_custom_call.1} parent=1 // loop_header
      %s17 = sphi 0, %s21
      %p18 = scmp.ge.s32.totalorder %s17, 4
      %s27 = sphi 0, %s29
      %s30 = sphi 0, %s27
      %s31 = sphi 0, %s30
      %s47 = sphi 0, %s31
      %s51 = sphi 0, %s51
      %s53 = sphi 0, %s51
      %s54 = sphi 0, %s53
      %s68 = sphi 0, %s54
      %s72 = sphi 0, %s72
      %s74 = sphi 0, %s72
      %s75 = sphi 0, %s74
      %s89 = sphi 0, %s75
      %s93 = sphi 0, %s93
      %s95 = sphi 0, %s93
      %s96 = sphi 0, %s95
      %s110 = sphi 0, %s96
      %s116 = sphi 0, %s118
      %s119 = sphi 0, %s116
      %s120 = sphi 0, %s119
      %s136 = sphi 0, %s120
    $region4: #{tpu_custom_call.1} parent=1 // loop_header_branch
      %20 = sbr.rel (%p18) target = $region8
    $region5: #{tpu_custom_call.1} parent=1 // loop_body
      %s22 = ssub.s32 %s17, 1
      %s23 = ssub.s32 %s17, 2
      %s24 = sadd.s32 %s17, 1
      %s25 = ssub.s32 %s17, %s24
      %p26 = scmp.eq.s32.totalorder %s25, 0
      %s28 = sadd.s32 %s27, 1
      %s29 = scalar_select %p26, %s27, %s28
      %p32 = pneg %p26
      %p33 = scmp.eq.s32.totalorder %s17, 1
      %p34 = por %p32, %p33
      %p35 = scmp.ne.s32.totalorder %s27, %s30
      %p36 = scmp.eq.s32.totalorder %s17, 0
      %p37 = por %p35, %p36
      %p38 = scmp.ne.s32.totalorder %s27, %s30
      %p39 = scmp.eq.s32.totalorder %s22, 1
      %p40 = por %p38, %p39
      %p41 = scmp.ne.s32.totalorder %s30, %s31
      %p42 = scmp.eq.s32.totalorder %s22, 0
      %p43 = por %p41, %p42
      %p44 = scmp.ne.s32.totalorder %s30, %s31
      %p45 = scmp.eq.s32.totalorder %s23, 1
      %p46 = por %p44, %p45
      %p48 = scmp.ne.s32.totalorder %s31, %s47
      %p49 = scmp.eq.s32.totalorder %s23, 0
      %p50 = por %p48, %p49
      %s52 = sadd.s32 %s51, 1
      %p55 = scmp.eq.s32.totalorder %s17, 1
      %p56 = scmp.ne.s32.totalorder %s51, %s53
      %p57 = scmp.eq.s32.totalorder %s17, 0
      %p58 = por %p56, %p57
      %p59 = scmp.ne.s32.totalorder %s51, %s53
      %p60 = scmp.eq.s32.totalorder %s22, 1
      %p61 = por %p59, %p60
      %p62 = scmp.ne.s32.totalorder %s53, %s54
      %p63 = scmp.eq.s32.totalorder %s22, 0
      %p64 = por %p62, %p63
      %p65 = scmp.ne.s32.totalorder %s53, %s54
      %p66 = scmp.eq.s32.totalorder %s23, 1
      %p67 = por %p65, %p66
      %p69 = scmp.ne.s32.totalorder %s54, %s68
      %p70 = scmp.eq.s32.totalorder %s23, 0
      %p71 = por %p69, %p70
      %s73 = sadd.s32 %s72, 1
      %p76 = scmp.eq.s32.totalorder %s17, 1
      %p77 = scmp.ne.s32.totalorder %s72, %s74
      %p78 = scmp.eq.s32.totalorder %s17, 0
      %p79 = por %p77, %p78
      %p80 = scmp.ne.s32.totalorder %s72, %s74
      %p81 = scmp.eq.s32.totalorder %s22, 1
      %p82 = por %p80, %p81
      %p83 = scmp.ne.s32.totalorder %s74, %s75
      %p84 = scmp.eq.s32.totalorder %s22, 0
      %p85 = por %p83, %p84
      %p86 = scmp.ne.s32.totalorder %s74, %s75
      %p87 = scmp.eq.s32.totalorder %s23, 1
      %p88 = por %p86, %p87
      %p90 = scmp.ne.s32.totalorder %s75, %s89
      %p91 = scmp.eq.s32.totalorder %s23, 0
      %p92 = por %p90, %p91
      %s94 = sadd.s32 %s93, 1
      %p97 = scmp.eq.s32.totalorder %s17, 1
      %p98 = scmp.ne.s32.totalorder %s93, %s95
      %p99 = scmp.eq.s32.totalorder %s17, 0
      %p100 = por %p98, %p99
      %p101 = scmp.ne.s32.totalorder %s93, %s95
      %p102 = scmp.eq.s32.totalorder %s22, 1
      %p103 = por %p101, %p102
      %p104 = scmp.ne.s32.totalorder %s95, %s96
      %p105 = scmp.eq.s32.totalorder %s22, 0
      %p106 = por %p104, %p105
      %p107 = scmp.ne.s32.totalorder %s95, %s96
      %p108 = scmp.eq.s32.totalorder %s23, 1
      %p109 = por %p107, %p108
      %p111 = scmp.ne.s32.totalorder %s96, %s110
      %p112 = scmp.eq.s32.totalorder %s23, 0
      %p113 = por %p111, %p112
      %s114 = ssub.s32 %s17, %s24
      %p115 = scmp.eq.s32.totalorder %s114, 0
      %s117 = sadd.s32 %s116, 1
      %s118 = scalar_select %p115, %s116, %s117
      %p121 = pneg %p115
      %p122 = scmp.eq.s32.totalorder %s17, 1
      %p123 = por %p121, %p122
      %p124 = scmp.ne.s32.totalorder %s116, %s119
      %p125 = scmp.eq.s32.totalorder %s17, 0
      %p126 = por %p124, %p125
      %p127 = scmp.ne.s32.totalorder %s116, %s119
      %p128 = scmp.eq.s32.totalorder %s22, 1
      %p129 = por %p127, %p128
      %p130 = scmp.ne.s32.totalorder %s119, %s120
      %p131 = scmp.eq.s32.totalorder %s22, 0
      %p132 = por %p130, %p131
      %p133 = scmp.ne.s32.totalorder %s119, %s120
      %p134 = scmp.eq.s32.totalorder %s23, 1
      %p135 = por %p133, %p134
      %p137 = scmp.ne.s32.totalorder %s120, %s136
      %p138 = scmp.eq.s32.totalorder %s23, 0
      %p139 = por %p137, %p138
      %p140 = scmp.le.s32.totalorder 1, %s17
      %p141 = scmp.lt.s32.totalorder %s17, 3
      %p142 = pnand %p140, %p141
      %p143 = pneg %p142
      // Predicated region
      $region9: #{tpu_custom_call.1} parent=5 // pred_check
        _
      $region10: #{tpu_custom_call.1} parent=5 // pred_check_branch
        %145 = sbr.rel (%p142) target = $region12
      $region11: #{tpu_custom_call.1} parent=5 // pred_region
        %s146 = ssub.s32 %s17, 1
        // Predicated region
        $region13: #{tpu_custom_call.1} parent=11 // pred_check
          %p147 = pneg %p64
        $region14: #{tpu_custom_call.1} parent=11 // pred_check_branch
          %149 = sbr.rel (%p147) target = $region16
        $region15: #{tpu_custom_call.1} parent=11 // pred_region
          _
        $region16: #{tpu_custom_call.1} parent=11 // pred_fallthru
          _
        // Predicated region
        $region17: #{tpu_custom_call.1} parent=11 // pred_check
          %p150 = pneg %p85
        $region18: #{tpu_custom_call.1} parent=11 // pred_check_branch
          %152 = sbr.rel (%p150) target = $region20
        $region19: #{tpu_custom_call.1} parent=11 // pred_region
          _
        $region20: #{tpu_custom_call.1} parent=11 // pred_fallthru
          _
        // Predicated region
        $region21: #{tpu_custom_call.1} parent=11 // pred_check
          %p153 = pneg %p106
        $region22: #{tpu_custom_call.1} parent=11 // pred_check_branch
          %155 = sbr.rel (%p153) target = $region24
        $region23: #{tpu_custom_call.1} parent=11 // pred_region
          %s157 = ssub.s32 73728, 73728
          %158 = vsyncadd [#allocation6], %s157
          %s159 = sshll.u32 [#allocation5], 4
          %s160 = int_to_ptr.vmem [resolvable:$true] %s159
          %165 = dma.hbm_to_vmem [thread:$0]  %s3, 73728, %s160, [#allocation6], 256, 256, 16
        $region24: #{tpu_custom_call.1} parent=11 // pred_fallthru
          _
      $region12: #{tpu_custom_call.1} parent=5 // pred_fallthru
        _
      %p166 = scmp.lt.s32.totalorder %s17, 2
      // Predicated region
      $region25: #{tpu_custom_call.1} parent=5 // pred_check
        %p167 = pneg %p166
      $region26: #{tpu_custom_call.1} parent=5 // pred_check_branch
        %169 = sbr.rel (%p167) target = $region28
      $region27: #{tpu_custom_call.1} parent=5 // pred_region
        // Predicated region
        $region29: #{tpu_custom_call.1} parent=27 // pred_check
          %p170 = pneg %p37
        $region30: #{tpu_custom_call.1} parent=27 // pred_check_branch
          %172 = sbr.rel (%p170) target = $region32
        $region31: #{tpu_custom_call.1} parent=27 // pred_region
          %s173 = sand.u32 %s27, 1
          %s174 = scalar_lea.sflag [#allocation3], %s173
          %s175 = sand.u32 %s27, 1
          %s176 = smul.addr %s175, 8
          %s177 = scalar_lea.vmem [#allocation2], %s176
          %s179 = ssub.s32 128, 128
          %180 = vsyncadd %s174, %s179
          %s181 = smul.addr %s17, 2
          %s182 = smul.addr %s181, 64
          %s183 = scalar_lea.hbm %s0, %s182
          %s185 = sshll.u32 %s177, 4
          %s186 = int_to_ptr.vmem [resolvable:$true] %s185
          %188 = dma.hbm_to_vmem [thread:$0]  %s183, 128, %s186, %s174
        $region32: #{tpu_custom_call.1} parent=27 // pred_fallthru
          _
      $region28: #{tpu_custom_call.1} parent=5 // pred_fallthru
        _
      %p189 = scmp.le.s32.totalorder 1, %s17
      %p190 = scmp.lt.s32.totalorder %s17, 3
      %p191 = pnand %p189, %p190
      %p192 = pneg %p191
      // Predicated region
      $region33: #{tpu_custom_call.1} parent=5 // pred_check
        _
      $region34: #{tpu_custom_call.1} parent=5 // pred_check_branch
        %194 = sbr.rel (%p191) target = $region36
      $region35: #{tpu_custom_call.1} parent=5 // pred_region
        %s195 = ssub.s32 %s17, 1
        %s196 = sand.u32 %s30, 1
        %s197 = scalar_lea.sflag [#allocation3], %s196
        %s198 = sand.u32 %s30, 1
        %s199 = smul.addr %s198, 8
        %s200 = scalar_lea.vmem [#allocation2], %s199
        // Predicated region
        $region37: #{tpu_custom_call.1} parent=35 // pred_check
          %p201 = pneg %p43
        $region38: #{tpu_custom_call.1} parent=35 // pred_check_branch
          %203 = sbr.rel (%p201) target = $region40
        $region39: #{tpu_custom_call.1} parent=35 // pred_region
          %204 = dma.done %s197, 128
        $region40: #{tpu_custom_call.1} parent=35 // pred_fallthru
          _
        // Predicated region
        $region41: #{tpu_custom_call.1} parent=35 // pred_check
          %p205 = pneg %p106
        $region42: #{tpu_custom_call.1} parent=35 // pred_check_branch
          %207 = sbr.rel (%p205) target = $region44
        $region43: #{tpu_custom_call.1} parent=35 // pred_region
          %208 = dma.done [#allocation6], 73728
        $region44: #{tpu_custom_call.1} parent=35 // pred_fallthru
          _
        %s209 = sand.u32 %s30, 1
        %s210 = scalar_lea.sflag [#allocation3], %s209
        %s211 = sand.u32 %s30, 1
        %s212 = smul.addr %s211, 8
        %s213 = scalar_lea.vmem [#allocation2], %s212
        %p214 = pneg %p43
        %p215 = pneg %p40
        %p216 = pneg %p64
        %p217 = pneg %p61
        %p218 = pneg %p85
        %p219 = pneg %p82
        %p220 = pneg %p106
        %p221 = pneg %p103
        %p222 = pneg %p132
        %p223 = pneg %p129
        %s224 = sand.u32 %s119, 1
        %s225 = scalar_lea.sflag [#allocation4], %s224
        %s226 = sand.u32 %s119, 1
        %s227 = smul.addr %s226, 16
        %s228 = scalar_lea.vmem [#allocation7], %s227
        %v229 = vld [vmem:[%s200] sm:$0xff]
        %v230 = vld [vmem:[#allocation5] sm:$0xff]
        %v231 = vld [vmem:[#allocation5 + $0x8] sm:$0xff]
        %v232 = vld [vmem:[#allocation5 + $0x10] sm:$0xff]
        %v233 = vld [vmem:[#allocation5 + $0x18] sm:$0xff]
        %v234 = vld [vmem:[#allocation5 + $0x20] sm:$0xff]
        %v235 = vld [vmem:[#allocation5 + $0x28] sm:$0xff]
        %v236 = vld [vmem:[#allocation5 + $0x30] sm:$0xff]
        %v237 = vld [vmem:[#allocation5 + $0x38] sm:$0xff]
        %v238 = vld [vmem:[#allocation5 + $0x40] sm:$0xff]
        %v239 = vld [vmem:[#allocation5 + $0x48] sm:$0xff]
        %v240 = vld [vmem:[#allocation5 + $0x50] sm:$0xff]
        %v241 = vld [vmem:[#allocation5 + $0x58] sm:$0xff]
        %v242 = vld [vmem:[#allocation5 + $0x60] sm:$0xff]
        %v243 = vld [vmem:[#allocation5 + $0x68] sm:$0xff]
        %v244 = vld [vmem:[#allocation5 + $0x70] sm:$0xff]
        %v245 = vld [vmem:[#allocation5 + $0x78] sm:$0xff]
        %v246 = vld [vmem:[#allocation5 + $0x80] sm:$0xff]
        %v247 = vld [vmem:[#allocation5 + $0x88] sm:$0xff]
        %v248 = vld [vmem:[#allocation5 + $0x90] sm:$0xff]
        %v249 = vld [vmem:[#allocation5 + $0x98] sm:$0xff]
        %v250 = vld [vmem:[#allocation5 + $0xa0] sm:$0xff]
        %v251 = vld [vmem:[#allocation5 + $0xa8] sm:$0xff]
        %v252 = vld [vmem:[#allocation5 + $0xb0] sm:$0xff]
        %v253 = vld [vmem:[#allocation5 + $0xb8] sm:$0xff]
        %v254 = vld [vmem:[#allocation5 + $0xc0] sm:$0xff]
        %v255 = vld [vmem:[#allocation5 + $0xc8] sm:$0xff]
        %v256 = vld [vmem:[#allocation5 + $0xd0] sm:$0xff]
        %v257 = vld [vmem:[#allocation5 + $0xd8] sm:$0xff]
        %v258 = vld [vmem:[#allocation5 + $0xe0] sm:$0xff]
        %v259 = vld [vmem:[#allocation5 + $0xe8] sm:$0xff]
        %v260 = vld [vmem:[#allocation5 + $0xf0] sm:$0xff]
        %v261 = vld [vmem:[#allocation5 + $0xf8] sm:$0xff]
        %v262 = vld [vmem:[#allocation5 + $0x100] sm:$0xff]
        %v263 = vld [vmem:[#allocation5 + $0x108] sm:$0xff]
        %v264 = vld [vmem:[#allocation5 + $0x110] sm:$0xff]
        %v265 = vld [vmem:[#allocation5 + $0x118] sm:$0xff]
        %v266 = vld [vmem:[#allocation5 + $0x120] sm:$0xff]
        %v267 = vld [vmem:[#allocation5 + $0x128] sm:$0xff]
        %v268 = vld [vmem:[#allocation5 + $0x130] sm:$0xff]
        %v269 = vld [vmem:[#allocation5 + $0x138] sm:$0xff]
        %v270 = vld [vmem:[#allocation5 + $0x140] sm:$0xff]
        %v271 = vld [vmem:[#allocation5 + $0x148] sm:$0xff]
        %v272 = vld [vmem:[#allocation5 + $0x150] sm:$0xff]
        %v273 = vld [vmem:[#allocation5 + $0x158] sm:$0xff]
        %v274 = vld [vmem:[#allocation5 + $0x160] sm:$0xff]
        %v275 = vld [vmem:[#allocation5 + $0x168] sm:$0xff]
        %v276 = vld [vmem:[#allocation5 + $0x170] sm:$0xff]
        %v277 = vld [vmem:[#allocation5 + $0x178] sm:$0xff]
        %v278 = vld [vmem:[#allocation5 + $0x180] sm:$0xff]
        %v279 = vld [vmem:[#allocation5 + $0x188] sm:$0xff]
        %v280 = vld [vmem:[#allocation5 + $0x190] sm:$0xff]
        %v281 = vld [vmem:[#allocation5 + $0x198] sm:$0xff]
        %v282 = vld [vmem:[#allocation5 + $0x1a0] sm:$0xff]
        %v283 = vld [vmem:[#allocation5 + $0x1a8] sm:$0xff]
        %v284 = vld [vmem:[#allocation5 + $0x1b0] sm:$0xff]
        %v285 = vld [vmem:[#allocation5 + $0x1b8] sm:$0xff]
        %v286 = vld [vmem:[#allocation5 + $0x1c0] sm:$0xff]
        %v287 = vld [vmem:[#allocation5 + $0x1c8] sm:$0xff]
        %v288 = vld [vmem:[#allocation5 + $0x1d0] sm:$0xff]
        %v289 = vld [vmem:[#allocation5 + $0x1d8] sm:$0xff]
        %v290 = vld [vmem:[#allocation5 + $0x1e0] sm:$0xff]
        %v291 = vld [vmem:[#allocation5 + $0x1e8] sm:$0xff]
        %v292 = vld [vmem:[#allocation5 + $0x1f0] sm:$0xff]
        %v293 = vld [vmem:[#allocation5 + $0x1f8] sm:$0xff]
        %v295 = vcombine.high %v229, %v229
        %297 = vmatprep.subr.mxu0 %v261
        %298 = vmatpush1.msra.mxu0 %v260
        %299 = vmatprep.subr.mxu0 %v259
        %300 = vmatpush1.msra.mxu0 %v258
        %301 = vmatprep.subr.mxu0 %v257
        %302 = vmatpush1.msra.mxu0 %v256
        %303 = vmatprep.subr.mxu0 %v255
        %304 = vmatpush1.msra.mxu0 %v254
        %305 = vmatprep.subr.mxu0 %v253
        %306 = vmatpush1.msra.mxu0 %v252
        %307 = vmatprep.subr.mxu0 %v251
        %308 = vmatpush1.msra.mxu0 %v250
        %309 = vmatprep.subr.mxu0 %v249
        %310 = vmatpush1.msra.mxu0 %v248
        %311 = vmatprep.subr.mxu0 %v247
        %312 = vmatpush1.msra.mxu0 %v246
        %313 = vmatprep.subr.mxu0 %v245
        %314 = vmatpush1.msra.mxu0 %v244
        %315 = vmatprep.subr.mxu0 %v243
        %316 = vmatpush1.msra.mxu0 %v242
        %317 = vmatprep.subr.mxu0 %v241
        %318 = vmatpush1.msra.mxu0 %v240
        %319 = vmatprep.subr.mxu0 %v239
        %320 = vmatpush1.msra.mxu0 %v238
        %321 = vmatprep.subr.mxu0 %v237
        %322 = vmatpush1.msra.mxu0 %v236
        %323 = vmatprep.subr.mxu0 %v235
        %324 = vmatpush1.msra.mxu0 %v234
        %325 = vmatprep.subr.mxu0 %v233
        %326 = vmatpush1.msra.mxu0 %v232
        %327 = vmatprep.subr.mxu0 %v231
        %328 = vmatpush1.msra.mxu0 %v230
        %329 = vmatprep.subr.mxu0 %v293
        %330 = vmatpush2.msra.mxu0 %v292
        %331 = vmatprep.subr.mxu0 %v291
        %332 = vmatpush2.msra.mxu0 %v290
        %333 = vmatprep.subr.mxu0 %v289
        %334 = vmatpush2.msra.mxu0 %v288
        %335 = vmatprep.subr.mxu0 %v287
        %336 = vmatpush2.msra.mxu0 %v286
        %337 = vmatprep.subr.mxu0 %v285
        %338 = vmatpush2.msra.mxu0 %v284
        %339 = vmatprep.subr.mxu0 %v283
        %340 = vmatpush2.msra.mxu0 %v282
        %341 = vmatprep.subr.mxu0 %v281
        %342 = vmatpush2.msra.mxu0 %v280
        %343 = vmatprep.subr.mxu0 %v279
        %344 = vmatpush2.msra.mxu0 %v278
        %345 = vmatprep.subr.mxu0 %v277
        %346 = vmatpush2.msra.mxu0 %v276
        %347 = vmatprep.subr.mxu0 %v275
        %348 = vmatpush2.msra.mxu0 %v274
        %349 = vmatprep.subr.mxu0 %v273
        %350 = vmatpush2.msra.mxu0 %v272
        %351 = vmatprep.subr.mxu0 %v271
        %352 = vmatpush2.msra.mxu0 %v270
        %353 = vmatprep.subr.mxu0 %v269
        %354 = vmatpush2.msra.mxu0 %v268
        %355 = vmatprep.subr.mxu0 %v267
        %356 = vmatpush2.msra.mxu0 %v266
        %357 = vmatprep.subr.mxu0 %v265
        %358 = vmatpush2.msra.mxu0 %v264
        %359 = vmatprep.subr.mxu0 %v263
        %360 = vmatpush2.msra.mxu0 %v262
        %361 = vmatprep.mubr.f32.mxu0 %v295
        %362 = vmatmul.mubr.f32.gmra.mxu0 %v229
        %v363 = vpop.f32.mrf.mxu0
        %v364 = vadd.f32 0.0, %v363
        %v365 = vpop.f32.mrf.mxu0
        %v366 = vadd.f32 0.0, %v365
        %367 = vdwg.mxu0
        %v368 = vld [vmem:[%s1] sm:$0xff]
        %s369 = scalar_lea.vmem [#allocation5], 512
        %v370 = vld [vmem:[%s369] sm:$0xff]
        %v371 = vld [vmem:[%s369 + $0x8] sm:$0xff]
        %v372 = vld [vmem:[%s369 + $0x10] sm:$0xff]
        %v373 = vld [vmem:[%s369 + $0x18] sm:$0xff]
        %v374 = vld [vmem:[%s369 + $0x20] sm:$0xff]
        %v375 = vld [vmem:[%s369 + $0x28] sm:$0xff]
        %v376 = vld [vmem:[%s369 + $0x30] sm:$0xff]
        %v377 = vld [vmem:[%s369 + $0x38] sm:$0xff]
        %v378 = vld [vmem:[%s369 + $0x40] sm:$0xff]
        %v379 = vld [vmem:[%s369 + $0x48] sm:$0xff]
        %v380 = vld [vmem:[%s369 + $0x50] sm:$0xff]
        %v381 = vld [vmem:[%s369 + $0x58] sm:$0xff]
        %v382 = vld [vmem:[%s369 + $0x60] sm:$0xff]
        %v383 = vld [vmem:[%s369 + $0x68] sm:$0xff]
        %v384 = vld [vmem:[%s369 + $0x70] sm:$0xff]
        %v385 = vld [vmem:[%s369 + $0x78] sm:$0xff]
        %v386 = vld [vmem:[%s369 + $0x80] sm:$0xff]
        %v387 = vld [vmem:[%s369 + $0x88] sm:$0xff]
        %v388 = vld [vmem:[%s369 + $0x90] sm:$0xff]
        %v389 = vld [vmem:[%s369 + $0x98] sm:$0xff]
        %v390 = vld [vmem:[%s369 + $0xa0] sm:$0xff]
        %v391 = vld [vmem:[%s369 + $0xa8] sm:$0xff]
        %v392 = vld [vmem:[%s369 + $0xb0] sm:$0xff]
        %v393 = vld [vmem:[%s369 + $0xb8] sm:$0xff]
        %v394 = vld [vmem:[%s369 + $0xc0] sm:$0xff]
        %v395 = vld [vmem:[%s369 + $0xc8] sm:$0xff]
        %v396 = vld [vmem:[%s369 + $0xd0] sm:$0xff]
        %v397 = vld [vmem:[%s369 + $0xd8] sm:$0xff]
        %v398 = vld [vmem:[%s369 + $0xe0] sm:$0xff]
        %v399 = vld [vmem:[%s369 + $0xe8] sm:$0xff]
        %v400 = vld [vmem:[%s369 + $0xf0] sm:$0xff]
        %v401 = vld [vmem:[%s369 + $0xf8] sm:$0xff]
        %v402 = vld [vmem:[%s369 + $0x100] sm:$0xff]
        %v403 = vld [vmem:[%s369 + $0x108] sm:$0xff]
        %v404 = vld [vmem:[%s369 + $0x110] sm:$0xff]
        %v405 = vld [vmem:[%s369 + $0x118] sm:$0xff]
        %v406 = vld [vmem:[%s369 + $0x120] sm:$0xff]
        %v407 = vld [vmem:[%s369 + $0x128] sm:$0xff]
        %v408 = vld [vmem:[%s369 + $0x130] sm:$0xff]
        %v409 = vld [vmem:[%s369 + $0x138] sm:$0xff]
        %v410 = vld [vmem:[%s369 + $0x140] sm:$0xff]
        %v411 = vld [vmem:[%s369 + $0x148] sm:$0xff]
        %v412 = vld [vmem:[%s369 + $0x150] sm:$0xff]
        %v413 = vld [vmem:[%s369 + $0x158] sm:$0xff]
        %v414 = vld [vmem:[%s369 + $0x160] sm:$0xff]
        %v415 = vld [vmem:[%s369 + $0x168] sm:$0xff]
        %v416 = vld [vmem:[%s369 + $0x170] sm:$0xff]
        %v417 = vld [vmem:[%s369 + $0x178] sm:$0xff]
        %v418 = vld [vmem:[%s369 + $0x180] sm:$0xff]
        %v419 = vld [vmem:[%s369 + $0x188] sm:$0xff]
        %v420 = vld [vmem:[%s369 + $0x190] sm:$0xff]
        %v421 = vld [vmem:[%s369 + $0x198] sm:$0xff]
        %v422 = vld [vmem:[%s369 + $0x1a0] sm:$0xff]
        %v423 = vld [vmem:[%s369 + $0x1a8] sm:$0xff]
        %v424 = vld [vmem:[%s369 + $0x1b0] sm:$0xff]
        %v425 = vld [vmem:[%s369 + $0x1b8] sm:$0xff]
        %v426 = vld [vmem:[%s369 + $0x1c0] sm:$0xff]
        %v427 = vld [vmem:[%s369 + $0x1c8] sm:$0xff]
        %v428 = vld [vmem:[%s369 + $0x1d0] sm:$0xff]
        %v429 = vld [vmem:[%s369 + $0x1d8] sm:$0xff]
        %v430 = vld [vmem:[%s369 + $0x1e0] sm:$0xff]
        %v431 = vld [vmem:[%s369 + $0x1e8] sm:$0xff]
        %v432 = vld [vmem:[%s369 + $0x1f0] sm:$0xff]
        %v433 = vld [vmem:[%s369 + $0x1f8] sm:$0xff]
        %434 = vmatprep.subr.mxu0 %v401
        %435 = vmatpush1.msra.mxu0 %v400
        %436 = vmatprep.subr.mxu0 %v399
        %437 = vmatpush1.msra.mxu0 %v398
        %438 = vmatprep.subr.mxu0 %v397
        %439 = vmatpush1.msra.mxu0 %v396
        %440 = vmatprep.subr.mxu0 %v395
        %441 = vmatpush1.msra.mxu0 %v394
        %442 = vmatprep.subr.mxu0 %v393
        %443 = vmatpush1.msra.mxu0 %v392
        %444 = vmatprep.subr.mxu0 %v391
        %445 = vmatpush1.msra.mxu0 %v390
        %446 = vmatprep.subr.mxu0 %v389
        %447 = vmatpush1.msra.mxu0 %v388
        %448 = vmatprep.subr.mxu0 %v387
        %449 = vmatpush1.msra.mxu0 %v386
        %450 = vmatprep.subr.mxu0 %v385
        %451 = vmatpush1.msra.mxu0 %v384
        %452 = vmatprep.subr.mxu0 %v383
        %453 = vmatpush1.msra.mxu0 %v382
        %454 = vmatprep.subr.mxu0 %v381
        %455 = vmatpush1.msra.mxu0 %v380
        %456 = vmatprep.subr.mxu0 %v379
        %457 = vmatpush1.msra.mxu0 %v378
        %458 = vmatprep.subr.mxu0 %v377
        %459 = vmatpush1.msra.mxu0 %v376
        %460 = vmatprep.subr.mxu0 %v375
        %461 = vmatpush1.msra.mxu0 %v374
        %462 = vmatprep.subr.mxu0 %v373
        %463 = vmatpush1.msra.mxu0 %v372
        %464 = vmatprep.subr.mxu0 %v371
        %465 = vmatpush1.msra.mxu0 %v370
        %466 = vmatprep.subr.mxu0 %v433
        %467 = vmatpush2.msra.mxu0 %v432
        %468 = vmatprep.subr.mxu0 %v431
        %469 = vmatpush2.msra.mxu0 %v430
        %470 = vmatprep.subr.mxu0 %v429
        %471 = vmatpush2.msra.mxu0 %v428
        %472 = vmatprep.subr.mxu0 %v427
        %473 = vmatpush2.msra.mxu0 %v426
        %474 = vmatprep.subr.mxu0 %v425
        %475 = vmatpush2.msra.mxu0 %v424
        %476 = vmatprep.subr.mxu0 %v423
        %477 = vmatpush2.msra.mxu0 %v422
        %478 = vmatprep.subr.mxu0 %v421
        %479 = vmatpush2.msra.mxu0 %v420
        %480 = vmatprep.subr.mxu0 %v419
        %481 = vmatpush2.msra.mxu0 %v418
        %482 = vmatprep.subr.mxu0 %v417
        %483 = vmatpush2.msra.mxu0 %v416
        %484 = vmatprep.subr.mxu0 %v415
        %485 = vmatpush2.msra.mxu0 %v414
        %486 = vmatprep.subr.mxu0 %v413
        %487 = vmatpush2.msra.mxu0 %v412
        %488 = vmatprep.subr.mxu0 %v411
        %489 = vmatpush2.msra.mxu0 %v410
        %490 = vmatprep.subr.mxu0 %v409
        %491 = vmatpush2.msra.mxu0 %v408
        %492 = vmatprep.subr.mxu0 %v407
        %493 = vmatpush2.msra.mxu0 %v406
        %494 = vmatprep.subr.mxu0 %v405
        %495 = vmatpush2.msra.mxu0 %v404
        %496 = vmatprep.subr.mxu0 %v403
        %497 = vmatpush2.msra.mxu0 %v402
        %498 = vmatprep.mubr.f32.mxu0 %v295
        %499 = vmatmul.mubr.f32.gmra.mxu0 %v229
        %v500 = vpop.f32.mrf.mxu0
        %v501 = vadd.f32 0.0, %v500
        %v502 = vpop.f32.mrf.mxu0
        %v503 = vadd.f32 0.0, %v502
        %504 = vdwg.mxu0
        %s505 = scalar_lea.vmem %s1, 8
        %v506 = vld [vmem:[%s505] sm:$0xff]
        %vm507 = vcmask 31744
        %v509 = vsel %vm507, %v506, 0
        %vm511 = vcmask 1043456
        %v513 = vsel %vm511, %v501, 0
        %v516 = vsel %vm511, %v503, 0
        %518 = vmatprep.subr.mxu0 0.0
        %519 = vmatpush1.msra.mxu0 0.0
        %520 = vmatprep.subr.mxu0 0.0
        %521 = vmatpush1.msra.mxu0 0.0
        %522 = vmatprep.subr.mxu0 0.0
        %523 = vmatpush1.msra.mxu0 0.0
        %524 = vmatprep.subr.mxu0 0.0
        %525 = vmatpush1.msra.mxu0 0.0
        %526 = vmatprep.subr.mxu0 0.0
        %527 = vmatpush1.msra.mxu0 0.0
        %528 = vmatprep.subr.mxu0 0.0
        %529 = vmatpush1.msra.mxu0 0.0
        %530 = vmatprep.subr.mxu0 0.0
        %531 = vmatpush1.msra.mxu0 0.0
        %532 = vmatprep.subr.mxu0 0.0
        %533 = vmatpush1.msra.mxu0 0.0
        %534 = vmatprep.subr.mxu0 0.0
        %535 = vmatpush1.msra.mxu0 0.0
        %536 = vmatprep.subr.mxu0 0.0
        %537 = vmatpush1.msra.mxu0 0.0
        %538 = vmatprep.subr.mxu0 0.0
        %539 = vmatpush1.msra.mxu0 0.0
        %540 = vmatprep.subr.mxu0 0.0
        %541 = vmatpush1.msra.mxu0 0.0
        %542 = vmatprep.subr.mxu0 0.0
        %543 = vmatpush1.msra.mxu0 0.0
        %544 = vmatprep.subr.mxu0 0.0
        %545 = vmatpush1.msra.mxu0 0.0
        %546 = vmatprep.subr.mxu0 0.0
        %547 = vmatpush1.msra.mxu0 0.0
        %548 = vmatprep.subr.mxu0 %v516
        %549 = vmatpush1.msra.mxu0 %v513
        %550 = vmatprep.subr.mxu0 0.0
        %551 = vmatpush2.msra.mxu0 0.0
        %552 = vmatprep.subr.mxu0 0.0
        %553 = vmatpush2.msra.mxu0 0.0
        %554 = vmatprep.subr.mxu0 0.0
        %555 = vmatpush2.msra.mxu0 0.0
        %556 = vmatprep.subr.mxu0 0.0
        %557 = vmatpush2.msra.mxu0 0.0
        %558 = vmatprep.subr.mxu0 0.0
        %559 = vmatpush2.msra.mxu0 0.0
        %560 = vmatprep.subr.mxu0 0.0
        %561 = vmatpush2.msra.mxu0 0.0
        %562 = vmatprep.subr.mxu0 0.0
        %563 = vmatpush2.msra.mxu0 0.0
        %564 = vmatprep.subr.mxu0 0.0
        %565 = vmatpush2.msra.mxu0 0.0
        %566 = vmatprep.subr.mxu0 0.0
        %567 = vmatpush2.msra.mxu0 0.0
        %568 = vmatprep.subr.mxu0 0.0
        %569 = vmatpush2.msra.mxu0 0.0
        %570 = vmatprep.subr.mxu0 0.0
        %571 = vmatpush2.msra.mxu0 0.0
        %572 = vmatprep.subr.mxu0 0.0
        %573 = vmatpush2.msra.mxu0 0.0
        %574 = vmatprep.subr.mxu0 0.0
        %575 = vmatpush2.msra.mxu0 0.0
        %576 = vmatprep.subr.mxu0 0.0
        %577 = vmatpush2.msra.mxu0 0.0
        %578 = vmatprep.subr.mxu0 0.0
        %579 = vmatpush2.msra.mxu0 0.0
        %580 = vmatprep.subr.mxu0 0.0
        %581 = vmatpush2.msra.mxu0 0.0
        %582 = vmatprep.mubr.f32.mxu0 0.0
        %583 = vmatmul.mubr.f32.gmra.mxu0 %v509
        %v584 = vpop.f32.mrf.mxu0
        %v585 = vadd.f32 0.0, %v584
        %v586 = vpop.f32.mrf.mxu0
        %v587 = vadd.f32 0.0, %v586
        %588 = vdwg.mxu0
        %v590 = vsel %vm507, %v368, 0
        %v593 = vsel %vm511, %v364, 0
        %v596 = vsel %vm511, %v366, 0
        %598 = vmatprep.subr.mxu0 0.0
        %599 = vmatpush1.msra.mxu0 0.0
        %600 = vmatprep.subr.mxu0 0.0
        %601 = vmatpush1.msra.mxu0 0.0
        %602 = vmatprep.subr.mxu0 0.0
        %603 = vmatpush1.msra.mxu0 0.0
        %604 = vmatprep.subr.mxu0 0.0
        %605 = vmatpush1.msra.mxu0 0.0
        %606 = vmatprep.subr.mxu0 0.0
        %607 = vmatpush1.msra.mxu0 0.0
        %608 = vmatprep.subr.mxu0 0.0
        %609 = vmatpush1.msra.mxu0 0.0
        %610 = vmatprep.subr.mxu0 0.0
        %611 = vmatpush1.msra.mxu0 0.0
        %612 = vmatprep.subr.mxu0 0.0
        %613 = vmatpush1.msra.mxu0 0.0
        %614 = vmatprep.subr.mxu0 0.0
        %615 = vmatpush1.msra.mxu0 0.0
        %616 = vmatprep.subr.mxu0 0.0
        %617 = vmatpush1.msra.mxu0 0.0
        %618 = vmatprep.subr.mxu0 0.0
        %619 = vmatpush1.msra.mxu0 0.0
        %620 = vmatprep.subr.mxu0 0.0
        %621 = vmatpush1.msra.mxu0 0.0
        %622 = vmatprep.subr.mxu0 0.0
        %623 = vmatpush1.msra.mxu0 0.0
        %624 = vmatprep.subr.mxu0 0.0
        %625 = vmatpush1.msra.mxu0 0.0
        %626 = vmatprep.subr.mxu0 0.0
        %627 = vmatpush1.msra.mxu0 0.0
        %628 = vmatprep.subr.mxu0 %v596
        %629 = vmatpush1.msra.mxu0 %v593
        %630 = vmatprep.subr.mxu0 0.0
        %631 = vmatpush2.msra.mxu0 0.0
        %632 = vmatprep.subr.mxu0 0.0
        %633 = vmatpush2.msra.mxu0 0.0
        %634 = vmatprep.subr.mxu0 0.0
        %635 = vmatpush2.msra.mxu0 0.0
        %636 = vmatprep.subr.mxu0 0.0
        %637 = vmatpush2.msra.mxu0 0.0
        %638 = vmatprep.subr.mxu0 0.0
        %639 = vmatpush2.msra.mxu0 0.0
        %640 = vmatprep.subr.mxu0 0.0
        %641 = vmatpush2.msra.mxu0 0.0
        %642 = vmatprep.subr.mxu0 0.0
        %643 = vmatpush2.msra.mxu0 0.0
        %644 = vmatprep.subr.mxu0 0.0
        %645 = vmatpush2.msra.mxu0 0.0
        %646 = vmatprep.subr.mxu0 0.0
        %647 = vmatpush2.msra.mxu0 0.0
        %648 = vmatprep.subr.mxu0 0.0
        %649 = vmatpush2.msra.mxu0 0.0
        %650 = vmatprep.subr.mxu0 0.0
        %651 = vmatpush2.msra.mxu0 0.0
        %652 = vmatprep.subr.mxu0 0.0
        %653 = vmatpush2.msra.mxu0 0.0
        %654 = vmatprep.subr.mxu0 0.0
        %655 = vmatpush2.msra.mxu0 0.0
        %656 = vmatprep.subr.mxu0 0.0
        %657 = vmatpush2.msra.mxu0 0.0
        %658 = vmatprep.subr.mxu0 0.0
        %659 = vmatpush2.msra.mxu0 0.0
        %660 = vmatprep.subr.mxu0 0.0
        %661 = vmatpush2.msra.mxu0 0.0
        %662 = vmatprep.mubr.f32.mxu0 0.0
        %663 = vmatmul.mubr.f32.gmra.mxu0 %v590
        %v664 = vpop.f32.mrf.mxu0
        %v665 = vadd.f32 %v585, %v664
        %v666 = vpop.f32.mrf.mxu0
        %v667 = vadd.f32 %v587, %v666
        %668 = vdwg.mxu0
        %s669 = scalar_lea.vmem [#allocation5], 1024
        %v670 = vld [vmem:[%s669] sm:$0xff]
        %v671 = vld [vmem:[%s669 + $0x8] sm:$0xff]
        %v672 = vld [vmem:[%s669 + $0x10] sm:$0xff]
        %v673 = vld [vmem:[%s669 + $0x18] sm:$0xff]
        %v674 = vld [vmem:[%s669 + $0x20] sm:$0xff]
        %v675 = vld [vmem:[%s669 + $0x28] sm:$0xff]
        %v676 = vld [vmem:[%s669 + $0x30] sm:$0xff]
        %v677 = vld [vmem:[%s669 + $0x38] sm:$0xff]
        %v678 = vld [vmem:[%s669 + $0x40] sm:$0xff]
        %v679 = vld [vmem:[%s669 + $0x48] sm:$0xff]
        %v680 = vld [vmem:[%s669 + $0x50] sm:$0xff]
        %v681 = vld [vmem:[%s669 + $0x58] sm:$0xff]
        %v682 = vld [vmem:[%s669 + $0x60] sm:$0xff]
        %v683 = vld [vmem:[%s669 + $0x68] sm:$0xff]
        %v684 = vld [vmem:[%s669 + $0x70] sm:$0xff]
        %v685 = vld [vmem:[%s669 + $0x78] sm:$0xff]
        %v686 = vld [vmem:[%s669 + $0x80] sm:$0xff]
        %v687 = vld [vmem:[%s669 + $0x88] sm:$0xff]
        %v688 = vld [vmem:[%s669 + $0x90] sm:$0xff]
        %v689 = vld [vmem:[%s669 + $0x98] sm:$0xff]
        %v690 = vld [vmem:[%s669 + $0xa0] sm:$0xff]
        %v691 = vld [vmem:[%s669 + $0xa8] sm:$0xff]
        %v692 = vld [vmem:[%s669 + $0xb0] sm:$0xff]
        %v693 = vld [vmem:[%s669 + $0xb8] sm:$0xff]
        %v694 = vld [vmem:[%s669 + $0xc0] sm:$0xff]
        %v695 = vld [vmem:[%s669 + $0xc8] sm:$0xff]
        %v696 = vld [vmem:[%s669 + $0xd0] sm:$0xff]
        %v697 = vld [vmem:[%s669 + $0xd8] sm:$0xff]
        %v698 = vld [vmem:[%s669 + $0xe0] sm:$0xff]
        %v699 = vld [vmem:[%s669 + $0xe8] sm:$0xff]
        %v700 = vld [vmem:[%s669 + $0xf0] sm:$0xff]
        %v701 = vld [vmem:[%s669 + $0xf8] sm:$0xff]
        %v702 = vld [vmem:[%s669 + $0x100] sm:$0xff]
        %v703 = vld [vmem:[%s669 + $0x108] sm:$0xff]
        %v704 = vld [vmem:[%s669 + $0x110] sm:$0xff]
        %v705 = vld [vmem:[%s669 + $0x118] sm:$0xff]
        %v706 = vld [vmem:[%s669 + $0x120] sm:$0xff]
        %v707 = vld [vmem:[%s669 + $0x128] sm:$0xff]
        %v708 = vld [vmem:[%s669 + $0x130] sm:$0xff]
        %v709 = vld [vmem:[%s669 + $0x138] sm:$0xff]
        %v710 = vld [vmem:[%s669 + $0x140] sm:$0xff]
        %v711 = vld [vmem:[%s669 + $0x148] sm:$0xff]
        %v712 = vld [vmem:[%s669 + $0x150] sm:$0xff]
        %v713 = vld [vmem:[%s669 + $0x158] sm:$0xff]
        %v714 = vld [vmem:[%s669 + $0x160] sm:$0xff]
        %v715 = vld [vmem:[%s669 + $0x168] sm:$0xff]
        %v716 = vld [vmem:[%s669 + $0x170] sm:$0xff]
        %v717 = vld [vmem:[%s669 + $0x178] sm:$0xff]
        %v718 = vld [vmem:[%s669 + $0x180] sm:$0xff]
        %v719 = vld [vmem:[%s669 + $0x188] sm:$0xff]
        %v720 = vld [vmem:[%s669 + $0x190] sm:$0xff]
        %v721 = vld [vmem:[%s669 + $0x198] sm:$0xff]
        %v722 = vld [vmem:[%s669 + $0x1a0] sm:$0xff]
        %v723 = vld [vmem:[%s669 + $0x1a8] sm:$0xff]
        %v724 = vld [vmem:[%s669 + $0x1b0] sm:$0xff]
        %v725 = vld [vmem:[%s669 + $0x1b8] sm:$0xff]
        %v726 = vld [vmem:[%s669 + $0x1c0] sm:$0xff]
        %v727 = vld [vmem:[%s669 + $0x1c8] sm:$0xff]
        %v728 = vld [vmem:[%s669 + $0x1d0] sm:$0xff]
        %v729 = vld [vmem:[%s669 + $0x1d8] sm:$0xff]
        %v730 = vld [vmem:[%s669 + $0x1e0] sm:$0xff]
        %v731 = vld [vmem:[%s669 + $0x1e8] sm:$0xff]
        %v732 = vld [vmem:[%s669 + $0x1f0] sm:$0xff]
        %v733 = vld [vmem:[%s669 + $0x1f8] sm:$0xff]
        %734 = vmatprep.subr.mxu0 %v701
        %735 = vmatpush1.msra.mxu0 %v700
        %736 = vmatprep.subr.mxu0 %v699
        %737 = vmatpush1.msra.mxu0 %v698
        %738 = vmatprep.subr.mxu0 %v697
        %739 = vmatpush1.msra.mxu0 %v696
        %740 = vmatprep.subr.mxu0 %v695
        %741 = vmatpush1.msra.mxu0 %v694
        %742 = vmatprep.subr.mxu0 %v693
        %743 = vmatpush1.msra.mxu0 %v692
        %744 = vmatprep.subr.mxu0 %v691
        %745 = vmatpush1.msra.mxu0 %v690
        %746 = vmatprep.subr.mxu0 %v689
        %747 = vmatpush1.msra.mxu0 %v688
        %748 = vmatprep.subr.mxu0 %v687
        %749 = vmatpush1.msra.mxu0 %v686
        %750 = vmatprep.subr.mxu0 %v685
        %751 = vmatpush1.msra.mxu0 %v684
        %752 = vmatprep.subr.mxu0 %v683
        %753 = vmatpush1.msra.mxu0 %v682
        %754 = vmatprep.subr.mxu0 %v681
        %755 = vmatpush1.msra.mxu0 %v680
        %756 = vmatprep.subr.mxu0 %v679
        %757 = vmatpush1.msra.mxu0 %v678
        %758 = vmatprep.subr.mxu0 %v677
        %759 = vmatpush1.msra.mxu0 %v676
        %760 = vmatprep.subr.mxu0 %v675
        %761 = vmatpush1.msra.mxu0 %v674
        %762 = vmatprep.subr.mxu0 %v673
        %763 = vmatpush1.msra.mxu0 %v672
        %764 = vmatprep.subr.mxu0 %v671
        %765 = vmatpush1.msra.mxu0 %v670
        %766 = vmatprep.subr.mxu0 %v733
        %767 = vmatpush2.msra.mxu0 %v732
        %768 = vmatprep.subr.mxu0 %v731
        %769 = vmatpush2.msra.mxu0 %v730
        %770 = vmatprep.subr.mxu0 %v729
        %771 = vmatpush2.msra.mxu0 %v728
        %772 = vmatprep.subr.mxu0 %v727
        %773 = vmatpush2.msra.mxu0 %v726
        %774 = vmatprep.subr.mxu0 %v725
        %775 = vmatpush2.msra.mxu0 %v724
        %776 = vmatprep.subr.mxu0 %v723
        %777 = vmatpush2.msra.mxu0 %v722
        %778 = vmatprep.subr.mxu0 %v721
        %779 = vmatpush2.msra.mxu0 %v720
        %780 = vmatprep.subr.mxu0 %v719
        %781 = vmatpush2.msra.mxu0 %v718
        %782 = vmatprep.subr.mxu0 %v717
        %783 = vmatpush2.msra.mxu0 %v716
        %784 = vmatprep.subr.mxu0 %v715
        %785 = vmatpush2.msra.mxu0 %v714
        %786 = vmatprep.subr.mxu0 %v713
        %787 = vmatpush2.msra.mxu0 %v712
        %788 = vmatprep.subr.mxu0 %v711
        %789 = vmatpush2.msra.mxu0 %v710
        %790 = vmatprep.subr.mxu0 %v709
        %791 = vmatpush2.msra.mxu0 %v708
        %792 = vmatprep.subr.mxu0 %v707
        %793 = vmatpush2.msra.mxu0 %v706
        %794 = vmatprep.subr.mxu0 %v705
        %795 = vmatpush2.msra.mxu0 %v704
        %796 = vmatprep.subr.mxu0 %v703
        %797 = vmatpush2.msra.mxu0 %v702
        %798 = vmatprep.mubr.f32.mxu0 %v295
        %799 = vmatmul.mubr.f32.gmra.mxu0 %v229
        %v800 = vpop.f32.mrf.mxu0
        %v801 = vadd.f32 0.0, %v800
        %v802 = vpop.f32.mrf.mxu0
        %v803 = vadd.f32 0.0, %v802
        %804 = vdwg.mxu0
        %s805 = scalar_lea.vmem %s1, 16
        %v806 = vld [vmem:[%s805] sm:$0xff]
        %v808 = vsel %vm507, %v806, 0
        %v811 = vsel %vm511, %v801, 0
        %v814 = vsel %vm511, %v803, 0
        %816 = vmatprep.subr.mxu0 0.0
        %817 = vmatpush1.msra.mxu0 0.0
        %818 = vmatprep.subr.mxu0 0.0
        %819 = vmatpush1.msra.mxu0 0.0
        %820 = vmatprep.subr.mxu0 0.0
        %821 = vmatpush1.msra.mxu0 0.0
        %822 = vmatprep.subr.mxu0 0.0
        %823 = vmatpush1.msra.mxu0 0.0
        %824 = vmatprep.subr.mxu0 0.0
        %825 = vmatpush1.msra.mxu0 0.0
        %826 = vmatprep.subr.mxu0 0.0
        %827 = vmatpush1.msra.mxu0 0.0
        %828 = vmatprep.subr.mxu0 0.0
        %829 = vmatpush1.msra.mxu0 0.0
        %830 = vmatprep.subr.mxu0 0.0
        %831 = vmatpush1.msra.mxu0 0.0
        %832 = vmatprep.subr.mxu0 0.0
        %833 = vmatpush1.msra.mxu0 0.0
        %834 = vmatprep.subr.mxu0 0.0
        %835 = vmatpush1.msra.mxu0 0.0
        %836 = vmatprep.subr.mxu0 0.0
        %837 = vmatpush1.msra.mxu0 0.0
        %838 = vmatprep.subr.mxu0 0.0
        %839 = vmatpush1.msra.mxu0 0.0
        %840 = vmatprep.subr.mxu0 0.0
        %841 = vmatpush1.msra.mxu0 0.0
        %842 = vmatprep.subr.mxu0 0.0
        %843 = vmatpush1.msra.mxu0 0.0
        %844 = vmatprep.subr.mxu0 0.0
        %845 = vmatpush1.msra.mxu0 0.0
        %846 = vmatprep.subr.mxu0 %v814
        %847 = vmatpush1.msra.mxu0 %v811
        %848 = vmatprep.subr.mxu0 0.0
        %849 = vmatpush2.msra.mxu0 0.0
        %850 = vmatprep.subr.mxu0 0.0
        %851 = vmatpush2.msra.mxu0 0.0
        %852 = vmatprep.subr.mxu0 0.0
        %853 = vmatpush2.msra.mxu0 0.0
        %854 = vmatprep.subr.mxu0 0.0
        %855 = vmatpush2.msra.mxu0 0.0
        %856 = vmatprep.subr.mxu0 0.0
        %857 = vmatpush2.msra.mxu0 0.0
        %858 = vmatprep.subr.mxu0 0.0
        %859 = vmatpush2.msra.mxu0 0.0
        %860 = vmatprep.subr.mxu0 0.0
        %861 = vmatpush2.msra.mxu0 0.0
        %862 = vmatprep.subr.mxu0 0.0
        %863 = vmatpush2.msra.mxu0 0.0
        %864 = vmatprep.subr.mxu0 0.0
        %865 = vmatpush2.msra.mxu0 0.0
        %866 = vmatprep.subr.mxu0 0.0
        %867 = vmatpush2.msra.mxu0 0.0
        %868 = vmatprep.subr.mxu0 0.0
        %869 = vmatpush2.msra.mxu0 0.0
        %870 = vmatprep.subr.mxu0 0.0
        %871 = vmatpush2.msra.mxu0 0.0
        %872 = vmatprep.subr.mxu0 0.0
        %873 = vmatpush2.msra.mxu0 0.0
        %874 = vmatprep.subr.mxu0 0.0
        %875 = vmatpush2.msra.mxu0 0.0
        %876 = vmatprep.subr.mxu0 0.0
        %877 = vmatpush2.msra.mxu0 0.0
        %878 = vmatprep.subr.mxu0 0.0
        %879 = vmatpush2.msra.mxu0 0.0
        %880 = vmatprep.mubr.f32.mxu0 0.0
        %881 = vmatmul.mubr.f32.gmra.mxu0 %v808
        %v882 = vpop.f32.mrf.mxu0
        %v883 = vadd.f32 0.0, %v882
        %v884 = vpop.f32.mrf.mxu0
        %v885 = vadd.f32 0.0, %v884
        %886 = vdwg.mxu0
        %v887 = vadd.f32 %v665, %v883
        %v888 = vadd.f32 %v667, %v885
        %s889 = scalar_lea.vmem [#allocation5], 1536
        %v890 = vld [vmem:[%s889] sm:$0xff]
        %v891 = vld [vmem:[%s889 + $0x8] sm:$0xff]
        %v892 = vld [vmem:[%s889 + $0x10] sm:$0xff]
        %v893 = vld [vmem:[%s889 + $0x18] sm:$0xff]
        %v894 = vld [vmem:[%s889 + $0x20] sm:$0xff]
        %v895 = vld [vmem:[%s889 + $0x28] sm:$0xff]
        %v896 = vld [vmem:[%s889 + $0x30] sm:$0xff]
        %v897 = vld [vmem:[%s889 + $0x38] sm:$0xff]
        %v898 = vld [vmem:[%s889 + $0x40] sm:$0xff]
        %v899 = vld [vmem:[%s889 + $0x48] sm:$0xff]
        %v900 = vld [vmem:[%s889 + $0x50] sm:$0xff]
        %v901 = vld [vmem:[%s889 + $0x58] sm:$0xff]
        %v902 = vld [vmem:[%s889 + $0x60] sm:$0xff]
        %v903 = vld [vmem:[%s889 + $0x68] sm:$0xff]
        %v904 = vld [vmem:[%s889 + $0x70] sm:$0xff]
        %v905 = vld [vmem:[%s889 + $0x78] sm:$0xff]
        %v906 = vld [vmem:[%s889 + $0x80] sm:$0xff]
        %v907 = vld [vmem:[%s889 + $0x88] sm:$0xff]
        %v908 = vld [vmem:[%s889 + $0x90] sm:$0xff]
        %v909 = vld [vmem:[%s889 + $0x98] sm:$0xff]
        %v910 = vld [vmem:[%s889 + $0xa0] sm:$0xff]
        %v911 = vld [vmem:[%s889 + $0xa8] sm:$0xff]
        %v912 = vld [vmem:[%s889 + $0xb0] sm:$0xff]
        %v913 = vld [vmem:[%s889 + $0xb8] sm:$0xff]
        %v914 = vld [vmem:[%s889 + $0xc0] sm:$0xff]
        %v915 = vld [vmem:[%s889 + $0xc8] sm:$0xff]
        %v916 = vld [vmem:[%s889 + $0xd0] sm:$0xff]
        %v917 = vld [vmem:[%s889 + $0xd8] sm:$0xff]
        %v918 = vld [vmem:[%s889 + $0xe0] sm:$0xff]
        %v919 = vld [vmem:[%s889 + $0xe8] sm:$0xff]
        %v920 = vld [vmem:[%s889 + $0xf0] sm:$0xff]
        %v921 = vld [vmem:[%s889 + $0xf8] sm:$0xff]
        %v922 = vld [vmem:[%s889 + $0x100] sm:$0xff]
        %v923 = vld [vmem:[%s889 + $0x108] sm:$0xff]
        %v924 = vld [vmem:[%s889 + $0x110] sm:$0xff]
        %v925 = vld [vmem:[%s889 + $0x118] sm:$0xff]
        %v926 = vld [vmem:[%s889 + $0x120] sm:$0xff]
        %v927 = vld [vmem:[%s889 + $0x128] sm:$0xff]
        %v928 = vld [vmem:[%s889 + $0x130] sm:$0xff]
        %v929 = vld [vmem:[%s889 + $0x138] sm:$0xff]
        %v930 = vld [vmem:[%s889 + $0x140] sm:$0xff]
        %v931 = vld [vmem:[%s889 + $0x148] sm:$0xff]
        %v932 = vld [vmem:[%s889 + $0x150] sm:$0xff]
        %v933 = vld [vmem:[%s889 + $0x158] sm:$0xff]
        %v934 = vld [vmem:[%s889 + $0x160] sm:$0xff]
        %v935 = vld [vmem:[%s889 + $0x168] sm:$0xff]
        %v936 = vld [vmem:[%s889 + $0x170] sm:$0xff]
        %v937 = vld [vmem:[%s889 + $0x178] sm:$0xff]
        %v938 = vld [vmem:[%s889 + $0x180] sm:$0xff]
        %v939 = vld [vmem:[%s889 + $0x188] sm:$0xff]
        %v940 = vld [vmem:[%s889 + $0x190] sm:$0xff]
        %v941 = vld [vmem:[%s889 + $0x198] sm:$0xff]
        %v942 = vld [vmem:[%s889 + $0x1a0] sm:$0xff]
        %v943 = vld [vmem:[%s889 + $0x1a8] sm:$0xff]
        %v944 = vld [vmem:[%s889 + $0x1b0] sm:$0xff]
        %v945 = vld [vmem:[%s889 + $0x1b8] sm:$0xff]
        %v946 = vld [vmem:[%s889 + $0x1c0] sm:$0xff]
        %v947 = vld [vmem:[%s889 + $0x1c8] sm:$0xff]
        %v948 = vld [vmem:[%s889 + $0x1d0] sm:$0xff]
        %v949 = vld [vmem:[%s889 + $0x1d8] sm:$0xff]
        %v950 = vld [vmem:[%s889 + $0x1e0] sm:$0xff]
        %v951 = vld [vmem:[%s889 + $0x1e8] sm:$0xff]
        %v952 = vld [vmem:[%s889 + $0x1f0] sm:$0xff]
        %v953 = vld [vmem:[%s889 + $0x1f8] sm:$0xff]
        %954 = vmatprep.subr.mxu0 %v921
        %955 = vmatpush1.msra.mxu0 %v920
        %956 = vmatprep.subr.mxu0 %v919
        %957 = vmatpush1.msra.mxu0 %v918
        %958 = vmatprep.subr.mxu0 %v917
        %959 = vmatpush1.msra.mxu0 %v916
        %960 = vmatprep.subr.mxu0 %v915
        %961 = vmatpush1.msra.mxu0 %v914
        %962 = vmatprep.subr.mxu0 %v913
        %963 = vmatpush1.msra.mxu0 %v912
        %964 = vmatprep.subr.mxu0 %v911
        %965 = vmatpush1.msra.mxu0 %v910
        %966 = vmatprep.subr.mxu0 %v909
        %967 = vmatpush1.msra.mxu0 %v908
        %968 = vmatprep.subr.mxu0 %v907
        %969 = vmatpush1.msra.mxu0 %v906
        %970 = vmatprep.subr.mxu0 %v905
        %971 = vmatpush1.msra.mxu0 %v904
        %972 = vmatprep.subr.mxu0 %v903
        %973 = vmatpush1.msra.mxu0 %v902
        %974 = vmatprep.subr.mxu0 %v901
        %975 = vmatpush1.msra.mxu0 %v900
        %976 = vmatprep.subr.mxu0 %v899
        %977 = vmatpush1.msra.mxu0 %v898
        %978 = vmatprep.subr.mxu0 %v897
        %979 = vmatpush1.msra.mxu0 %v896
        %980 = vmatprep.subr.mxu0 %v895
        %981 = vmatpush1.msra.mxu0 %v894
        %982 = vmatprep.subr.mxu0 %v893
        %983 = vmatpush1.msra.mxu0 %v892
        %984 = vmatprep.subr.mxu0 %v891
        %985 = vmatpush1.msra.mxu0 %v890
        %986 = vmatprep.subr.mxu0 %v953
        %987 = vmatpush2.msra.mxu0 %v952
        %988 = vmatprep.subr.mxu0 %v951
        %989 = vmatpush2.msra.mxu0 %v950
        %990 = vmatprep.subr.mxu0 %v949
        %991 = vmatpush2.msra.mxu0 %v948
        %992 = vmatprep.subr.mxu0 %v947
        %993 = vmatpush2.msra.mxu0 %v946
        %994 = vmatprep.subr.mxu0 %v945
        %995 = vmatpush2.msra.mxu0 %v944
        %996 = vmatprep.subr.mxu0 %v943
        %997 = vmatpush2.msra.mxu0 %v942
        %998 = vmatprep.subr.mxu0 %v941
        %999 = vmatpush2.msra.mxu0 %v940
        %1000 = vmatprep.subr.mxu0 %v939
        %1001 = vmatpush2.msra.mxu0 %v938
        %1002 = vmatprep.subr.mxu0 %v937
        %1003 = vmatpush2.msra.mxu0 %v936
        %1004 = vmatprep.subr.mxu0 %v935
        %1005 = vmatpush2.msra.mxu0 %v934
        %1006 = vmatprep.subr.mxu0 %v933
        %1007 = vmatpush2.msra.mxu0 %v932
        %1008 = vmatprep.subr.mxu0 %v931
        %1009 = vmatpush2.msra.mxu0 %v930
        %1010 = vmatprep.subr.mxu0 %v929
        %1011 = vmatpush2.msra.mxu0 %v928
        %1012 = vmatprep.subr.mxu0 %v927
        %1013 = vmatpush2.msra.mxu0 %v926
        %1014 = vmatprep.subr.mxu0 %v925
        %1015 = vmatpush2.msra.mxu0 %v924
        %1016 = vmatprep.subr.mxu0 %v923
        %1017 = vmatpush2.msra.mxu0 %v922
        %1018 = vmatprep.mubr.f32.mxu0 %v295
        %1019 = vmatmul.mubr.f32.gmra.mxu0 %v229
        %v1020 = vpop.f32.mrf.mxu0
        %v1021 = vadd.f32 0.0, %v1020
        %v1022 = vpop.f32.mrf.mxu0
        %v1023 = vadd.f32 0.0, %v1022
        %1024 = vdwg.mxu0
        %s1025 = scalar_lea.vmem %s1, 24
        %v1026 = vld [vmem:[%s1025] sm:$0xff]
        %v1028 = vsel %vm507, %v1026, 0
        %v1031 = vsel %vm511, %v1021, 0
        %v1034 = vsel %vm511, %v1023, 0
        %1036 = vmatprep.subr.mxu0 0.0
        %1037 = vmatpush1.msra.mxu0 0.0
        %1038 = vmatprep.subr.mxu0 0.0
        %1039 = vmatpush1.msra.mxu0 0.0
        %1040 = vmatprep.subr.mxu0 0.0
        %1041 = vmatpush1.msra.mxu0 0.0
        %1042 = vmatprep.subr.mxu0 0.0
        %1043 = vmatpush1.msra.mxu0 0.0
        %1044 = vmatprep.subr.mxu0 0.0
        %1045 = vmatpush1.msra.mxu0 0.0
        %1046 = vmatprep.subr.mxu0 0.0
        %1047 = vmatpush1.msra.mxu0 0.0
        %1048 = vmatprep.subr.mxu0 0.0
        %1049 = vmatpush1.msra.mxu0 0.0
        %1050 = vmatprep.subr.mxu0 0.0
        %1051 = vmatpush1.msra.mxu0 0.0
        %1052 = vmatprep.subr.mxu0 0.0
        %1053 = vmatpush1.msra.mxu0 0.0
        %1054 = vmatprep.subr.mxu0 0.0
        %1055 = vmatpush1.msra.mxu0 0.0
        %1056 = vmatprep.subr.mxu0 0.0
        %1057 = vmatpush1.msra.mxu0 0.0
        %1058 = vmatprep.subr.mxu0 0.0
        %1059 = vmatpush1.msra.mxu0 0.0
        %1060 = vmatprep.subr.mxu0 0.0
        %1061 = vmatpush1.msra.mxu0 0.0
        %1062 = vmatprep.subr.mxu0 0.0
        %1063 = vmatpush1.msra.mxu0 0.0
        %1064 = vmatprep.subr.mxu0 0.0
        %1065 = vmatpush1.msra.mxu0 0.0
        %1066 = vmatprep.subr.mxu0 %v1034
        %1067 = vmatpush1.msra.mxu0 %v1031
        %1068 = vmatprep.subr.mxu0 0.0
        %1069 = vmatpush2.msra.mxu0 0.0
        %1070 = vmatprep.subr.mxu0 0.0
        %1071 = vmatpush2.msra.mxu0 0.0
        %1072 = vmatprep.subr.mxu0 0.0
        %1073 = vmatpush2.msra.mxu0 0.0
        %1074 = vmatprep.subr.mxu0 0.0
        %1075 = vmatpush2.msra.mxu0 0.0
        %1076 = vmatprep.subr.mxu0 0.0
        %1077 = vmatpush2.msra.mxu0 0.0
        %1078 = vmatprep.subr.mxu0 0.0
        %1079 = vmatpush2.msra.mxu0 0.0
        %1080 = vmatprep.subr.mxu0 0.0
        %1081 = vmatpush2.msra.mxu0 0.0
        %1082 = vmatprep.subr.mxu0 0.0
        %1083 = vmatpush2.msra.mxu0 0.0
        %1084 = vmatprep.subr.mxu0 0.0
        %1085 = vmatpush2.msra.mxu0 0.0
        %1086 = vmatprep.subr.mxu0 0.0
        %1087 = vmatpush2.msra.mxu0 0.0
        %1088 = vmatprep.subr.mxu0 0.0
        %1089 = vmatpush2.msra.mxu0 0.0
        %1090 = vmatprep.subr.mxu0 0.0
        %1091 = vmatpush2.msra.mxu0 0.0
        %1092 = vmatprep.subr.mxu0 0.0
        %1093 = vmatpush2.msra.mxu0 0.0
        %1094 = vmatprep.subr.mxu0 0.0
        %1095 = vmatpush2.msra.mxu0 0.0
        %1096 = vmatprep.subr.mxu0 0.0
        %1097 = vmatpush2.msra.mxu0 0.0
        %1098 = vmatprep.subr.mxu0 0.0
        %1099 = vmatpush2.msra.mxu0 0.0
        %1100 = vmatprep.mubr.f32.mxu0 0.0
        %1101 = vmatmul.mubr.f32.gmra.mxu0 %v1028
        %v1102 = vpop.f32.mrf.mxu0
        %v1103 = vadd.f32 0.0, %v1102
        %v1104 = vpop.f32.mrf.mxu0
        %v1105 = vadd.f32 0.0, %v1104
        %1106 = vdwg.mxu0
        %v1107 = vadd.f32 %v887, %v1103
        %v1108 = vadd.f32 %v888, %v1105
        %s1109 = scalar_lea.vmem [#allocation5], 2048
        %v1110 = vld [vmem:[%s1109] sm:$0xff]
        %v1111 = vld [vmem:[%s1109 + $0x8] sm:$0xff]
        %v1112 = vld [vmem:[%s1109 + $0x10] sm:$0xff]
        %v1113 = vld [vmem:[%s1109 + $0x18] sm:$0xff]
        %v1114 = vld [vmem:[%s1109 + $0x20] sm:$0xff]
        %v1115 = vld [vmem:[%s1109 + $0x28] sm:$0xff]
        %v1116 = vld [vmem:[%s1109 + $0x30] sm:$0xff]
        %v1117 = vld [vmem:[%s1109 + $0x38] sm:$0xff]
        %v1118 = vld [vmem:[%s1109 + $0x40] sm:$0xff]
        %v1119 = vld [vmem:[%s1109 + $0x48] sm:$0xff]
        %v1120 = vld [vmem:[%s1109 + $0x50] sm:$0xff]
        %v1121 = vld [vmem:[%s1109 + $0x58] sm:$0xff]
        %v1122 = vld [vmem:[%s1109 + $0x60] sm:$0xff]
        %v1123 = vld [vmem:[%s1109 + $0x68] sm:$0xff]
        %v1124 = vld [vmem:[%s1109 + $0x70] sm:$0xff]
        %v1125 = vld [vmem:[%s1109 + $0x78] sm:$0xff]
        %v1126 = vld [vmem:[%s1109 + $0x80] sm:$0xff]
        %v1127 = vld [vmem:[%s1109 + $0x88] sm:$0xff]
        %v1128 = vld [vmem:[%s1109 + $0x90] sm:$0xff]
        %v1129 = vld [vmem:[%s1109 + $0x98] sm:$0xff]
        %v1130 = vld [vmem:[%s1109 + $0xa0] sm:$0xff]
        %v1131 = vld [vmem:[%s1109 + $0xa8] sm:$0xff]
        %v1132 = vld [vmem:[%s1109 + $0xb0] sm:$0xff]
        %v1133 = vld [vmem:[%s1109 + $0xb8] sm:$0xff]
        %v1134 = vld [vmem:[%s1109 + $0xc0] sm:$0xff]
        %v1135 = vld [vmem:[%s1109 + $0xc8] sm:$0xff]
        %v1136 = vld [vmem:[%s1109 + $0xd0] sm:$0xff]
        %v1137 = vld [vmem:[%s1109 + $0xd8] sm:$0xff]
        %v1138 = vld [vmem:[%s1109 + $0xe0] sm:$0xff]
        %v1139 = vld [vmem:[%s1109 + $0xe8] sm:$0xff]
        %v1140 = vld [vmem:[%s1109 + $0xf0] sm:$0xff]
        %v1141 = vld [vmem:[%s1109 + $0xf8] sm:$0xff]
        %v1142 = vld [vmem:[%s1109 + $0x100] sm:$0xff]
        %v1143 = vld [vmem:[%s1109 + $0x108] sm:$0xff]
        %v1144 = vld [vmem:[%s1109 + $0x110] sm:$0xff]
        %v1145 = vld [vmem:[%s1109 + $0x118] sm:$0xff]
        %v1146 = vld [vmem:[%s1109 + $0x120] sm:$0xff]
        %v1147 = vld [vmem:[%s1109 + $0x128] sm:$0xff]
        %v1148 = vld [vmem:[%s1109 + $0x130] sm:$0xff]
        %v1149 = vld [vmem:[%s1109 + $0x138] sm:$0xff]
        %v1150 = vld [vmem:[%s1109 + $0x140] sm:$0xff]
        %v1151 = vld [vmem:[%s1109 + $0x148] sm:$0xff]
        %v1152 = vld [vmem:[%s1109 + $0x150] sm:$0xff]
        %v1153 = vld [vmem:[%s1109 + $0x158] sm:$0xff]
        %v1154 = vld [vmem:[%s1109 + $0x160] sm:$0xff]
        %v1155 = vld [vmem:[%s1109 + $0x168] sm:$0xff]
        %v1156 = vld [vmem:[%s1109 + $0x170] sm:$0xff]
        %v1157 = vld [vmem:[%s1109 + $0x178] sm:$0xff]
        %v1158 = vld [vmem:[%s1109 + $0x180] sm:$0xff]
        %v1159 = vld [vmem:[%s1109 + $0x188] sm:$0xff]
        %v1160 = vld [vmem:[%s1109 + $0x190] sm:$0xff]
        %v1161 = vld [vmem:[%s1109 + $0x198] sm:$0xff]
        %v1162 = vld [vmem:[%s1109 + $0x1a0] sm:$0xff]
        %v1163 = vld [vmem:[%s1109 + $0x1a8] sm:$0xff]
        %v1164 = vld [vmem:[%s1109 + $0x1b0] sm:$0xff]
        %v1165 = vld [vmem:[%s1109 + $0x1b8] sm:$0xff]
        %v1166 = vld [vmem:[%s1109 + $0x1c0] sm:$0xff]
        %v1167 = vld [vmem:[%s1109 + $0x1c8] sm:$0xff]
        %v1168 = vld [vmem:[%s1109 + $0x1d0] sm:$0xff]
        %v1169 = vld [vmem:[%s1109 + $0x1d8] sm:$0xff]
        %v1170 = vld [vmem:[%s1109 + $0x1e0] sm:$0xff]
        %v1171 = vld [vmem:[%s1109 + $0x1e8] sm:$0xff]
        %v1172 = vld [vmem:[%s1109 + $0x1f0] sm:$0xff]
        %v1173 = vld [vmem:[%s1109 + $0x1f8] sm:$0xff]
        %1174 = vmatprep.subr.mxu0 %v1141
        %1175 = vmatpush1.msra.mxu0 %v1140
        %1176 = vmatprep.subr.mxu0 %v1139
        %1177 = vmatpush1.msra.mxu0 %v1138
        %1178 = vmatprep.subr.mxu0 %v1137
        %1179 = vmatpush1.msra.mxu0 %v1136
        %1180 = vmatprep.subr.mxu0 %v1135
        %1181 = vmatpush1.msra.mxu0 %v1134
        %1182 = vmatprep.subr.mxu0 %v1133
        %1183 = vmatpush1.msra.mxu0 %v1132
        %1184 = vmatprep.subr.mxu0 %v1131
        %1185 = vmatpush1.msra.mxu0 %v1130
        %1186 = vmatprep.subr.mxu0 %v1129
        %1187 = vmatpush1.msra.mxu0 %v1128
        %1188 = vmatprep.subr.mxu0 %v1127
        %1189 = vmatpush1.msra.mxu0 %v1126
        %1190 = vmatprep.subr.mxu0 %v1125
        %1191 = vmatpush1.msra.mxu0 %v1124
        %1192 = vmatprep.subr.mxu0 %v1123
        %1193 = vmatpush1.msra.mxu0 %v1122
        %1194 = vmatprep.subr.mxu0 %v1121
        %1195 = vmatpush1.msra.mxu0 %v1120
        %1196 = vmatprep.subr.mxu0 %v1119
        %1197 = vmatpush1.msra.mxu0 %v1118
        %1198 = vmatprep.subr.mxu0 %v1117
        %1199 = vmatpush1.msra.mxu0 %v1116
        %1200 = vmatprep.subr.mxu0 %v1115
        %1201 = vmatpush1.msra.mxu0 %v1114
        %1202 = vmatprep.subr.mxu0 %v1113
        %1203 = vmatpush1.msra.mxu0 %v1112
        %1204 = vmatprep.subr.mxu0 %v1111
        %1205 = vmatpush1.msra.mxu0 %v1110
        %1206 = vmatprep.subr.mxu0 %v1173
        %1207 = vmatpush2.msra.mxu0 %v1172
        %1208 = vmatprep.subr.mxu0 %v1171
        %1209 = vmatpush2.msra.mxu0 %v1170
        %1210 = vmatprep.subr.mxu0 %v1169
        %1211 = vmatpush2.msra.mxu0 %v1168
        %1212 = vmatprep.subr.mxu0 %v1167
        %1213 = vmatpush2.msra.mxu0 %v1166
        %1214 = vmatprep.subr.mxu0 %v1165
        %1215 = vmatpush2.msra.mxu0 %v1164
        %1216 = vmatprep.subr.mxu0 %v1163
        %1217 = vmatpush2.msra.mxu0 %v1162
        %1218 = vmatprep.subr.mxu0 %v1161
        %1219 = vmatpush2.msra.mxu0 %v1160
        %1220 = vmatprep.subr.mxu0 %v1159
        %1221 = vmatpush2.msra.mxu0 %v1158
        %1222 = vmatprep.subr.mxu0 %v1157
        %1223 = vmatpush2.msra.mxu0 %v1156
        %1224 = vmatprep.subr.mxu0 %v1155
        %1225 = vmatpush2.msra.mxu0 %v1154
        %1226 = vmatprep.subr.mxu0 %v1153
        %1227 = vmatpush2.msra.mxu0 %v1152
        %1228 = vmatprep.subr.mxu0 %v1151
        %1229 = vmatpush2.msra.mxu0 %v1150
        %1230 = vmatprep.subr.mxu0 %v1149
        %1231 = vmatpush2.msra.mxu0 %v1148
        %1232 = vmatprep.subr.mxu0 %v1147
        %1233 = vmatpush2.msra.mxu0 %v1146
        %1234 = vmatprep.subr.mxu0 %v1145
        %1235 = vmatpush2.msra.mxu0 %v1144
        %1236 = vmatprep.subr.mxu0 %v1143
        %1237 = vmatpush2.msra.mxu0 %v1142
        %1238 = vmatprep.mubr.f32.mxu0 %v295
        %1239 = vmatmul.mubr.f32.gmra.mxu0 %v229
        %v1240 = vpop.f32.mrf.mxu0
        %v1241 = vadd.f32 0.0, %v1240
        %v1242 = vpop.f32.mrf.mxu0
        %v1243 = vadd.f32 0.0, %v1242
        %1244 = vdwg.mxu0
        %s1245 = scalar_lea.vmem %s1, 32
        %v1246 = vld [vmem:[%s1245] sm:$0xff]
        %v1248 = vsel %vm507, %v1246, 0
        %v1251 = vsel %vm511, %v1241, 0
        %v1254 = vsel %vm511, %v1243, 0
        %1256 = vmatprep.subr.mxu0 0.0
        %1257 = vmatpush1.msra.mxu0 0.0
        %1258 = vmatprep.subr.mxu0 0.0
        %1259 = vmatpush1.msra.mxu0 0.0
        %1260 = vmatprep.subr.mxu0 0.0
        %1261 = vmatpush1.msra.mxu0 0.0
        %1262 = vmatprep.subr.mxu0 0.0
        %1263 = vmatpush1.msra.mxu0 0.0
        %1264 = vmatprep.subr.mxu0 0.0
        %1265 = vmatpush1.msra.mxu0 0.0
        %1266 = vmatprep.subr.mxu0 0.0
        %1267 = vmatpush1.msra.mxu0 0.0
        %1268 = vmatprep.subr.mxu0 0.0
        %1269 = vmatpush1.msra.mxu0 0.0
        %1270 = vmatprep.subr.mxu0 0.0
        %1271 = vmatpush1.msra.mxu0 0.0
        %1272 = vmatprep.subr.mxu0 0.0
        %1273 = vmatpush1.msra.mxu0 0.0
        %1274 = vmatprep.subr.mxu0 0.0
        %1275 = vmatpush1.msra.mxu0 0.0
        %1276 = vmatprep.subr.mxu0 0.0
        %1277 = vmatpush1.msra.mxu0 0.0
        %1278 = vmatprep.subr.mxu0 0.0
        %1279 = vmatpush1.msra.mxu0 0.0
        %1280 = vmatprep.subr.mxu0 0.0
        %1281 = vmatpush1.msra.mxu0 0.0
        %1282 = vmatprep.subr.mxu0 0.0
        %1283 = vmatpush1.msra.mxu0 0.0
        %1284 = vmatprep.subr.mxu0 0.0
        %1285 = vmatpush1.msra.mxu0 0.0
        %1286 = vmatprep.subr.mxu0 %v1254
        %1287 = vmatpush1.msra.mxu0 %v1251
        %1288 = vmatprep.subr.mxu0 0.0
        %1289 = vmatpush2.msra.mxu0 0.0
        %1290 = vmatprep.subr.mxu0 0.0
        %1291 = vmatpush2.msra.mxu0 0.0
        %1292 = vmatprep.subr.mxu0 0.0
        %1293 = vmatpush2.msra.mxu0 0.0
        %1294 = vmatprep.subr.mxu0 0.0
        %1295 = vmatpush2.msra.mxu0 0.0
        %1296 = vmatprep.subr.mxu0 0.0
        %1297 = vmatpush2.msra.mxu0 0.0
        %1298 = vmatprep.subr.mxu0 0.0
        %1299 = vmatpush2.msra.mxu0 0.0
        %1300 = vmatprep.subr.mxu0 0.0
        %1301 = vmatpush2.msra.mxu0 0.0
        %1302 = vmatprep.subr.mxu0 0.0
        %1303 = vmatpush2.msra.mxu0 0.0
        %1304 = vmatprep.subr.mxu0 0.0
        %1305 = vmatpush2.msra.mxu0 0.0
        %1306 = vmatprep.subr.mxu0 0.0
        %1307 = vmatpush2.msra.mxu0 0.0
        %1308 = vmatprep.subr.mxu0 0.0
        %1309 = vmatpush2.msra.mxu0 0.0
        %1310 = vmatprep.subr.mxu0 0.0
        %1311 = vmatpush2.msra.mxu0 0.0
        %1312 = vmatprep.subr.mxu0 0.0
        %1313 = vmatpush2.msra.mxu0 0.0
        %1314 = vmatprep.subr.mxu0 0.0
        %1315 = vmatpush2.msra.mxu0 0.0
        %1316 = vmatprep.subr.mxu0 0.0
        %1317 = vmatpush2.msra.mxu0 0.0
        %1318 = vmatprep.subr.mxu0 0.0
        %1319 = vmatpush2.msra.mxu0 0.0
        %1320 = vmatprep.mubr.f32.mxu0 0.0
        %1321 = vmatmul.mubr.f32.gmra.mxu0 %v1248
        %v1322 = vpop.f32.mrf.mxu0
        %v1323 = vadd.f32 0.0, %v1322
        %v1324 = vpop.f32.mrf.mxu0
        %v1325 = vadd.f32 0.0, %v1324
        %1326 = vdwg.mxu0
        %v1327 = vadd.f32 %v1107, %v1323
        %v1328 = vadd.f32 %v1108, %v1325
        %s1329 = scalar_lea.vmem [#allocation5], 2560
        %v1330 = vld [vmem:[%s1329] sm:$0xff]
        %v1331 = vld [vmem:[%s1329 + $0x8] sm:$0xff]
        %v1332 = vld [vmem:[%s1329 + $0x10] sm:$0xff]
        %v1333 = vld [vmem:[%s1329 + $0x18] sm:$0xff]
        %v1334 = vld [vmem:[%s1329 + $0x20] sm:$0xff]
        %v1335 = vld [vmem:[%s1329 + $0x28] sm:$0xff]
        %v1336 = vld [vmem:[%s1329 + $0x30] sm:$0xff]
        %v1337 = vld [vmem:[%s1329 + $0x38] sm:$0xff]
        %v1338 = vld [vmem:[%s1329 + $0x40] sm:$0xff]
        %v1339 = vld [vmem:[%s1329 + $0x48] sm:$0xff]
        %v1340 = vld [vmem:[%s1329 + $0x50] sm:$0xff]
        %v1341 = vld [vmem:[%s1329 + $0x58] sm:$0xff]
        %v1342 = vld [vmem:[%s1329 + $0x60] sm:$0xff]
        %v1343 = vld [vmem:[%s1329 + $0x68] sm:$0xff]
        %v1344 = vld [vmem:[%s1329 + $0x70] sm:$0xff]
        %v1345 = vld [vmem:[%s1329 + $0x78] sm:$0xff]
        %v1346 = vld [vmem:[%s1329 + $0x80] sm:$0xff]
        %v1347 = vld [vmem:[%s1329 + $0x88] sm:$0xff]
        %v1348 = vld [vmem:[%s1329 + $0x90] sm:$0xff]
        %v1349 = vld [vmem:[%s1329 + $0x98] sm:$0xff]
        %v1350 = vld [vmem:[%s1329 + $0xa0] sm:$0xff]
        %v1351 = vld [vmem:[%s1329 + $0xa8] sm:$0xff]
        %v1352 = vld [vmem:[%s1329 + $0xb0] sm:$0xff]
        %v1353 = vld [vmem:[%s1329 + $0xb8] sm:$0xff]
        %v1354 = vld [vmem:[%s1329 + $0xc0] sm:$0xff]
        %v1355 = vld [vmem:[%s1329 + $0xc8] sm:$0xff]
        %v1356 = vld [vmem:[%s1329 + $0xd0] sm:$0xff]
        %v1357 = vld [vmem:[%s1329 + $0xd8] sm:$0xff]
        %v1358 = vld [vmem:[%s1329 + $0xe0] sm:$0xff]
        %v1359 = vld [vmem:[%s1329 + $0xe8] sm:$0xff]
        %v1360 = vld [vmem:[%s1329 + $0xf0] sm:$0xff]
        %v1361 = vld [vmem:[%s1329 + $0xf8] sm:$0xff]
        %v1362 = vld [vmem:[%s1329 + $0x100] sm:$0xff]
        %v1363 = vld [vmem:[%s1329 + $0x108] sm:$0xff]
        %v1364 = vld [vmem:[%s1329 + $0x110] sm:$0xff]
        %v1365 = vld [vmem:[%s1329 + $0x118] sm:$0xff]
        %v1366 = vld [vmem:[%s1329 + $0x120] sm:$0xff]
        %v1367 = vld [vmem:[%s1329 + $0x128] sm:$0xff]
        %v1368 = vld [vmem:[%s1329 + $0x130] sm:$0xff]
        %v1369 = vld [vmem:[%s1329 + $0x138] sm:$0xff]
        %v1370 = vld [vmem:[%s1329 + $0x140] sm:$0xff]
        %v1371 = vld [vmem:[%s1329 + $0x148] sm:$0xff]
        %v1372 = vld [vmem:[%s1329 + $0x150] sm:$0xff]
        %v1373 = vld [vmem:[%s1329 + $0x158] sm:$0xff]
        %v1374 = vld [vmem:[%s1329 + $0x160] sm:$0xff]
        %v1375 = vld [vmem:[%s1329 + $0x168] sm:$0xff]
        %v1376 = vld [vmem:[%s1329 + $0x170] sm:$0xff]
        %v1377 = vld [vmem:[%s1329 + $0x178] sm:$0xff]
        %v1378 = vld [vmem:[%s1329 + $0x180] sm:$0xff]
        %v1379 = vld [vmem:[%s1329 + $0x188] sm:$0xff]
        %v1380 = vld [vmem:[%s1329 + $0x190] sm:$0xff]
        %v1381 = vld [vmem:[%s1329 + $0x198] sm:$0xff]
        %v1382 = vld [vmem:[%s1329 + $0x1a0] sm:$0xff]
        %v1383 = vld [vmem:[%s1329 + $0x1a8] sm:$0xff]
        %v1384 = vld [vmem:[%s1329 + $0x1b0] sm:$0xff]
        %v1385 = vld [vmem:[%s1329 + $0x1b8] sm:$0xff]
        %v1386 = vld [vmem:[%s1329 + $0x1c0] sm:$0xff]
        %v1387 = vld [vmem:[%s1329 + $0x1c8] sm:$0xff]
        %v1388 = vld [vmem:[%s1329 + $0x1d0] sm:$0xff]
        %v1389 = vld [vmem:[%s1329 + $0x1d8] sm:$0xff]
        %v1390 = vld [vmem:[%s1329 + $0x1e0] sm:$0xff]
        %v1391 = vld [vmem:[%s1329 + $0x1e8] sm:$0xff]
        %v1392 = vld [vmem:[%s1329 + $0x1f0] sm:$0xff]
        %v1393 = vld [vmem:[%s1329 + $0x1f8] sm:$0xff]
        %1394 = vmatprep.subr.mxu0 %v1361
        %1395 = vmatpush1.msra.mxu0 %v1360
        %1396 = vmatprep.subr.mxu0 %v1359
        %1397 = vmatpush1.msra.mxu0 %v1358
        %1398 = vmatprep.subr.mxu0 %v1357
        %1399 = vmatpush1.msra.mxu0 %v1356
        %1400 = vmatprep.subr.mxu0 %v1355
        %1401 = vmatpush1.msra.mxu0 %v1354
        %1402 = vmatprep.subr.mxu0 %v1353
        %1403 = vmatpush1.msra.mxu0 %v1352
        %1404 = vmatprep.subr.mxu0 %v1351
        %1405 = vmatpush1.msra.mxu0 %v1350
        %1406 = vmatprep.subr.mxu0 %v1349
        %1407 = vmatpush1.msra.mxu0 %v1348
        %1408 = vmatprep.subr.mxu0 %v1347
        %1409 = vmatpush1.msra.mxu0 %v1346
        %1410 = vmatprep.subr.mxu0 %v1345
        %1411 = vmatpush1.msra.mxu0 %v1344
        %1412 = vmatprep.subr.mxu0 %v1343
        %1413 = vmatpush1.msra.mxu0 %v1342
        %1414 = vmatprep.subr.mxu0 %v1341
        %1415 = vmatpush1.msra.mxu0 %v1340
        %1416 = vmatprep.subr.mxu0 %v1339
        %1417 = vmatpush1.msra.mxu0 %v1338
        %1418 = vmatprep.subr.mxu0 %v1337
        %1419 = vmatpush1.msra.mxu0 %v1336
        %1420 = vmatprep.subr.mxu0 %v1335
        %1421 = vmatpush1.msra.mxu0 %v1334
        %1422 = vmatprep.subr.mxu0 %v1333
        %1423 = vmatpush1.msra.mxu0 %v1332
        %1424 = vmatprep.subr.mxu0 %v1331
        %1425 = vmatpush1.msra.mxu0 %v1330
        %1426 = vmatprep.subr.mxu0 %v1393
        %1427 = vmatpush2.msra.mxu0 %v1392
        %1428 = vmatprep.subr.mxu0 %v1391
        %1429 = vmatpush2.msra.mxu0 %v1390
        %1430 = vmatprep.subr.mxu0 %v1389
        %1431 = vmatpush2.msra.mxu0 %v1388
        %1432 = vmatprep.subr.mxu0 %v1387
        %1433 = vmatpush2.msra.mxu0 %v1386
        %1434 = vmatprep.subr.mxu0 %v1385
        %1435 = vmatpush2.msra.mxu0 %v1384
        %1436 = vmatprep.subr.mxu0 %v1383
        %1437 = vmatpush2.msra.mxu0 %v1382
        %1438 = vmatprep.subr.mxu0 %v1381
        %1439 = vmatpush2.msra.mxu0 %v1380
        %1440 = vmatprep.subr.mxu0 %v1379
        %1441 = vmatpush2.msra.mxu0 %v1378
        %1442 = vmatprep.subr.mxu0 %v1377
        %1443 = vmatpush2.msra.mxu0 %v1376
        %1444 = vmatprep.subr.mxu0 %v1375
        %1445 = vmatpush2.msra.mxu0 %v1374
        %1446 = vmatprep.subr.mxu0 %v1373
        %1447 = vmatpush2.msra.mxu0 %v1372
        %1448 = vmatprep.subr.mxu0 %v1371
        %1449 = vmatpush2.msra.mxu0 %v1370
        %1450 = vmatprep.subr.mxu0 %v1369
        %1451 = vmatpush2.msra.mxu0 %v1368
        %1452 = vmatprep.subr.mxu0 %v1367
        %1453 = vmatpush2.msra.mxu0 %v1366
        %1454 = vmatprep.subr.mxu0 %v1365
        %1455 = vmatpush2.msra.mxu0 %v1364
        %1456 = vmatprep.subr.mxu0 %v1363
        %1457 = vmatpush2.msra.mxu0 %v1362
        %1458 = vmatprep.mubr.f32.mxu0 %v295
        %1459 = vmatmul.mubr.f32.gmra.mxu0 %v229
        %v1460 = vpop.f32.mrf.mxu0
        %v1461 = vadd.f32 0.0, %v1460
        %v1462 = vpop.f32.mrf.mxu0
        %v1463 = vadd.f32 0.0, %v1462
        %1464 = vdwg.mxu0
        %s1465 = scalar_lea.vmem %s1, 40
        %v1466 = vld [vmem:[%s1465] sm:$0xff]
        %v1468 = vsel %vm507, %v1466, 0
        %v1471 = vsel %vm511, %v1461, 0
        %v1474 = vsel %vm511, %v1463, 0
        %1476 = vmatprep.subr.mxu0 0.0
        %1477 = vmatpush1.msra.mxu0 0.0
        %1478 = vmatprep.subr.mxu0 0.0
        %1479 = vmatpush1.msra.mxu0 0.0
        %1480 = vmatprep.subr.mxu0 0.0
        %1481 = vmatpush1.msra.mxu0 0.0
        %1482 = vmatprep.subr.mxu0 0.0
        %1483 = vmatpush1.msra.mxu0 0.0
        %1484 = vmatprep.subr.mxu0 0.0
        %1485 = vmatpush1.msra.mxu0 0.0
        %1486 = vmatprep.subr.mxu0 0.0
        %1487 = vmatpush1.msra.mxu0 0.0
        %1488 = vmatprep.subr.mxu0 0.0
        %1489 = vmatpush1.msra.mxu0 0.0
        %1490 = vmatprep.subr.mxu0 0.0
        %1491 = vmatpush1.msra.mxu0 0.0
        %1492 = vmatprep.subr.mxu0 0.0
        %1493 = vmatpush1.msra.mxu0 0.0
        %1494 = vmatprep.subr.mxu0 0.0
        %1495 = vmatpush1.msra.mxu0 0.0
        %1496 = vmatprep.subr.mxu0 0.0
        %1497 = vmatpush1.msra.mxu0 0.0
        %1498 = vmatprep.subr.mxu0 0.0
        %1499 = vmatpush1.msra.mxu0 0.0
        %1500 = vmatprep.subr.mxu0 0.0
        %1501 = vmatpush1.msra.mxu0 0.0
        %1502 = vmatprep.subr.mxu0 0.0
        %1503 = vmatpush1.msra.mxu0 0.0
        %1504 = vmatprep.subr.mxu0 0.0
        %1505 = vmatpush1.msra.mxu0 0.0
        %1506 = vmatprep.subr.mxu0 %v1474
        %1507 = vmatpush1.msra.mxu0 %v1471
        %1508 = vmatprep.subr.mxu0 0.0
        %1509 = vmatpush2.msra.mxu0 0.0
        %1510 = vmatprep.subr.mxu0 0.0
        %1511 = vmatpush2.msra.mxu0 0.0
        %1512 = vmatprep.subr.mxu0 0.0
        %1513 = vmatpush2.msra.mxu0 0.0
        %1514 = vmatprep.subr.mxu0 0.0
        %1515 = vmatpush2.msra.mxu0 0.0
        %1516 = vmatprep.subr.mxu0 0.0
        %1517 = vmatpush2.msra.mxu0 0.0
        %1518 = vmatprep.subr.mxu0 0.0
        %1519 = vmatpush2.msra.mxu0 0.0
        %1520 = vmatprep.subr.mxu0 0.0
        %1521 = vmatpush2.msra.mxu0 0.0
        %1522 = vmatprep.subr.mxu0 0.0
        %1523 = vmatpush2.msra.mxu0 0.0
        %1524 = vmatprep.subr.mxu0 0.0
        %1525 = vmatpush2.msra.mxu0 0.0
        %1526 = vmatprep.subr.mxu0 0.0
        %1527 = vmatpush2.msra.mxu0 0.0
        %1528 = vmatprep.subr.mxu0 0.0
        %1529 = vmatpush2.msra.mxu0 0.0
        %1530 = vmatprep.subr.mxu0 0.0
        %1531 = vmatpush2.msra.mxu0 0.0
        %1532 = vmatprep.subr.mxu0 0.0
        %1533 = vmatpush2.msra.mxu0 0.0
        %1534 = vmatprep.subr.mxu0 0.0
        %1535 = vmatpush2.msra.mxu0 0.0
        %1536 = vmatprep.subr.mxu0 0.0
        %1537 = vmatpush2.msra.mxu0 0.0
        %1538 = vmatprep.subr.mxu0 0.0
        %1539 = vmatpush2.msra.mxu0 0.0
        %1540 = vmatprep.mubr.f32.mxu0 0.0
        %1541 = vmatmul.mubr.f32.gmra.mxu0 %v1468
        %v1542 = vpop.f32.mrf.mxu0
        %v1543 = vadd.f32 0.0, %v1542
        %v1544 = vpop.f32.mrf.mxu0
        %v1545 = vadd.f32 0.0, %v1544
        %1546 = vdwg.mxu0
        %v1547 = vadd.f32 %v1327, %v1543
        %v1548 = vadd.f32 %v1328, %v1545
        %s1549 = scalar_lea.vmem [#allocation5], 3072
        %v1550 = vld [vmem:[%s1549] sm:$0xff]
        %v1551 = vld [vmem:[%s1549 + $0x8] sm:$0xff]
        %v1552 = vld [vmem:[%s1549 + $0x10] sm:$0xff]
        %v1553 = vld [vmem:[%s1549 + $0x18] sm:$0xff]
        %v1554 = vld [vmem:[%s1549 + $0x20] sm:$0xff]
        %v1555 = vld [vmem:[%s1549 + $0x28] sm:$0xff]
        %v1556 = vld [vmem:[%s1549 + $0x30] sm:$0xff]
        %v1557 = vld [vmem:[%s1549 + $0x38] sm:$0xff]
        %v1558 = vld [vmem:[%s1549 + $0x40] sm:$0xff]
        %v1559 = vld [vmem:[%s1549 + $0x48] sm:$0xff]
        %v1560 = vld [vmem:[%s1549 + $0x50] sm:$0xff]
        %v1561 = vld [vmem:[%s1549 + $0x58] sm:$0xff]
        %v1562 = vld [vmem:[%s1549 + $0x60] sm:$0xff]
        %v1563 = vld [vmem:[%s1549 + $0x68] sm:$0xff]
        %v1564 = vld [vmem:[%s1549 + $0x70] sm:$0xff]
        %v1565 = vld [vmem:[%s1549 + $0x78] sm:$0xff]
        %v1566 = vld [vmem:[%s1549 + $0x80] sm:$0xff]
        %v1567 = vld [vmem:[%s1549 + $0x88] sm:$0xff]
        %v1568 = vld [vmem:[%s1549 + $0x90] sm:$0xff]
        %v1569 = vld [vmem:[%s1549 + $0x98] sm:$0xff]
        %v1570 = vld [vmem:[%s1549 + $0xa0] sm:$0xff]
        %v1571 = vld [vmem:[%s1549 + $0xa8] sm:$0xff]
        %v1572 = vld [vmem:[%s1549 + $0xb0] sm:$0xff]
        %v1573 = vld [vmem:[%s1549 + $0xb8] sm:$0xff]
        %v1574 = vld [vmem:[%s1549 + $0xc0] sm:$0xff]
        %v1575 = vld [vmem:[%s1549 + $0xc8] sm:$0xff]
        %v1576 = vld [vmem:[%s1549 + $0xd0] sm:$0xff]
        %v1577 = vld [vmem:[%s1549 + $0xd8] sm:$0xff]
        %v1578 = vld [vmem:[%s1549 + $0xe0] sm:$0xff]
        %v1579 = vld [vmem:[%s1549 + $0xe8] sm:$0xff]
        %v1580 = vld [vmem:[%s1549 + $0xf0] sm:$0xff]
        %v1581 = vld [vmem:[%s1549 + $0xf8] sm:$0xff]
        %v1582 = vld [vmem:[%s1549 + $0x100] sm:$0xff]
        %v1583 = vld [vmem:[%s1549 + $0x108] sm:$0xff]
        %v1584 = vld [vmem:[%s1549 + $0x110] sm:$0xff]
        %v1585 = vld [vmem:[%s1549 + $0x118] sm:$0xff]
        %v1586 = vld [vmem:[%s1549 + $0x120] sm:$0xff]
        %v1587 = vld [vmem:[%s1549 + $0x128] sm:$0xff]
        %v1588 = vld [vmem:[%s1549 + $0x130] sm:$0xff]
        %v1589 = vld [vmem:[%s1549 + $0x138] sm:$0xff]
        %v1590 = vld [vmem:[%s1549 + $0x140] sm:$0xff]
        %v1591 = vld [vmem:[%s1549 + $0x148] sm:$0xff]
        %v1592 = vld [vmem:[%s1549 + $0x150] sm:$0xff]
        %v1593 = vld [vmem:[%s1549 + $0x158] sm:$0xff]
        %v1594 = vld [vmem:[%s1549 + $0x160] sm:$0xff]
        %v1595 = vld [vmem:[%s1549 + $0x168] sm:$0xff]
        %v1596 = vld [vmem:[%s1549 + $0x170] sm:$0xff]
        %v1597 = vld [vmem:[%s1549 + $0x178] sm:$0xff]
        %v1598 = vld [vmem:[%s1549 + $0x180] sm:$0xff]
        %v1599 = vld [vmem:[%s1549 + $0x188] sm:$0xff]
        %v1600 = vld [vmem:[%s1549 + $0x190] sm:$0xff]
        %v1601 = vld [vmem:[%s1549 + $0x198] sm:$0xff]
        %v1602 = vld [vmem:[%s1549 + $0x1a0] sm:$0xff]
        %v1603 = vld [vmem:[%s1549 + $0x1a8] sm:$0xff]
        %v1604 = vld [vmem:[%s1549 + $0x1b0] sm:$0xff]
        %v1605 = vld [vmem:[%s1549 + $0x1b8] sm:$0xff]
        %v1606 = vld [vmem:[%s1549 + $0x1c0] sm:$0xff]
        %v1607 = vld [vmem:[%s1549 + $0x1c8] sm:$0xff]
        %v1608 = vld [vmem:[%s1549 + $0x1d0] sm:$0xff]
        %v1609 = vld [vmem:[%s1549 + $0x1d8] sm:$0xff]
        %v1610 = vld [vmem:[%s1549 + $0x1e0] sm:$0xff]
        %v1611 = vld [vmem:[%s1549 + $0x1e8] sm:$0xff]
        %v1612 = vld [vmem:[%s1549 + $0x1f0] sm:$0xff]
        %v1613 = vld [vmem:[%s1549 + $0x1f8] sm:$0xff]
        %1614 = vmatprep.subr.mxu0 %v1581
        %1615 = vmatpush1.msra.mxu0 %v1580
        %1616 = vmatprep.subr.mxu0 %v1579
        %1617 = vmatpush1.msra.mxu0 %v1578
        %1618 = vmatprep.subr.mxu0 %v1577
        %1619 = vmatpush1.msra.mxu0 %v1576
        %1620 = vmatprep.subr.mxu0 %v1575
        %1621 = vmatpush1.msra.mxu0 %v1574
        %1622 = vmatprep.subr.mxu0 %v1573
        %1623 = vmatpush1.msra.mxu0 %v1572
        %1624 = vmatprep.subr.mxu0 %v1571
        %1625 = vmatpush1.msra.mxu0 %v1570
        %1626 = vmatprep.subr.mxu0 %v1569
        %1627 = vmatpush1.msra.mxu0 %v1568
        %1628 = vmatprep.subr.mxu0 %v1567
        %1629 = vmatpush1.msra.mxu0 %v1566
        %1630 = vmatprep.subr.mxu0 %v1565
        %1631 = vmatpush1.msra.mxu0 %v1564
        %1632 = vmatprep.subr.mxu0 %v1563
        %1633 = vmatpush1.msra.mxu0 %v1562
        %1634 = vmatprep.subr.mxu0 %v1561
        %1635 = vmatpush1.msra.mxu0 %v1560
        %1636 = vmatprep.subr.mxu0 %v1559
        %1637 = vmatpush1.msra.mxu0 %v1558
        %1638 = vmatprep.subr.mxu0 %v1557
        %1639 = vmatpush1.msra.mxu0 %v1556
        %1640 = vmatprep.subr.mxu0 %v1555
        %1641 = vmatpush1.msra.mxu0 %v1554
        %1642 = vmatprep.subr.mxu0 %v1553
        %1643 = vmatpush1.msra.mxu0 %v1552
        %1644 = vmatprep.subr.mxu0 %v1551
        %1645 = vmatpush1.msra.mxu0 %v1550
        %1646 = vmatprep.subr.mxu0 %v1613
        %1647 = vmatpush2.msra.mxu0 %v1612
        %1648 = vmatprep.subr.mxu0 %v1611
        %1649 = vmatpush2.msra.mxu0 %v1610
        %1650 = vmatprep.subr.mxu0 %v1609
        %1651 = vmatpush2.msra.mxu0 %v1608
        %1652 = vmatprep.subr.mxu0 %v1607
        %1653 = vmatpush2.msra.mxu0 %v1606
        %1654 = vmatprep.subr.mxu0 %v1605
        %1655 = vmatpush2.msra.mxu0 %v1604
        %1656 = vmatprep.subr.mxu0 %v1603
        %1657 = vmatpush2.msra.mxu0 %v1602
        %1658 = vmatprep.subr.mxu0 %v1601
        %1659 = vmatpush2.msra.mxu0 %v1600
        %1660 = vmatprep.subr.mxu0 %v1599
        %1661 = vmatpush2.msra.mxu0 %v1598
        %1662 = vmatprep.subr.mxu0 %v1597
        %1663 = vmatpush2.msra.mxu0 %v1596
        %1664 = vmatprep.subr.mxu0 %v1595
        %1665 = vmatpush2.msra.mxu0 %v1594
        %1666 = vmatprep.subr.mxu0 %v1593
        %1667 = vmatpush2.msra.mxu0 %v1592
        %1668 = vmatprep.subr.mxu0 %v1591
        %1669 = vmatpush2.msra.mxu0 %v1590
        %1670 = vmatprep.subr.mxu0 %v1589
        %1671 = vmatpush2.msra.mxu0 %v1588
        %1672 = vmatprep.subr.mxu0 %v1587
        %1673 = vmatpush2.msra.mxu0 %v1586
        %1674 = vmatprep.subr.mxu0 %v1585
        %1675 = vmatpush2.msra.mxu0 %v1584
        %1676 = vmatprep.subr.mxu0 %v1583
        %1677 = vmatpush2.msra.mxu0 %v1582
        %1678 = vmatprep.mubr.f32.mxu0 %v295
        %1679 = vmatmul.mubr.f32.gmra.mxu0 %v229
        %v1680 = vpop.f32.mrf.mxu0
        %v1681 = vadd.f32 0.0, %v1680
        %v1682 = vpop.f32.mrf.mxu0
        %v1683 = vadd.f32 0.0, %v1682
        %1684 = vdwg.mxu0
        %s1685 = scalar_lea.vmem %s1, 48
        %v1686 = vld [vmem:[%s1685] sm:$0xff]
        %v1688 = vsel %vm507, %v1686, 0
        %v1691 = vsel %vm511, %v1681, 0
        %v1694 = vsel %vm511, %v1683, 0
        %1696 = vmatprep.subr.mxu0 0.0
        %1697 = vmatpush1.msra.mxu0 0.0
        %1698 = vmatprep.subr.mxu0 0.0
        %1699 = vmatpush1.msra.mxu0 0.0
        %1700 = vmatprep.subr.mxu0 0.0
        %1701 = vmatpush1.msra.mxu0 0.0
        %1702 = vmatprep.subr.mxu0 0.0
        %1703 = vmatpush1.msra.mxu0 0.0
        %1704 = vmatprep.subr.mxu0 0.0
        %1705 = vmatpush1.msra.mxu0 0.0
        %1706 = vmatprep.subr.mxu0 0.0
        %1707 = vmatpush1.msra.mxu0 0.0
        %1708 = vmatprep.subr.mxu0 0.0
        %1709 = vmatpush1.msra.mxu0 0.0
        %1710 = vmatprep.subr.mxu0 0.0
        %1711 = vmatpush1.msra.mxu0 0.0
        %1712 = vmatprep.subr.mxu0 0.0
        %1713 = vmatpush1.msra.mxu0 0.0
        %1714 = vmatprep.subr.mxu0 0.0
        %1715 = vmatpush1.msra.mxu0 0.0
        %1716 = vmatprep.subr.mxu0 0.0
        %1717 = vmatpush1.msra.mxu0 0.0
        %1718 = vmatprep.subr.mxu0 0.0
        %1719 = vmatpush1.msra.mxu0 0.0
        %1720 = vmatprep.subr.mxu0 0.0
        %1721 = vmatpush1.msra.mxu0 0.0
        %1722 = vmatprep.subr.mxu0 0.0
        %1723 = vmatpush1.msra.mxu0 0.0
        %1724 = vmatprep.subr.mxu0 0.0
        %1725 = vmatpush1.msra.mxu0 0.0
        %1726 = vmatprep.subr.mxu0 %v1694
        %1727 = vmatpush1.msra.mxu0 %v1691
        %1728 = vmatprep.subr.mxu0 0.0
        %1729 = vmatpush2.msra.mxu0 0.0
        %1730 = vmatprep.subr.mxu0 0.0
        %1731 = vmatpush2.msra.mxu0 0.0
        %1732 = vmatprep.subr.mxu0 0.0
        %1733 = vmatpush2.msra.mxu0 0.0
        %1734 = vmatprep.subr.mxu0 0.0
        %1735 = vmatpush2.msra.mxu0 0.0
        %1736 = vmatprep.subr.mxu0 0.0
        %1737 = vmatpush2.msra.mxu0 0.0
        %1738 = vmatprep.subr.mxu0 0.0
        %1739 = vmatpush2.msra.mxu0 0.0
        %1740 = vmatprep.subr.mxu0 0.0
        %1741 = vmatpush2.msra.mxu0 0.0
        %1742 = vmatprep.subr.mxu0 0.0
        %1743 = vmatpush2.msra.mxu0 0.0
        %1744 = vmatprep.subr.mxu0 0.0
        %1745 = vmatpush2.msra.mxu0 0.0
        %1746 = vmatprep.subr.mxu0 0.0
        %1747 = vmatpush2.msra.mxu0 0.0
        %1748 = vmatprep.subr.mxu0 0.0
        %1749 = vmatpush2.msra.mxu0 0.0
        %1750 = vmatprep.subr.mxu0 0.0
        %1751 = vmatpush2.msra.mxu0 0.0
        %1752 = vmatprep.subr.mxu0 0.0
        %1753 = vmatpush2.msra.mxu0 0.0
        %1754 = vmatprep.subr.mxu0 0.0
        %1755 = vmatpush2.msra.mxu0 0.0
        %1756 = vmatprep.subr.mxu0 0.0
        %1757 = vmatpush2.msra.mxu0 0.0
        %1758 = vmatprep.subr.mxu0 0.0
        %1759 = vmatpush2.msra.mxu0 0.0
        %1760 = vmatprep.mubr.f32.mxu0 0.0
        %1761 = vmatmul.mubr.f32.gmra.mxu0 %v1688
        %v1762 = vpop.f32.mrf.mxu0
        %v1763 = vadd.f32 0.0, %v1762
        %v1764 = vpop.f32.mrf.mxu0
        %v1765 = vadd.f32 0.0, %v1764
        %1766 = vdwg.mxu0
        %v1767 = vadd.f32 %v1547, %v1763
        %v1768 = vadd.f32 %v1548, %v1765
        %s1769 = scalar_lea.vmem [#allocation5], 3584
        %v1770 = vld [vmem:[%s1769] sm:$0xff]
        %v1771 = vld [vmem:[%s1769 + $0x8] sm:$0xff]
        %v1772 = vld [vmem:[%s1769 + $0x10] sm:$0xff]
        %v1773 = vld [vmem:[%s1769 + $0x18] sm:$0xff]
        %v1774 = vld [vmem:[%s1769 + $0x20] sm:$0xff]
        %v1775 = vld [vmem:[%s1769 + $0x28] sm:$0xff]
        %v1776 = vld [vmem:[%s1769 + $0x30] sm:$0xff]
        %v1777 = vld [vmem:[%s1769 + $0x38] sm:$0xff]
        %v1778 = vld [vmem:[%s1769 + $0x40] sm:$0xff]
        %v1779 = vld [vmem:[%s1769 + $0x48] sm:$0xff]
        %v1780 = vld [vmem:[%s1769 + $0x50] sm:$0xff]
        %v1781 = vld [vmem:[%s1769 + $0x58] sm:$0xff]
        %v1782 = vld [vmem:[%s1769 + $0x60] sm:$0xff]
        %v1783 = vld [vmem:[%s1769 + $0x68] sm:$0xff]
        %v1784 = vld [vmem:[%s1769 + $0x70] sm:$0xff]
        %v1785 = vld [vmem:[%s1769 + $0x78] sm:$0xff]
        %v1786 = vld [vmem:[%s1769 + $0x80] sm:$0xff]
        %v1787 = vld [vmem:[%s1769 + $0x88] sm:$0xff]
        %v1788 = vld [vmem:[%s1769 + $0x90] sm:$0xff]
        %v1789 = vld [vmem:[%s1769 + $0x98] sm:$0xff]
        %v1790 = vld [vmem:[%s1769 + $0xa0] sm:$0xff]
        %v1791 = vld [vmem:[%s1769 + $0xa8] sm:$0xff]
        %v1792 = vld [vmem:[%s1769 + $0xb0] sm:$0xff]
        %v1793 = vld [vmem:[%s1769 + $0xb8] sm:$0xff]
        %v1794 = vld [vmem:[%s1769 + $0xc0] sm:$0xff]
        %v1795 = vld [vmem:[%s1769 + $0xc8] sm:$0xff]
        %v1796 = vld [vmem:[%s1769 + $0xd0] sm:$0xff]
        %v1797 = vld [vmem:[%s1769 + $0xd8] sm:$0xff]
        %v1798 = vld [vmem:[%s1769 + $0xe0] sm:$0xff]
        %v1799 = vld [vmem:[%s1769 + $0xe8] sm:$0xff]
        %v1800 = vld [vmem:[%s1769 + $0xf0] sm:$0xff]
        %v1801 = vld [vmem:[%s1769 + $0xf8] sm:$0xff]
        %v1802 = vld [vmem:[%s1769 + $0x100] sm:$0xff]
        %v1803 = vld [vmem:[%s1769 + $0x108] sm:$0xff]
        %v1804 = vld [vmem:[%s1769 + $0x110] sm:$0xff]
        %v1805 = vld [vmem:[%s1769 + $0x118] sm:$0xff]
        %v1806 = vld [vmem:[%s1769 + $0x120] sm:$0xff]
        %v1807 = vld [vmem:[%s1769 + $0x128] sm:$0xff]
        %v1808 = vld [vmem:[%s1769 + $0x130] sm:$0xff]
        %v1809 = vld [vmem:[%s1769 + $0x138] sm:$0xff]
        %v1810 = vld [vmem:[%s1769 + $0x140] sm:$0xff]
        %v1811 = vld [vmem:[%s1769 + $0x148] sm:$0xff]
        %v1812 = vld [vmem:[%s1769 + $0x150] sm:$0xff]
        %v1813 = vld [vmem:[%s1769 + $0x158] sm:$0xff]
        %v1814 = vld [vmem:[%s1769 + $0x160] sm:$0xff]
        %v1815 = vld [vmem:[%s1769 + $0x168] sm:$0xff]
        %v1816 = vld [vmem:[%s1769 + $0x170] sm:$0xff]
        %v1817 = vld [vmem:[%s1769 + $0x178] sm:$0xff]
        %v1818 = vld [vmem:[%s1769 + $0x180] sm:$0xff]
        %v1819 = vld [vmem:[%s1769 + $0x188] sm:$0xff]
        %v1820 = vld [vmem:[%s1769 + $0x190] sm:$0xff]
        %v1821 = vld [vmem:[%s1769 + $0x198] sm:$0xff]
        %v1822 = vld [vmem:[%s1769 + $0x1a0] sm:$0xff]
        %v1823 = vld [vmem:[%s1769 + $0x1a8] sm:$0xff]
        %v1824 = vld [vmem:[%s1769 + $0x1b0] sm:$0xff]
        %v1825 = vld [vmem:[%s1769 + $0x1b8] sm:$0xff]
        %v1826 = vld [vmem:[%s1769 + $0x1c0] sm:$0xff]
        %v1827 = vld [vmem:[%s1769 + $0x1c8] sm:$0xff]
        %v1828 = vld [vmem:[%s1769 + $0x1d0] sm:$0xff]
        %v1829 = vld [vmem:[%s1769 + $0x1d8] sm:$0xff]
        %v1830 = vld [vmem:[%s1769 + $0x1e0] sm:$0xff]
        %v1831 = vld [vmem:[%s1769 + $0x1e8] sm:$0xff]
        %v1832 = vld [vmem:[%s1769 + $0x1f0] sm:$0xff]
        %v1833 = vld [vmem:[%s1769 + $0x1f8] sm:$0xff]
        %1834 = vmatprep.subr.mxu0 %v1801
        %1835 = vmatpush1.msra.mxu0 %v1800
        %1836 = vmatprep.subr.mxu0 %v1799
        %1837 = vmatpush1.msra.mxu0 %v1798
        %1838 = vmatprep.subr.mxu0 %v1797
        %1839 = vmatpush1.msra.mxu0 %v1796
        %1840 = vmatprep.subr.mxu0 %v1795
        %1841 = vmatpush1.msra.mxu0 %v1794
        %1842 = vmatprep.subr.mxu0 %v1793
        %1843 = vmatpush1.msra.mxu0 %v1792
        %1844 = vmatprep.subr.mxu0 %v1791
        %1845 = vmatpush1.msra.mxu0 %v1790
        %1846 = vmatprep.subr.mxu0 %v1789
        %1847 = vmatpush1.msra.mxu0 %v1788
        %1848 = vmatprep.subr.mxu0 %v1787
        %1849 = vmatpush1.msra.mxu0 %v1786
        %1850 = vmatprep.subr.mxu0 %v1785
        %1851 = vmatpush1.msra.mxu0 %v1784
        %1852 = vmatprep.subr.mxu0 %v1783
        %1853 = vmatpush1.msra.mxu0 %v1782
        %1854 = vmatprep.subr.mxu0 %v1781
        %1855 = vmatpush1.msra.mxu0 %v1780
        %1856 = vmatprep.subr.mxu0 %v1779
        %1857 = vmatpush1.msra.mxu0 %v1778
        %1858 = vmatprep.subr.mxu0 %v1777
        %1859 = vmatpush1.msra.mxu0 %v1776
        %1860 = vmatprep.subr.mxu0 %v1775
        %1861 = vmatpush1.msra.mxu0 %v1774
        %1862 = vmatprep.subr.mxu0 %v1773
        %1863 = vmatpush1.msra.mxu0 %v1772
        %1864 = vmatprep.subr.mxu0 %v1771
        %1865 = vmatpush1.msra.mxu0 %v1770
        %1866 = vmatprep.subr.mxu0 %v1833
        %1867 = vmatpush2.msra.mxu0 %v1832
        %1868 = vmatprep.subr.mxu0 %v1831
        %1869 = vmatpush2.msra.mxu0 %v1830
        %1870 = vmatprep.subr.mxu0 %v1829
        %1871 = vmatpush2.msra.mxu0 %v1828
        %1872 = vmatprep.subr.mxu0 %v1827
        %1873 = vmatpush2.msra.mxu0 %v1826
        %1874 = vmatprep.subr.mxu0 %v1825
        %1875 = vmatpush2.msra.mxu0 %v1824
        %1876 = vmatprep.subr.mxu0 %v1823
        %1877 = vmatpush2.msra.mxu0 %v1822
        %1878 = vmatprep.subr.mxu0 %v1821
        %1879 = vmatpush2.msra.mxu0 %v1820
        %1880 = vmatprep.subr.mxu0 %v1819
        %1881 = vmatpush2.msra.mxu0 %v1818
        %1882 = vmatprep.subr.mxu0 %v1817
        %1883 = vmatpush2.msra.mxu0 %v1816
        %1884 = vmatprep.subr.mxu0 %v1815
        %1885 = vmatpush2.msra.mxu0 %v1814
        %1886 = vmatprep.subr.mxu0 %v1813
        %1887 = vmatpush2.msra.mxu0 %v1812
        %1888 = vmatprep.subr.mxu0 %v1811
        %1889 = vmatpush2.msra.mxu0 %v1810
        %1890 = vmatprep.subr.mxu0 %v1809
        %1891 = vmatpush2.msra.mxu0 %v1808
        %1892 = vmatprep.subr.mxu0 %v1807
        %1893 = vmatpush2.msra.mxu0 %v1806
        %1894 = vmatprep.subr.mxu0 %v1805
        %1895 = vmatpush2.msra.mxu0 %v1804
        %1896 = vmatprep.subr.mxu0 %v1803
        %1897 = vmatpush2.msra.mxu0 %v1802
        %1898 = vmatprep.mubr.f32.mxu0 %v295
        %1899 = vmatmul.mubr.f32.gmra.mxu0 %v229
        %v1900 = vpop.f32.mrf.mxu0
        %v1901 = vadd.f32 0.0, %v1900
        %v1902 = vpop.f32.mrf.mxu0
        %v1903 = vadd.f32 0.0, %v1902
        %1904 = vdwg.mxu0
        %s1905 = scalar_lea.vmem %s1, 56
        %v1906 = vld [vmem:[%s1905] sm:$0xff]
        %v1908 = vsel %vm507, %v1906, 0
        %v1911 = vsel %vm511, %v1901, 0
        %v1914 = vsel %vm511, %v1903, 0
        %1916 = vmatprep.subr.mxu0 0.0
        %1917 = vmatpush1.msra.mxu0 0.0
        %1918 = vmatprep.subr.mxu0 0.0
        %1919 = vmatpush1.msra.mxu0 0.0
        %1920 = vmatprep.subr.mxu0 0.0
        %1921 = vmatpush1.msra.mxu0 0.0
        %1922 = vmatprep.subr.mxu0 0.0
        %1923 = vmatpush1.msra.mxu0 0.0
        %1924 = vmatprep.subr.mxu0 0.0
        %1925 = vmatpush1.msra.mxu0 0.0
        %1926 = vmatprep.subr.mxu0 0.0
        %1927 = vmatpush1.msra.mxu0 0.0
        %1928 = vmatprep.subr.mxu0 0.0
        %1929 = vmatpush1.msra.mxu0 0.0
        %1930 = vmatprep.subr.mxu0 0.0
        %1931 = vmatpush1.msra.mxu0 0.0
        %1932 = vmatprep.subr.mxu0 0.0
        %1933 = vmatpush1.msra.mxu0 0.0
        %1934 = vmatprep.subr.mxu0 0.0
        %1935 = vmatpush1.msra.mxu0 0.0
        %1936 = vmatprep.subr.mxu0 0.0
        %1937 = vmatpush1.msra.mxu0 0.0
        %1938 = vmatprep.subr.mxu0 0.0
        %1939 = vmatpush1.msra.mxu0 0.0
        %1940 = vmatprep.subr.mxu0 0.0
        %1941 = vmatpush1.msra.mxu0 0.0
        %1942 = vmatprep.subr.mxu0 0.0
        %1943 = vmatpush1.msra.mxu0 0.0
        %1944 = vmatprep.subr.mxu0 0.0
        %1945 = vmatpush1.msra.mxu0 0.0
        %1946 = vmatprep.subr.mxu0 %v1914
        %1947 = vmatpush1.msra.mxu0 %v1911
        %1948 = vmatprep.subr.mxu0 0.0
        %1949 = vmatpush2.msra.mxu0 0.0
        %1950 = vmatprep.subr.mxu0 0.0
        %1951 = vmatpush2.msra.mxu0 0.0
        %1952 = vmatprep.subr.mxu0 0.0
        %1953 = vmatpush2.msra.mxu0 0.0
        %1954 = vmatprep.subr.mxu0 0.0
        %1955 = vmatpush2.msra.mxu0 0.0
        %1956 = vmatprep.subr.mxu0 0.0
        %1957 = vmatpush2.msra.mxu0 0.0
        %1958 = vmatprep.subr.mxu0 0.0
        %1959 = vmatpush2.msra.mxu0 0.0
        %1960 = vmatprep.subr.mxu0 0.0
        %1961 = vmatpush2.msra.mxu0 0.0
        %1962 = vmatprep.subr.mxu0 0.0
        %1963 = vmatpush2.msra.mxu0 0.0
        %1964 = vmatprep.subr.mxu0 0.0
        %1965 = vmatpush2.msra.mxu0 0.0
        %1966 = vmatprep.subr.mxu0 0.0
        %1967 = vmatpush2.msra.mxu0 0.0
        %1968 = vmatprep.subr.mxu0 0.0
        %1969 = vmatpush2.msra.mxu0 0.0
        %1970 = vmatprep.subr.mxu0 0.0
        %1971 = vmatpush2.msra.mxu0 0.0
        %1972 = vmatprep.subr.mxu0 0.0
        %1973 = vmatpush2.msra.mxu0 0.0
        %1974 = vmatprep.subr.mxu0 0.0
        %1975 = vmatpush2.msra.mxu0 0.0
        %1976 = vmatprep.subr.mxu0 0.0
        %1977 = vmatpush2.msra.mxu0 0.0
        %1978 = vmatprep.subr.mxu0 0.0
        %1979 = vmatpush2.msra.mxu0 0.0
        %1980 = vmatprep.mubr.f32.mxu0 0.0
        %1981 = vmatmul.mubr.f32.gmra.mxu0 %v1908
        %v1982 = vpop.f32.mrf.mxu0
        %v1983 = vadd.f32 0.0, %v1982
        %v1984 = vpop.f32.mrf.mxu0
        %v1985 = vadd.f32 0.0, %v1984
        %1986 = vdwg.mxu0
        %v1987 = vadd.f32 %v1767, %v1983
        %v1988 = vadd.f32 %v1768, %v1985
        %s1989 = scalar_lea.vmem [#allocation5], 4096
        %v1990 = vld [vmem:[%s1989] sm:$0xff]
        %v1991 = vld [vmem:[%s1989 + $0x8] sm:$0xff]
        %v1992 = vld [vmem:[%s1989 + $0x10] sm:$0xff]
        %v1993 = vld [vmem:[%s1989 + $0x18] sm:$0xff]
        %v1994 = vld [vmem:[%s1989 + $0x20] sm:$0xff]
        %v1995 = vld [vmem:[%s1989 + $0x28] sm:$0xff]
        %v1996 = vld [vmem:[%s1989 + $0x30] sm:$0xff]
        %v1997 = vld [vmem:[%s1989 + $0x38] sm:$0xff]
        %v1998 = vld [vmem:[%s1989 + $0x40] sm:$0xff]
        %v1999 = vld [vmem:[%s1989 + $0x48] sm:$0xff]
        %v2000 = vld [vmem:[%s1989 + $0x50] sm:$0xff]
        %v2001 = vld [vmem:[%s1989 + $0x58] sm:$0xff]
        %v2002 = vld [vmem:[%s1989 + $0x60] sm:$0xff]
        %v2003 = vld [vmem:[%s1989 + $0x68] sm:$0xff]
        %v2004 = vld [vmem:[%s1989 + $0x70] sm:$0xff]
        %v2005 = vld [vmem:[%s1989 + $0x78] sm:$0xff]
        %v2006 = vld [vmem:[%s1989 + $0x80] sm:$0xff]
        %v2007 = vld [vmem:[%s1989 + $0x88] sm:$0xff]
        %v2008 = vld [vmem:[%s1989 + $0x90] sm:$0xff]
        %v2009 = vld [vmem:[%s1989 + $0x98] sm:$0xff]
        %v2010 = vld [vmem:[%s1989 + $0xa0] sm:$0xff]
        %v2011 = vld [vmem:[%s1989 + $0xa8] sm:$0xff]
        %v2012 = vld [vmem:[%s1989 + $0xb0] sm:$0xff]
        %v2013 = vld [vmem:[%s1989 + $0xb8] sm:$0xff]
        %v2014 = vld [vmem:[%s1989 + $0xc0] sm:$0xff]
        %v2015 = vld [vmem:[%s1989 + $0xc8] sm:$0xff]
        %v2016 = vld [vmem:[%s1989 + $0xd0] sm:$0xff]
        %v2017 = vld [vmem:[%s1989 + $0xd8] sm:$0xff]
        %v2018 = vld [vmem:[%s1989 + $0xe0] sm:$0xff]
        %v2019 = vld [vmem:[%s1989 + $0xe8] sm:$0xff]
        %v2020 = vld [vmem:[%s1989 + $0xf0] sm:$0xff]
        %v2021 = vld [vmem:[%s1989 + $0xf8] sm:$0xff]
        %v2022 = vld [vmem:[%s1989 + $0x100] sm:$0xff]
        %v2023 = vld [vmem:[%s1989 + $0x108] sm:$0xff]
        %v2024 = vld [vmem:[%s1989 + $0x110] sm:$0xff]
        %v2025 = vld [vmem:[%s1989 + $0x118] sm:$0xff]
        %v2026 = vld [vmem:[%s1989 + $0x120] sm:$0xff]
        %v2027 = vld [vmem:[%s1989 + $0x128] sm:$0xff]
        %v2028 = vld [vmem:[%s1989 + $0x130] sm:$0xff]
        %v2029 = vld [vmem:[%s1989 + $0x138] sm:$0xff]
        %v2030 = vld [vmem:[%s1989 + $0x140] sm:$0xff]
        %v2031 = vld [vmem:[%s1989 + $0x148] sm:$0xff]
        %v2032 = vld [vmem:[%s1989 + $0x150] sm:$0xff]
        %v2033 = vld [vmem:[%s1989 + $0x158] sm:$0xff]
        %v2034 = vld [vmem:[%s1989 + $0x160] sm:$0xff]
        %v2035 = vld [vmem:[%s1989 + $0x168] sm:$0xff]
        %v2036 = vld [vmem:[%s1989 + $0x170] sm:$0xff]
        %v2037 = vld [vmem:[%s1989 + $0x178] sm:$0xff]
        %v2038 = vld [vmem:[%s1989 + $0x180] sm:$0xff]
        %v2039 = vld [vmem:[%s1989 + $0x188] sm:$0xff]
        %v2040 = vld [vmem:[%s1989 + $0x190] sm:$0xff]
        %v2041 = vld [vmem:[%s1989 + $0x198] sm:$0xff]
        %v2042 = vld [vmem:[%s1989 + $0x1a0] sm:$0xff]
        %v2043 = vld [vmem:[%s1989 + $0x1a8] sm:$0xff]
        %v2044 = vld [vmem:[%s1989 + $0x1b0] sm:$0xff]
        %v2045 = vld [vmem:[%s1989 + $0x1b8] sm:$0xff]
        %v2046 = vld [vmem:[%s1989 + $0x1c0] sm:$0xff]
        %v2047 = vld [vmem:[%s1989 + $0x1c8] sm:$0xff]
        %v2048 = vld [vmem:[%s1989 + $0x1d0] sm:$0xff]
        %v2049 = vld [vmem:[%s1989 + $0x1d8] sm:$0xff]
        %v2050 = vld [vmem:[%s1989 + $0x1e0] sm:$0xff]
        %v2051 = vld [vmem:[%s1989 + $0x1e8] sm:$0xff]
        %v2052 = vld [vmem:[%s1989 + $0x1f0] sm:$0xff]
        %v2053 = vld [vmem:[%s1989 + $0x1f8] sm:$0xff]
        %2054 = vmatprep.subr.mxu0 %v2021
        %2055 = vmatpush1.msra.mxu0 %v2020
        %2056 = vmatprep.subr.mxu0 %v2019
        %2057 = vmatpush1.msra.mxu0 %v2018
        %2058 = vmatprep.subr.mxu0 %v2017
        %2059 = vmatpush1.msra.mxu0 %v2016
        %2060 = vmatprep.subr.mxu0 %v2015
        %2061 = vmatpush1.msra.mxu0 %v2014
        %2062 = vmatprep.subr.mxu0 %v2013
        %2063 = vmatpush1.msra.mxu0 %v2012
        %2064 = vmatprep.subr.mxu0 %v2011
        %2065 = vmatpush1.msra.mxu0 %v2010
        %2066 = vmatprep.subr.mxu0 %v2009
        %2067 = vmatpush1.msra.mxu0 %v2008
        %2068 = vmatprep.subr.mxu0 %v2007
        %2069 = vmatpush1.msra.mxu0 %v2006
        %2070 = vmatprep.subr.mxu0 %v2005
        %2071 = vmatpush1.msra.mxu0 %v2004
        %2072 = vmatprep.subr.mxu0 %v2003
        %2073 = vmatpush1.msra.mxu0 %v2002
        %2074 = vmatprep.subr.mxu0 %v2001
        %2075 = vmatpush1.msra.mxu0 %v2000
        %2076 = vmatprep.subr.mxu0 %v1999
        %2077 = vmatpush1.msra.mxu0 %v1998
        %2078 = vmatprep.subr.mxu0 %v1997
        %2079 = vmatpush1.msra.mxu0 %v1996
        %2080 = vmatprep.subr.mxu0 %v1995
        %2081 = vmatpush1.msra.mxu0 %v1994
        %2082 = vmatprep.subr.mxu0 %v1993
        %2083 = vmatpush1.msra.mxu0 %v1992
        %2084 = vmatprep.subr.mxu0 %v1991
        %2085 = vmatpush1.msra.mxu0 %v1990
        %2086 = vmatprep.subr.mxu0 %v2053
        %2087 = vmatpush2.msra.mxu0 %v2052
        %2088 = vmatprep.subr.mxu0 %v2051
        %2089 = vmatpush2.msra.mxu0 %v2050
        %2090 = vmatprep.subr.mxu0 %v2049
        %2091 = vmatpush2.msra.mxu0 %v2048
        %2092 = vmatprep.subr.mxu0 %v2047
        %2093 = vmatpush2.msra.mxu0 %v2046
        %2094 = vmatprep.subr.mxu0 %v2045
        %2095 = vmatpush2.msra.mxu0 %v2044
        %2096 = vmatprep.subr.mxu0 %v2043
        %2097 = vmatpush2.msra.mxu0 %v2042
        %2098 = vmatprep.subr.mxu0 %v2041
        %2099 = vmatpush2.msra.mxu0 %v2040
        %2100 = vmatprep.subr.mxu0 %v2039
        %2101 = vmatpush2.msra.mxu0 %v2038
        %2102 = vmatprep.subr.mxu0 %v2037
        %2103 = vmatpush2.msra.mxu0 %v2036
        %2104 = vmatprep.subr.mxu0 %v2035
        %2105 = vmatpush2.msra.mxu0 %v2034
        %2106 = vmatprep.subr.mxu0 %v2033
        %2107 = vmatpush2.msra.mxu0 %v2032
        %2108 = vmatprep.subr.mxu0 %v2031
        %2109 = vmatpush2.msra.mxu0 %v2030
        %2110 = vmatprep.subr.mxu0 %v2029
        %2111 = vmatpush2.msra.mxu0 %v2028
        %2112 = vmatprep.subr.mxu0 %v2027
        %2113 = vmatpush2.msra.mxu0 %v2026
        %2114 = vmatprep.subr.mxu0 %v2025
        %2115 = vmatpush2.msra.mxu0 %v2024
        %2116 = vmatprep.subr.mxu0 %v2023
        %2117 = vmatpush2.msra.mxu0 %v2022
        %2118 = vmatprep.mubr.f32.mxu0 %v295
        %2119 = vmatmul.mubr.f32.gmra.mxu0 %v229
        %v2120 = vpop.f32.mrf.mxu0
        %v2121 = vadd.f32 0.0, %v2120
        %v2122 = vpop.f32.mrf.mxu0
        %v2123 = vadd.f32 0.0, %v2122
        %2124 = vdwg.mxu0
        %s2125 = scalar_lea.vmem %s1, 64
        %v2126 = vld [vmem:[%s2125] sm:$0xff]
        %v2128 = vsel %vm507, %v2126, 0
        %v2131 = vsel %vm511, %v2121, 0
        %v2134 = vsel %vm511, %v2123, 0
        %2136 = vmatprep.subr.mxu0 0.0
        %2137 = vmatpush1.msra.mxu0 0.0
        %2138 = vmatprep.subr.mxu0 0.0
        %2139 = vmatpush1.msra.mxu0 0.0
        %2140 = vmatprep.subr.mxu0 0.0
        %2141 = vmatpush1.msra.mxu0 0.0
        %2142 = vmatprep.subr.mxu0 0.0
        %2143 = vmatpush1.msra.mxu0 0.0
        %2144 = vmatprep.subr.mxu0 0.0
        %2145 = vmatpush1.msra.mxu0 0.0
        %2146 = vmatprep.subr.mxu0 0.0
        %2147 = vmatpush1.msra.mxu0 0.0
        %2148 = vmatprep.subr.mxu0 0.0
        %2149 = vmatpush1.msra.mxu0 0.0
        %2150 = vmatprep.subr.mxu0 0.0
        %2151 = vmatpush1.msra.mxu0 0.0
        %2152 = vmatprep.subr.mxu0 0.0
        %2153 = vmatpush1.msra.mxu0 0.0
        %2154 = vmatprep.subr.mxu0 0.0
        %2155 = vmatpush1.msra.mxu0 0.0
        %2156 = vmatprep.subr.mxu0 0.0
        %2157 = vmatpush1.msra.mxu0 0.0
        %2158 = vmatprep.subr.mxu0 0.0
        %2159 = vmatpush1.msra.mxu0 0.0
        %2160 = vmatprep.subr.mxu0 0.0
        %2161 = vmatpush1.msra.mxu0 0.0
        %2162 = vmatprep.subr.mxu0 0.0
        %2163 = vmatpush1.msra.mxu0 0.0
        %2164 = vmatprep.subr.mxu0 0.0
        %2165 = vmatpush1.msra.mxu0 0.0
        %2166 = vmatprep.subr.mxu0 %v2134
        %2167 = vmatpush1.msra.mxu0 %v2131
        %2168 = vmatprep.subr.mxu0 0.0
        %2169 = vmatpush2.msra.mxu0 0.0
        %2170 = vmatprep.subr.mxu0 0.0
        %2171 = vmatpush2.msra.mxu0 0.0
        %2172 = vmatprep.subr.mxu0 0.0
        %2173 = vmatpush2.msra.mxu0 0.0
        %2174 = vmatprep.subr.mxu0 0.0
        %2175 = vmatpush2.msra.mxu0 0.0
        %2176 = vmatprep.subr.mxu0 0.0
        %2177 = vmatpush2.msra.mxu0 0.0
        %2178 = vmatprep.subr.mxu0 0.0
        %2179 = vmatpush2.msra.mxu0 0.0
        %2180 = vmatprep.subr.mxu0 0.0
        %2181 = vmatpush2.msra.mxu0 0.0
        %2182 = vmatprep.subr.mxu0 0.0
        %2183 = vmatpush2.msra.mxu0 0.0
        %2184 = vmatprep.subr.mxu0 0.0
        %2185 = vmatpush2.msra.mxu0 0.0
        %2186 = vmatprep.subr.mxu0 0.0
        %2187 = vmatpush2.msra.mxu0 0.0
        %2188 = vmatprep.subr.mxu0 0.0
        %2189 = vmatpush2.msra.mxu0 0.0
        %2190 = vmatprep.subr.mxu0 0.0
        %2191 = vmatpush2.msra.mxu0 0.0
        %2192 = vmatprep.subr.mxu0 0.0
        %2193 = vmatpush2.msra.mxu0 0.0
        %2194 = vmatprep.subr.mxu0 0.0
        %2195 = vmatpush2.msra.mxu0 0.0
        %2196 = vmatprep.subr.mxu0 0.0
        %2197 = vmatpush2.msra.mxu0 0.0
        %2198 = vmatprep.subr.mxu0 0.0
        %2199 = vmatpush2.msra.mxu0 0.0
        %2200 = vmatprep.mubr.f32.mxu0 0.0
        %2201 = vmatmul.mubr.f32.gmra.mxu0 %v2128
        %v2202 = vpop.f32.mrf.mxu0
        %v2203 = vadd.f32 0.0, %v2202
        %v2204 = vpop.f32.mrf.mxu0
        %v2205 = vadd.f32 0.0, %v2204
        %2206 = vdwg.mxu0
        %v2207 = vadd.f32 %v1987, %v2203
        %v2208 = vadd.f32 %v1988, %v2205
        %v2209 = vadd.f32 %v2207, %v2208
        %2210 = vadd.xlane.f32.xlu0 %v2209
        %v2211 = vpop.xlane.xlu0 %2210
        %v2212 = vrcp.pop 256.0
        %v2213 = vmul.f32 %v2211, %v2212
        %v2214 = vsub.f32 %v2207, %v2213
        %v2215 = vsub.f32 %v2208, %v2213
        %v2216 = vmul.f32 %v2214, %v2214
        %v2217 = vmul.f32 %v2215, %v2215
        %v2218 = vadd.f32 %v2216, %v2217
        %2219 = vadd.xlane.f32.xlu0 %v2218
        %v2220 = vpop.xlane.xlu0 %2219
        %v2221 = vmul.f32 %v2220, %v2212
        %v2222 = vadd.f32 %v2221, 1e-05
        %v2223 = vrsqrt.pop %v2222
        %v2224 = vmul.f32 %v2214, %v2223
        %v2225 = vmul.f32 %v2215, %v2223
        %v2226 = vmax.f32 %v2224, 0.0
        %v2227 = vmax.f32 %v2225, 0.0
        %2228 = vmatprep.subr.mxu0 %v261
        %2229 = vmatpush1.msra.mxu0 %v260
        %2230 = vmatprep.subr.mxu0 %v259
        %2231 = vmatpush1.msra.mxu0 %v258
        %2232 = vmatprep.subr.mxu0 %v257
        %2233 = vmatpush1.msra.mxu0 %v256
        %2234 = vmatprep.subr.mxu0 %v255
        %2235 = vmatpush1.msra.mxu0 %v254
        %2236 = vmatprep.subr.mxu0 %v253
        %2237 = vmatpush1.msra.mxu0 %v252
        %2238 = vmatprep.subr.mxu0 %v251
        %2239 = vmatpush1.msra.mxu0 %v250
        %2240 = vmatprep.subr.mxu0 %v249
        %2241 = vmatpush1.msra.mxu0 %v248
        %2242 = vmatprep.subr.mxu0 %v247
        %2243 = vmatpush1.msra.mxu0 %v246
        %2244 = vmatprep.subr.mxu0 %v245
        %2245 = vmatpush1.msra.mxu0 %v244
        %2246 = vmatprep.subr.mxu0 %v243
        %2247 = vmatpush1.msra.mxu0 %v242
        %2248 = vmatprep.subr.mxu0 %v241
        %2249 = vmatpush1.msra.mxu0 %v240
        %2250 = vmatprep.subr.mxu0 %v239
        %2251 = vmatpush1.msra.mxu0 %v238
        %2252 = vmatprep.subr.mxu0 %v237
        %2253 = vmatpush1.msra.mxu0 %v236
        %2254 = vmatprep.subr.mxu0 %v235
        %2255 = vmatpush1.msra.mxu0 %v234
        %2256 = vmatprep.subr.mxu0 %v233
        %2257 = vmatpush1.msra.mxu0 %v232
        %2258 = vmatprep.subr.mxu0 %v231
        %2259 = vmatpush1.msra.mxu0 %v230
        %2260 = vmatprep.subr.mxu0 %v293
        %2261 = vmatpush2.msra.mxu0 %v292
        %2262 = vmatprep.subr.mxu0 %v291
        %2263 = vmatpush2.msra.mxu0 %v290
        %2264 = vmatprep.subr.mxu0 %v289
        %2265 = vmatpush2.msra.mxu0 %v288
        %2266 = vmatprep.subr.mxu0 %v287
        %2267 = vmatpush2.msra.mxu0 %v286
        %2268 = vmatprep.subr.mxu0 %v285
        %2269 = vmatpush2.msra.mxu0 %v284
        %2270 = vmatprep.subr.mxu0 %v283
        %2271 = vmatpush2.msra.mxu0 %v282
        %2272 = vmatprep.subr.mxu0 %v281
        %2273 = vmatpush2.msra.mxu0 %v280
        %2274 = vmatprep.subr.mxu0 %v279
        %2275 = vmatpush2.msra.mxu0 %v278
        %2276 = vmatprep.subr.mxu0 %v277
        %2277 = vmatpush2.msra.mxu0 %v276
        %2278 = vmatprep.subr.mxu0 %v275
        %2279 = vmatpush2.msra.mxu0 %v274
        %2280 = vmatprep.subr.mxu0 %v273
        %2281 = vmatpush2.msra.mxu0 %v272
        %2282 = vmatprep.subr.mxu0 %v271
        %2283 = vmatpush2.msra.mxu0 %v270
        %2284 = vmatprep.subr.mxu0 %v269
        %2285 = vmatpush2.msra.mxu0 %v268
        %2286 = vmatprep.subr.mxu0 %v267
        %2287 = vmatpush2.msra.mxu0 %v266
        %2288 = vmatprep.subr.mxu0 %v265
        %2289 = vmatpush2.msra.mxu0 %v264
        %2290 = vmatprep.subr.mxu0 %v263
        %2291 = vmatpush2.msra.mxu0 %v262
        %2292 = vmatprep.mubr.f32.mxu0 %v2227
        %2293 = vmatmul.mubr.f32.gmra.mxu0 %v2226
        %v2294 = vpop.f32.mrf.mxu0
        %v2295 = vadd.f32 0.0, %v2294
        %v2296 = vpop.f32.mrf.mxu0
        %v2297 = vadd.f32 0.0, %v2296
        %2298 = vdwg.mxu0
        %v2299 = vld [vmem:[%s2] sm:$0xff]
        %2300 = vmatprep.subr.mxu0 %v401
        %2301 = vmatpush1.msra.mxu0 %v400
        %2302 = vmatprep.subr.mxu0 %v399
        %2303 = vmatpush1.msra.mxu0 %v398
        %2304 = vmatprep.subr.mxu0 %v397
        %2305 = vmatpush1.msra.mxu0 %v396
        %2306 = vmatprep.subr.mxu0 %v395
        %2307 = vmatpush1.msra.mxu0 %v394
        %2308 = vmatprep.subr.mxu0 %v393
        %2309 = vmatpush1.msra.mxu0 %v392
        %2310 = vmatprep.subr.mxu0 %v391
        %2311 = vmatpush1.msra.mxu0 %v390
        %2312 = vmatprep.subr.mxu0 %v389
        %2313 = vmatpush1.msra.mxu0 %v388
        %2314 = vmatprep.subr.mxu0 %v387
        %2315 = vmatpush1.msra.mxu0 %v386
        %2316 = vmatprep.subr.mxu0 %v385
        %2317 = vmatpush1.msra.mxu0 %v384
        %2318 = vmatprep.subr.mxu0 %v383
        %2319 = vmatpush1.msra.mxu0 %v382
        %2320 = vmatprep.subr.mxu0 %v381
        %2321 = vmatpush1.msra.mxu0 %v380
        %2322 = vmatprep.subr.mxu0 %v379
        %2323 = vmatpush1.msra.mxu0 %v378
        %2324 = vmatprep.subr.mxu0 %v377
        %2325 = vmatpush1.msra.mxu0 %v376
        %2326 = vmatprep.subr.mxu0 %v375
        %2327 = vmatpush1.msra.mxu0 %v374
        %2328 = vmatprep.subr.mxu0 %v373
        %2329 = vmatpush1.msra.mxu0 %v372
        %2330 = vmatprep.subr.mxu0 %v371
        %2331 = vmatpush1.msra.mxu0 %v370
        %2332 = vmatprep.subr.mxu0 %v433
        %2333 = vmatpush2.msra.mxu0 %v432
        %2334 = vmatprep.subr.mxu0 %v431
        %2335 = vmatpush2.msra.mxu0 %v430
        %2336 = vmatprep.subr.mxu0 %v429
        %2337 = vmatpush2.msra.mxu0 %v428
        %2338 = vmatprep.subr.mxu0 %v427
        %2339 = vmatpush2.msra.mxu0 %v426
        %2340 = vmatprep.subr.mxu0 %v425
        %2341 = vmatpush2.msra.mxu0 %v424
        %2342 = vmatprep.subr.mxu0 %v423
        %2343 = vmatpush2.msra.mxu0 %v422
        %2344 = vmatprep.subr.mxu0 %v421
        %2345 = vmatpush2.msra.mxu0 %v420
        %2346 = vmatprep.subr.mxu0 %v419
        %2347 = vmatpush2.msra.mxu0 %v418
        %2348 = vmatprep.subr.mxu0 %v417
        %2349 = vmatpush2.msra.mxu0 %v416
        %2350 = vmatprep.subr.mxu0 %v415
        %2351 = vmatpush2.msra.mxu0 %v414
        %2352 = vmatprep.subr.mxu0 %v413
        %2353 = vmatpush2.msra.mxu0 %v412
        %2354 = vmatprep.subr.mxu0 %v411
        %2355 = vmatpush2.msra.mxu0 %v410
        %2356 = vmatprep.subr.mxu0 %v409
        %2357 = vmatpush2.msra.mxu0 %v408
        %2358 = vmatprep.subr.mxu0 %v407
        %2359 = vmatpush2.msra.mxu0 %v406
        %2360 = vmatprep.subr.mxu0 %v405
        %2361 = vmatpush2.msra.mxu0 %v404
        %2362 = vmatprep.subr.mxu0 %v403
        %2363 = vmatpush2.msra.mxu0 %v402
        %2364 = vmatprep.mubr.f32.mxu0 %v2227
        %2365 = vmatmul.mubr.f32.gmra.mxu0 %v2226
        %v2366 = vpop.f32.mrf.mxu0
        %v2367 = vadd.f32 0.0, %v2366
        %v2368 = vpop.f32.mrf.mxu0
        %v2369 = vadd.f32 0.0, %v2368
        %2370 = vdwg.mxu0
        %s2371 = scalar_lea.vmem %s2, 8
        %v2372 = vld [vmem:[%s2371] sm:$0xff]
        %vm2373 = vcmask 64512
        %v2375 = vsel %vm2373, %v2372, 0
        %2377 = vmatprep.subr.mxu0 0.0
        %2378 = vmatpush1.msra.mxu0 0.0
        %2379 = vmatprep.subr.mxu0 0.0
        %2380 = vmatpush1.msra.mxu0 0.0
        %2381 = vmatprep.subr.mxu0 0.0
        %2382 = vmatpush1.msra.mxu0 0.0
        %2383 = vmatprep.subr.mxu0 0.0
        %2384 = vmatpush1.msra.mxu0 0.0
        %2385 = vmatprep.subr.mxu0 0.0
        %2386 = vmatpush1.msra.mxu0 0.0
        %2387 = vmatprep.subr.mxu0 0.0
        %2388 = vmatpush1.msra.mxu0 0.0
        %2389 = vmatprep.subr.mxu0 0.0
        %2390 = vmatpush1.msra.mxu0 0.0
        %2391 = vmatprep.subr.mxu0 0.0
        %2392 = vmatpush1.msra.mxu0 0.0
        %2393 = vmatprep.subr.mxu0 0.0
        %2394 = vmatpush1.msra.mxu0 0.0
        %2395 = vmatprep.subr.mxu0 0.0
        %2396 = vmatpush1.msra.mxu0 0.0
        %2397 = vmatprep.subr.mxu0 0.0
        %2398 = vmatpush1.msra.mxu0 0.0
        %2399 = vmatprep.subr.mxu0 0.0
        %2400 = vmatpush1.msra.mxu0 0.0
        %2401 = vmatprep.subr.mxu0 0.0
        %2402 = vmatpush1.msra.mxu0 0.0
        %2403 = vmatprep.subr.mxu0 0.0
        %2404 = vmatpush1.msra.mxu0 0.0
        %2405 = vmatprep.subr.mxu0 0.0
        %2406 = vmatpush1.msra.mxu0 0.0
        %2407 = vmatprep.subr.mxu0 %v2369
        %2408 = vmatpush1.msra.mxu0 %v2367
        %2409 = vmatprep.subr.mxu0 0.0
        %2410 = vmatpush2.msra.mxu0 0.0
        %2411 = vmatprep.subr.mxu0 0.0
        %2412 = vmatpush2.msra.mxu0 0.0
        %2413 = vmatprep.subr.mxu0 0.0
        %2414 = vmatpush2.msra.mxu0 0.0
        %2415 = vmatprep.subr.mxu0 0.0
        %2416 = vmatpush2.msra.mxu0 0.0
        %2417 = vmatprep.subr.mxu0 0.0
        %2418 = vmatpush2.msra.mxu0 0.0
        %2419 = vmatprep.subr.mxu0 0.0
        %2420 = vmatpush2.msra.mxu0 0.0
        %2421 = vmatprep.subr.mxu0 0.0
        %2422 = vmatpush2.msra.mxu0 0.0
        %2423 = vmatprep.subr.mxu0 0.0
        %2424 = vmatpush2.msra.mxu0 0.0
        %2425 = vmatprep.subr.mxu0 0.0
        %2426 = vmatpush2.msra.mxu0 0.0
        %2427 = vmatprep.subr.mxu0 0.0
        %2428 = vmatpush2.msra.mxu0 0.0
        %2429 = vmatprep.subr.mxu0 0.0
        %2430 = vmatpush2.msra.mxu0 0.0
        %2431 = vmatprep.subr.mxu0 0.0
        %2432 = vmatpush2.msra.mxu0 0.0
        %2433 = vmatprep.subr.mxu0 0.0
        %2434 = vmatpush2.msra.mxu0 0.0
        %2435 = vmatprep.subr.mxu0 0.0
        %2436 = vmatpush2.msra.mxu0 0.0
        %2437 = vmatprep.subr.mxu0 0.0
        %2438 = vmatpush2.msra.mxu0 0.0
        %2439 = vmatprep.subr.mxu0 0.0
        %2440 = vmatpush2.msra.mxu0 0.0
        %2441 = vmatprep.mubr.f32.mxu0 0.0
        %2442 = vmatmul.mubr.f32.gmra.mxu0 %v2375
        %v2443 = vpop.f32.mrf.mxu0
        %v2444 = vadd.f32 0.0, %v2443
        %v2445 = vpop.f32.mrf.mxu0
        %v2446 = vadd.f32 0.0, %v2445
        %2447 = vdwg.mxu0
        %v2449 = vsel %vm2373, %v2299, 0
        %2451 = vmatprep.subr.mxu0 0.0
        %2452 = vmatpush1.msra.mxu0 0.0
        %2453 = vmatprep.subr.mxu0 0.0
        %2454 = vmatpush1.msra.mxu0 0.0
        %2455 = vmatprep.subr.mxu0 0.0
        %2456 = vmatpush1.msra.mxu0 0.0
        %2457 = vmatprep.subr.mxu0 0.0
        %2458 = vmatpush1.msra.mxu0 0.0
        %2459 = vmatprep.subr.mxu0 0.0
        %2460 = vmatpush1.msra.mxu0 0.0
        %2461 = vmatprep.subr.mxu0 0.0
        %2462 = vmatpush1.msra.mxu0 0.0
        %2463 = vmatprep.subr.mxu0 0.0
        %2464 = vmatpush1.msra.mxu0 0.0
        %2465 = vmatprep.subr.mxu0 0.0
        %2466 = vmatpush1.msra.mxu0 0.0
        %2467 = vmatprep.subr.mxu0 0.0
        %2468 = vmatpush1.msra.mxu0 0.0
        %2469 = vmatprep.subr.mxu0 0.0
        %2470 = vmatpush1.msra.mxu0 0.0
        %2471 = vmatprep.subr.mxu0 0.0
        %2472 = vmatpush1.msra.mxu0 0.0
        %2473 = vmatprep.subr.mxu0 0.0
        %2474 = vmatpush1.msra.mxu0 0.0
        %2475 = vmatprep.subr.mxu0 0.0
        %2476 = vmatpush1.msra.mxu0 0.0
        %2477 = vmatprep.subr.mxu0 0.0
        %2478 = vmatpush1.msra.mxu0 0.0
        %2479 = vmatprep.subr.mxu0 0.0
        %2480 = vmatpush1.msra.mxu0 0.0
        %2481 = vmatprep.subr.mxu0 %v2297
        %2482 = vmatpush1.msra.mxu0 %v2295
        %2483 = vmatprep.subr.mxu0 0.0
        %2484 = vmatpush2.msra.mxu0 0.0
        %2485 = vmatprep.subr.mxu0 0.0
        %2486 = vmatpush2.msra.mxu0 0.0
        %2487 = vmatprep.subr.mxu0 0.0
        %2488 = vmatpush2.msra.mxu0 0.0
        %2489 = vmatprep.subr.mxu0 0.0
        %2490 = vmatpush2.msra.mxu0 0.0
        %2491 = vmatprep.subr.mxu0 0.0
        %2492 = vmatpush2.msra.mxu0 0.0
        %2493 = vmatprep.subr.mxu0 0.0
        %2494 = vmatpush2.msra.mxu0 0.0
        %2495 = vmatprep.subr.mxu0 0.0
        %2496 = vmatpush2.msra.mxu0 0.0
        %2497 = vmatprep.subr.mxu0 0.0
        %2498 = vmatpush2.msra.mxu0 0.0
        %2499 = vmatprep.subr.mxu0 0.0
        %2500 = vmatpush2.msra.mxu0 0.0
        %2501 = vmatprep.subr.mxu0 0.0
        %2502 = vmatpush2.msra.mxu0 0.0
        %2503 = vmatprep.subr.mxu0 0.0
        %2504 = vmatpush2.msra.mxu0 0.0
        %2505 = vmatprep.subr.mxu0 0.0
        %2506 = vmatpush2.msra.mxu0 0.0
        %2507 = vmatprep.subr.mxu0 0.0
        %2508 = vmatpush2.msra.mxu0 0.0
        %2509 = vmatprep.subr.mxu0 0.0
        %2510 = vmatpush2.msra.mxu0 0.0
        %2511 = vmatprep.subr.mxu0 0.0
        %2512 = vmatpush2.msra.mxu0 0.0
        %2513 = vmatprep.subr.mxu0 0.0
        %2514 = vmatpush2.msra.mxu0 0.0
        %2515 = vmatprep.mubr.f32.mxu0 0.0
        %2516 = vmatmul.mubr.f32.gmra.mxu0 %v2449
        %v2517 = vpop.f32.mrf.mxu0
        %v2518 = vadd.f32 %v2444, %v2517
        %v2519 = vpop.f32.mrf.mxu0
        %v2520 = vadd.f32 %v2446, %v2519
        %2521 = vdwg.mxu0
        %2522 = vmatprep.subr.mxu0 %v701
        %2523 = vmatpush1.msra.mxu0 %v700
        %2524 = vmatprep.subr.mxu0 %v699
        %2525 = vmatpush1.msra.mxu0 %v698
        %2526 = vmatprep.subr.mxu0 %v697
        %2527 = vmatpush1.msra.mxu0 %v696
        %2528 = vmatprep.subr.mxu0 %v695
        %2529 = vmatpush1.msra.mxu0 %v694
        %2530 = vmatprep.subr.mxu0 %v693
        %2531 = vmatpush1.msra.mxu0 %v692
        %2532 = vmatprep.subr.mxu0 %v691
        %2533 = vmatpush1.msra.mxu0 %v690
        %2534 = vmatprep.subr.mxu0 %v689
        %2535 = vmatpush1.msra.mxu0 %v688
        %2536 = vmatprep.subr.mxu0 %v687
        %2537 = vmatpush1.msra.mxu0 %v686
        %2538 = vmatprep.subr.mxu0 %v685
        %2539 = vmatpush1.msra.mxu0 %v684
        %2540 = vmatprep.subr.mxu0 %v683
        %2541 = vmatpush1.msra.mxu0 %v682
        %2542 = vmatprep.subr.mxu0 %v681
        %2543 = vmatpush1.msra.mxu0 %v680
        %2544 = vmatprep.subr.mxu0 %v679
        %2545 = vmatpush1.msra.mxu0 %v678
        %2546 = vmatprep.subr.mxu0 %v677
        %2547 = vmatpush1.msra.mxu0 %v676
        %2548 = vmatprep.subr.mxu0 %v675
        %2549 = vmatpush1.msra.mxu0 %v674
        %2550 = vmatprep.subr.mxu0 %v673
        %2551 = vmatpush1.msra.mxu0 %v672
        %2552 = vmatprep.subr.mxu0 %v671
        %2553 = vmatpush1.msra.mxu0 %v670
        %2554 = vmatprep.subr.mxu0 %v733
        %2555 = vmatpush2.msra.mxu0 %v732
        %2556 = vmatprep.subr.mxu0 %v731
        %2557 = vmatpush2.msra.mxu0 %v730
        %2558 = vmatprep.subr.mxu0 %v729
        %2559 = vmatpush2.msra.mxu0 %v728
        %2560 = vmatprep.subr.mxu0 %v727
        %2561 = vmatpush2.msra.mxu0 %v726
        %2562 = vmatprep.subr.mxu0 %v725
        %2563 = vmatpush2.msra.mxu0 %v724
        %2564 = vmatprep.subr.mxu0 %v723
        %2565 = vmatpush2.msra.mxu0 %v722
        %2566 = vmatprep.subr.mxu0 %v721
        %2567 = vmatpush2.msra.mxu0 %v720
        %2568 = vmatprep.subr.mxu0 %v719
        %2569 = vmatpush2.msra.mxu0 %v718
        %2570 = vmatprep.subr.mxu0 %v717
        %2571 = vmatpush2.msra.mxu0 %v716
        %2572 = vmatprep.subr.mxu0 %v715
        %2573 = vmatpush2.msra.mxu0 %v714
        %2574 = vmatprep.subr.mxu0 %v713
        %2575 = vmatpush2.msra.mxu0 %v712
        %2576 = vmatprep.subr.mxu0 %v711
        %2577 = vmatpush2.msra.mxu0 %v710
        %2578 = vmatprep.subr.mxu0 %v709
        %2579 = vmatpush2.msra.mxu0 %v708
        %2580 = vmatprep.subr.mxu0 %v707
        %2581 = vmatpush2.msra.mxu0 %v706
        %2582 = vmatprep.subr.mxu0 %v705
        %2583 = vmatpush2.msra.mxu0 %v704
        %2584 = vmatprep.subr.mxu0 %v703
        %2585 = vmatpush2.msra.mxu0 %v702
        %2586 = vmatprep.mubr.f32.mxu0 %v2227
        %2587 = vmatmul.mubr.f32.gmra.mxu0 %v2226
        %v2588 = vpop.f32.mrf.mxu0
        %v2589 = vadd.f32 0.0, %v2588
        %v2590 = vpop.f32.mrf.mxu0
        %v2591 = vadd.f32 0.0, %v2590
        %2592 = vdwg.mxu0
        %s2593 = scalar_lea.vmem %s2, 16
        %v2594 = vld [vmem:[%s2593] sm:$0xff]
        %v2596 = vsel %vm2373, %v2594, 0
        %2598 = vmatprep.subr.mxu0 0.0
        %2599 = vmatpush1.msra.mxu0 0.0
        %2600 = vmatprep.subr.mxu0 0.0
        %2601 = vmatpush1.msra.mxu0 0.0
        %2602 = vmatprep.subr.mxu0 0.0
        %2603 = vmatpush1.msra.mxu0 0.0
        %2604 = vmatprep.subr.mxu0 0.0
        %2605 = vmatpush1.msra.mxu0 0.0
        %2606 = vmatprep.subr.mxu0 0.0
        %2607 = vmatpush1.msra.mxu0 0.0
        %2608 = vmatprep.subr.mxu0 0.0
        %2609 = vmatpush1.msra.mxu0 0.0
        %2610 = vmatprep.subr.mxu0 0.0
        %2611 = vmatpush1.msra.mxu0 0.0
        %2612 = vmatprep.subr.mxu0 0.0
        %2613 = vmatpush1.msra.mxu0 0.0
        %2614 = vmatprep.subr.mxu0 0.0
        %2615 = vmatpush1.msra.mxu0 0.0
        %2616 = vmatprep.subr.mxu0 0.0
        %2617 = vmatpush1.msra.mxu0 0.0
        %2618 = vmatprep.subr.mxu0 0.0
        %2619 = vmatpush1.msra.mxu0 0.0
        %2620 = vmatprep.subr.mxu0 0.0
        %2621 = vmatpush1.msra.mxu0 0.0
        %2622 = vmatprep.subr.mxu0 0.0
        %2623 = vmatpush1.msra.mxu0 0.0
        %2624 = vmatprep.subr.mxu0 0.0
        %2625 = vmatpush1.msra.mxu0 0.0
        %2626 = vmatprep.subr.mxu0 0.0
        %2627 = vmatpush1.msra.mxu0 0.0
        %2628 = vmatprep.subr.mxu0 %v2591
        %2629 = vmatpush1.msra.mxu0 %v2589
        %2630 = vmatprep.subr.mxu0 0.0
        %2631 = vmatpush2.msra.mxu0 0.0
        %2632 = vmatprep.subr.mxu0 0.0
        %2633 = vmatpush2.msra.mxu0 0.0
        %2634 = vmatprep.subr.mxu0 0.0
        %2635 = vmatpush2.msra.mxu0 0.0
        %2636 = vmatprep.subr.mxu0 0.0
        %2637 = vmatpush2.msra.mxu0 0.0
        %2638 = vmatprep.subr.mxu0 0.0
        %2639 = vmatpush2.msra.mxu0 0.0
        %2640 = vmatprep.subr.mxu0 0.0
        %2641 = vmatpush2.msra.mxu0 0.0
        %2642 = vmatprep.subr.mxu0 0.0
        %2643 = vmatpush2.msra.mxu0 0.0
        %2644 = vmatprep.subr.mxu0 0.0
        %2645 = vmatpush2.msra.mxu0 0.0
        %2646 = vmatprep.subr.mxu0 0.0
        %2647 = vmatpush2.msra.mxu0 0.0
        %2648 = vmatprep.subr.mxu0 0.0
        %2649 = vmatpush2.msra.mxu0 0.0
        %2650 = vmatprep.subr.mxu0 0.0
        %2651 = vmatpush2.msra.mxu0 0.0
        %2652 = vmatprep.subr.mxu0 0.0
        %2653 = vmatpush2.msra.mxu0 0.0
        %2654 = vmatprep.subr.mxu0 0.0
        %2655 = vmatpush2.msra.mxu0 0.0
        %2656 = vmatprep.subr.mxu0 0.0
        %2657 = vmatpush2.msra.mxu0 0.0
        %2658 = vmatprep.subr.mxu0 0.0
        %2659 = vmatpush2.msra.mxu0 0.0
        %2660 = vmatprep.subr.mxu0 0.0
        %2661 = vmatpush2.msra.mxu0 0.0
        %2662 = vmatprep.mubr.f32.mxu0 0.0
        %2663 = vmatmul.mubr.f32.gmra.mxu0 %v2596
        %v2664 = vpop.f32.mrf.mxu0
        %v2665 = vadd.f32 0.0, %v2664
        %v2666 = vpop.f32.mrf.mxu0
        %v2667 = vadd.f32 0.0, %v2666
        %2668 = vdwg.mxu0
        %v2669 = vadd.f32 %v2518, %v2665
        %v2670 = vadd.f32 %v2520, %v2667
        %2671 = vmatprep.subr.mxu0 %v921
        %2672 = vmatpush1.msra.mxu0 %v920
        %2673 = vmatprep.subr.mxu0 %v919
        %2674 = vmatpush1.msra.mxu0 %v918
        %2675 = vmatprep.subr.mxu0 %v917
        %2676 = vmatpush1.msra.mxu0 %v916
        %2677 = vmatprep.subr.mxu0 %v915
        %2678 = vmatpush1.msra.mxu0 %v914
        %2679 = vmatprep.subr.mxu0 %v913
        %2680 = vmatpush1.msra.mxu0 %v912
        %2681 = vmatprep.subr.mxu0 %v911
        %2682 = vmatpush1.msra.mxu0 %v910
        %2683 = vmatprep.subr.mxu0 %v909
        %2684 = vmatpush1.msra.mxu0 %v908
        %2685 = vmatprep.subr.mxu0 %v907
        %2686 = vmatpush1.msra.mxu0 %v906
        %2687 = vmatprep.subr.mxu0 %v905
        %2688 = vmatpush1.msra.mxu0 %v904
        %2689 = vmatprep.subr.mxu0 %v903
        %2690 = vmatpush1.msra.mxu0 %v902
        %2691 = vmatprep.subr.mxu0 %v901
        %2692 = vmatpush1.msra.mxu0 %v900
        %2693 = vmatprep.subr.mxu0 %v899
        %2694 = vmatpush1.msra.mxu0 %v898
        %2695 = vmatprep.subr.mxu0 %v897
        %2696 = vmatpush1.msra.mxu0 %v896
        %2697 = vmatprep.subr.mxu0 %v895
        %2698 = vmatpush1.msra.mxu0 %v894
        %2699 = vmatprep.subr.mxu0 %v893
        %2700 = vmatpush1.msra.mxu0 %v892
        %2701 = vmatprep.subr.mxu0 %v891
        %2702 = vmatpush1.msra.mxu0 %v890
        %2703 = vmatprep.subr.mxu0 %v953
        %2704 = vmatpush2.msra.mxu0 %v952
        %2705 = vmatprep.subr.mxu0 %v951
        %2706 = vmatpush2.msra.mxu0 %v950
        %2707 = vmatprep.subr.mxu0 %v949
        %2708 = vmatpush2.msra.mxu0 %v948
        %2709 = vmatprep.subr.mxu0 %v947
        %2710 = vmatpush2.msra.mxu0 %v946
        %2711 = vmatprep.subr.mxu0 %v945
        %2712 = vmatpush2.msra.mxu0 %v944
        %2713 = vmatprep.subr.mxu0 %v943
        %2714 = vmatpush2.msra.mxu0 %v942
        %2715 = vmatprep.subr.mxu0 %v941
        %2716 = vmatpush2.msra.mxu0 %v940
        %2717 = vmatprep.subr.mxu0 %v939
        %2718 = vmatpush2.msra.mxu0 %v938
        %2719 = vmatprep.subr.mxu0 %v937
        %2720 = vmatpush2.msra.mxu0 %v936
        %2721 = vmatprep.subr.mxu0 %v935
        %2722 = vmatpush2.msra.mxu0 %v934
        %2723 = vmatprep.subr.mxu0 %v933
        %2724 = vmatpush2.msra.mxu0 %v932
        %2725 = vmatprep.subr.mxu0 %v931
        %2726 = vmatpush2.msra.mxu0 %v930
        %2727 = vmatprep.subr.mxu0 %v929
        %2728 = vmatpush2.msra.mxu0 %v928
        %2729 = vmatprep.subr.mxu0 %v927
        %2730 = vmatpush2.msra.mxu0 %v926
        %2731 = vmatprep.subr.mxu0 %v925
        %2732 = vmatpush2.msra.mxu0 %v924
        %2733 = vmatprep.subr.mxu0 %v923
        %2734 = vmatpush2.msra.mxu0 %v922
        %2735 = vmatprep.mubr.f32.mxu0 %v2227
        %2736 = vmatmul.mubr.f32.gmra.mxu0 %v2226
        %v2737 = vpop.f32.mrf.mxu0
        %v2738 = vadd.f32 0.0, %v2737
        %v2739 = vpop.f32.mrf.mxu0
        %v2740 = vadd.f32 0.0, %v2739
        %2741 = vdwg.mxu0
        %s2742 = scalar_lea.vmem %s2, 24
        %v2743 = vld [vmem:[%s2742] sm:$0xff]
        %v2745 = vsel %vm2373, %v2743, 0
        %2747 = vmatprep.subr.mxu0 0.0
        %2748 = vmatpush1.msra.mxu0 0.0
        %2749 = vmatprep.subr.mxu0 0.0
        %2750 = vmatpush1.msra.mxu0 0.0
        %2751 = vmatprep.subr.mxu0 0.0
        %2752 = vmatpush1.msra.mxu0 0.0
        %2753 = vmatprep.subr.mxu0 0.0
        %2754 = vmatpush1.msra.mxu0 0.0
        %2755 = vmatprep.subr.mxu0 0.0
        %2756 = vmatpush1.msra.mxu0 0.0
        %2757 = vmatprep.subr.mxu0 0.0
        %2758 = vmatpush1.msra.mxu0 0.0
        %2759 = vmatprep.subr.mxu0 0.0
        %2760 = vmatpush1.msra.mxu0 0.0
        %2761 = vmatprep.subr.mxu0 0.0
        %2762 = vmatpush1.msra.mxu0 0.0
        %2763 = vmatprep.subr.mxu0 0.0
        %2764 = vmatpush1.msra.mxu0 0.0
        %2765 = vmatprep.subr.mxu0 0.0
        %2766 = vmatpush1.msra.mxu0 0.0
        %2767 = vmatprep.subr.mxu0 0.0
        %2768 = vmatpush1.msra.mxu0 0.0
        %2769 = vmatprep.subr.mxu0 0.0
        %2770 = vmatpush1.msra.mxu0 0.0
        %2771 = vmatprep.subr.mxu0 0.0
        %2772 = vmatpush1.msra.mxu0 0.0
        %2773 = vmatprep.subr.mxu0 0.0
        %2774 = vmatpush1.msra.mxu0 0.0
        %2775 = vmatprep.subr.mxu0 0.0
        %2776 = vmatpush1.msra.mxu0 0.0
        %2777 = vmatprep.subr.mxu0 %v2740
        %2778 = vmatpush1.msra.mxu0 %v2738
        %2779 = vmatprep.subr.mxu0 0.0
        %2780 = vmatpush2.msra.mxu0 0.0
        %2781 = vmatprep.subr.mxu0 0.0
        %2782 = vmatpush2.msra.mxu0 0.0
        %2783 = vmatprep.subr.mxu0 0.0
        %2784 = vmatpush2.msra.mxu0 0.0
        %2785 = vmatprep.subr.mxu0 0.0
        %2786 = vmatpush2.msra.mxu0 0.0
        %2787 = vmatprep.subr.mxu0 0.0
        %2788 = vmatpush2.msra.mxu0 0.0
        %2789 = vmatprep.subr.mxu0 0.0
        %2790 = vmatpush2.msra.mxu0 0.0
        %2791 = vmatprep.subr.mxu0 0.0
        %2792 = vmatpush2.msra.mxu0 0.0
        %2793 = vmatprep.subr.mxu0 0.0
        %2794 = vmatpush2.msra.mxu0 0.0
        %2795 = vmatprep.subr.mxu0 0.0
        %2796 = vmatpush2.msra.mxu0 0.0
        %2797 = vmatprep.subr.mxu0 0.0
        %2798 = vmatpush2.msra.mxu0 0.0
        %2799 = vmatprep.subr.mxu0 0.0
        %2800 = vmatpush2.msra.mxu0 0.0
        %2801 = vmatprep.subr.mxu0 0.0
        %2802 = vmatpush2.msra.mxu0 0.0
        %2803 = vmatprep.subr.mxu0 0.0
        %2804 = vmatpush2.msra.mxu0 0.0
        %2805 = vmatprep.subr.mxu0 0.0
        %2806 = vmatpush2.msra.mxu0 0.0
        %2807 = vmatprep.subr.mxu0 0.0
        %2808 = vmatpush2.msra.mxu0 0.0
        %2809 = vmatprep.subr.mxu0 0.0
        %2810 = vmatpush2.msra.mxu0 0.0
        %2811 = vmatprep.mubr.f32.mxu0 0.0
        %2812 = vmatmul.mubr.f32.gmra.mxu0 %v2745
        %v2813 = vpop.f32.mrf.mxu0
        %v2814 = vadd.f32 0.0, %v2813
        %v2815 = vpop.f32.mrf.mxu0
        %v2816 = vadd.f32 0.0, %v2815
        %2817 = vdwg.mxu0
        %v2818 = vadd.f32 %v2669, %v2814
        %v2819 = vadd.f32 %v2670, %v2816
        %2820 = vmatprep.subr.mxu0 %v1141
        %2821 = vmatpush1.msra.mxu0 %v1140
        %2822 = vmatprep.subr.mxu0 %v1139
        %2823 = vmatpush1.msra.mxu0 %v1138
        %2824 = vmatprep.subr.mxu0 %v1137
        %2825 = vmatpush1.msra.mxu0 %v1136
        %2826 = vmatprep.subr.mxu0 %v1135
        %2827 = vmatpush1.msra.mxu0 %v1134
        %2828 = vmatprep.subr.mxu0 %v1133
        %2829 = vmatpush1.msra.mxu0 %v1132
        %2830 = vmatprep.subr.mxu0 %v1131
        %2831 = vmatpush1.msra.mxu0 %v1130
        %2832 = vmatprep.subr.mxu0 %v1129
        %2833 = vmatpush1.msra.mxu0 %v1128
        %2834 = vmatprep.subr.mxu0 %v1127
        %2835 = vmatpush1.msra.mxu0 %v1126
        %2836 = vmatprep.subr.mxu0 %v1125
        %2837 = vmatpush1.msra.mxu0 %v1124
        %2838 = vmatprep.subr.mxu0 %v1123
        %2839 = vmatpush1.msra.mxu0 %v1122
        %2840 = vmatprep.subr.mxu0 %v1121
        %2841 = vmatpush1.msra.mxu0 %v1120
        %2842 = vmatprep.subr.mxu0 %v1119
        %2843 = vmatpush1.msra.mxu0 %v1118
        %2844 = vmatprep.subr.mxu0 %v1117
        %2845 = vmatpush1.msra.mxu0 %v1116
        %2846 = vmatprep.subr.mxu0 %v1115
        %2847 = vmatpush1.msra.mxu0 %v1114
        %2848 = vmatprep.subr.mxu0 %v1113
        %2849 = vmatpush1.msra.mxu0 %v1112
        %2850 = vmatprep.subr.mxu0 %v1111
        %2851 = vmatpush1.msra.mxu0 %v1110
        %2852 = vmatprep.subr.mxu0 %v1173
        %2853 = vmatpush2.msra.mxu0 %v1172
        %2854 = vmatprep.subr.mxu0 %v1171
        %2855 = vmatpush2.msra.mxu0 %v1170
        %2856 = vmatprep.subr.mxu0 %v1169
        %2857 = vmatpush2.msra.mxu0 %v1168
        %2858 = vmatprep.subr.mxu0 %v1167
        %2859 = vmatpush2.msra.mxu0 %v1166
        %2860 = vmatprep.subr.mxu0 %v1165
        %2861 = vmatpush2.msra.mxu0 %v1164
        %2862 = vmatprep.subr.mxu0 %v1163
        %2863 = vmatpush2.msra.mxu0 %v1162
        %2864 = vmatprep.subr.mxu0 %v1161
        %2865 = vmatpush2.msra.mxu0 %v1160
        %2866 = vmatprep.subr.mxu0 %v1159
        %2867 = vmatpush2.msra.mxu0 %v1158
        %2868 = vmatprep.subr.mxu0 %v1157
        %2869 = vmatpush2.msra.mxu0 %v1156
        %2870 = vmatprep.subr.mxu0 %v1155
        %2871 = vmatpush2.msra.mxu0 %v1154
        %2872 = vmatprep.subr.mxu0 %v1153
        %2873 = vmatpush2.msra.mxu0 %v1152
        %2874 = vmatprep.subr.mxu0 %v1151
        %2875 = vmatpush2.msra.mxu0 %v1150
        %2876 = vmatprep.subr.mxu0 %v1149
        %2877 = vmatpush2.msra.mxu0 %v1148
        %2878 = vmatprep.subr.mxu0 %v1147
        %2879 = vmatpush2.msra.mxu0 %v1146
        %2880 = vmatprep.subr.mxu0 %v1145
        %2881 = vmatpush2.msra.mxu0 %v1144
        %2882 = vmatprep.subr.mxu0 %v1143
        %2883 = vmatpush2.msra.mxu0 %v1142
        %2884 = vmatprep.mubr.f32.mxu0 %v2227
        %2885 = vmatmul.mubr.f32.gmra.mxu0 %v2226
        %v2886 = vpop.f32.mrf.mxu0
        %v2887 = vadd.f32 0.0, %v2886
        %v2888 = vpop.f32.mrf.mxu0
        %v2889 = vadd.f32 0.0, %v2888
        %2890 = vdwg.mxu0
        %s2891 = scalar_lea.vmem %s2, 32
        %v2892 = vld [vmem:[%s2891] sm:$0xff]
        %v2894 = vsel %vm2373, %v2892, 0
        %2896 = vmatprep.subr.mxu0 0.0
        %2897 = vmatpush1.msra.mxu0 0.0
        %2898 = vmatprep.subr.mxu0 0.0
        %2899 = vmatpush1.msra.mxu0 0.0
        %2900 = vmatprep.subr.mxu0 0.0
        %2901 = vmatpush1.msra.mxu0 0.0
        %2902 = vmatprep.subr.mxu0 0.0
        %2903 = vmatpush1.msra.mxu0 0.0
        %2904 = vmatprep.subr.mxu0 0.0
        %2905 = vmatpush1.msra.mxu0 0.0
        %2906 = vmatprep.subr.mxu0 0.0
        %2907 = vmatpush1.msra.mxu0 0.0
        %2908 = vmatprep.subr.mxu0 0.0
        %2909 = vmatpush1.msra.mxu0 0.0
        %2910 = vmatprep.subr.mxu0 0.0
        %2911 = vmatpush1.msra.mxu0 0.0
        %2912 = vmatprep.subr.mxu0 0.0
        %2913 = vmatpush1.msra.mxu0 0.0
        %2914 = vmatprep.subr.mxu0 0.0
        %2915 = vmatpush1.msra.mxu0 0.0
        %2916 = vmatprep.subr.mxu0 0.0
        %2917 = vmatpush1.msra.mxu0 0.0
        %2918 = vmatprep.subr.mxu0 0.0
        %2919 = vmatpush1.msra.mxu0 0.0
        %2920 = vmatprep.subr.mxu0 0.0
        %2921 = vmatpush1.msra.mxu0 0.0
        %2922 = vmatprep.subr.mxu0 0.0
        %2923 = vmatpush1.msra.mxu0 0.0
        %2924 = vmatprep.subr.mxu0 0.0
        %2925 = vmatpush1.msra.mxu0 0.0
        %2926 = vmatprep.subr.mxu0 %v2889
        %2927 = vmatpush1.msra.mxu0 %v2887
        %2928 = vmatprep.subr.mxu0 0.0
        %2929 = vmatpush2.msra.mxu0 0.0
        %2930 = vmatprep.subr.mxu0 0.0
        %2931 = vmatpush2.msra.mxu0 0.0
        %2932 = vmatprep.subr.mxu0 0.0
        %2933 = vmatpush2.msra.mxu0 0.0
        %2934 = vmatprep.subr.mxu0 0.0
        %2935 = vmatpush2.msra.mxu0 0.0
        %2936 = vmatprep.subr.mxu0 0.0
        %2937 = vmatpush2.msra.mxu0 0.0
        %2938 = vmatprep.subr.mxu0 0.0
        %2939 = vmatpush2.msra.mxu0 0.0
        %2940 = vmatprep.subr.mxu0 0.0
        %2941 = vmatpush2.msra.mxu0 0.0
        %2942 = vmatprep.subr.mxu0 0.0
        %2943 = vmatpush2.msra.mxu0 0.0
        %2944 = vmatprep.subr.mxu0 0.0
        %2945 = vmatpush2.msra.mxu0 0.0
        %2946 = vmatprep.subr.mxu0 0.0
        %2947 = vmatpush2.msra.mxu0 0.0
        %2948 = vmatprep.subr.mxu0 0.0
        %2949 = vmatpush2.msra.mxu0 0.0
        %2950 = vmatprep.subr.mxu0 0.0
        %2951 = vmatpush2.msra.mxu0 0.0
        %2952 = vmatprep.subr.mxu0 0.0
        %2953 = vmatpush2.msra.mxu0 0.0
        %2954 = vmatprep.subr.mxu0 0.0
        %2955 = vmatpush2.msra.mxu0 0.0
        %2956 = vmatprep.subr.mxu0 0.0
        %2957 = vmatpush2.msra.mxu0 0.0
        %2958 = vmatprep.subr.mxu0 0.0
        %2959 = vmatpush2.msra.mxu0 0.0
        %2960 = vmatprep.mubr.f32.mxu0 0.0
        %2961 = vmatmul.mubr.f32.gmra.mxu0 %v2894
        %v2962 = vpop.f32.mrf.mxu0
        %v2963 = vadd.f32 0.0, %v2962
        %v2964 = vpop.f32.mrf.mxu0
        %v2965 = vadd.f32 0.0, %v2964
        %2966 = vdwg.mxu0
        %v2967 = vadd.f32 %v2818, %v2963
        %v2968 = vadd.f32 %v2819, %v2965
        %2969 = vmatprep.subr.mxu0 %v1361
        %2970 = vmatpush1.msra.mxu0 %v1360
        %2971 = vmatprep.subr.mxu0 %v1359
        %2972 = vmatpush1.msra.mxu0 %v1358
        %2973 = vmatprep.subr.mxu0 %v1357
        %2974 = vmatpush1.msra.mxu0 %v1356
        %2975 = vmatprep.subr.mxu0 %v1355
        %2976 = vmatpush1.msra.mxu0 %v1354
        %2977 = vmatprep.subr.mxu0 %v1353
        %2978 = vmatpush1.msra.mxu0 %v1352
        %2979 = vmatprep.subr.mxu0 %v1351
        %2980 = vmatpush1.msra.mxu0 %v1350
        %2981 = vmatprep.subr.mxu0 %v1349
        %2982 = vmatpush1.msra.mxu0 %v1348
        %2983 = vmatprep.subr.mxu0 %v1347
        %2984 = vmatpush1.msra.mxu0 %v1346
        %2985 = vmatprep.subr.mxu0 %v1345
        %2986 = vmatpush1.msra.mxu0 %v1344
        %2987 = vmatprep.subr.mxu0 %v1343
        %2988 = vmatpush1.msra.mxu0 %v1342
        %2989 = vmatprep.subr.mxu0 %v1341
        %2990 = vmatpush1.msra.mxu0 %v1340
        %2991 = vmatprep.subr.mxu0 %v1339
        %2992 = vmatpush1.msra.mxu0 %v1338
        %2993 = vmatprep.subr.mxu0 %v1337
        %2994 = vmatpush1.msra.mxu0 %v1336
        %2995 = vmatprep.subr.mxu0 %v1335
        %2996 = vmatpush1.msra.mxu0 %v1334
        %2997 = vmatprep.subr.mxu0 %v1333
        %2998 = vmatpush1.msra.mxu0 %v1332
        %2999 = vmatprep.subr.mxu0 %v1331
        %3000 = vmatpush1.msra.mxu0 %v1330
        %3001 = vmatprep.subr.mxu0 %v1393
        %3002 = vmatpush2.msra.mxu0 %v1392
        %3003 = vmatprep.subr.mxu0 %v1391
        %3004 = vmatpush2.msra.mxu0 %v1390
        %3005 = vmatprep.subr.mxu0 %v1389
        %3006 = vmatpush2.msra.mxu0 %v1388
        %3007 = vmatprep.subr.mxu0 %v1387
        %3008 = vmatpush2.msra.mxu0 %v1386
        %3009 = vmatprep.subr.mxu0 %v1385
        %3010 = vmatpush2.msra.mxu0 %v1384
        %3011 = vmatprep.subr.mxu0 %v1383
        %3012 = vmatpush2.msra.mxu0 %v1382
        %3013 = vmatprep.subr.mxu0 %v1381
        %3014 = vmatpush2.msra.mxu0 %v1380
        %3015 = vmatprep.subr.mxu0 %v1379
        %3016 = vmatpush2.msra.mxu0 %v1378
        %3017 = vmatprep.subr.mxu0 %v1377
        %3018 = vmatpush2.msra.mxu0 %v1376
        %3019 = vmatprep.subr.mxu0 %v1375
        %3020 = vmatpush2.msra.mxu0 %v1374
        %3021 = vmatprep.subr.mxu0 %v1373
        %3022 = vmatpush2.msra.mxu0 %v1372
        %3023 = vmatprep.subr.mxu0 %v1371
        %3024 = vmatpush2.msra.mxu0 %v1370
        %3025 = vmatprep.subr.mxu0 %v1369
        %3026 = vmatpush2.msra.mxu0 %v1368
        %3027 = vmatprep.subr.mxu0 %v1367
        %3028 = vmatpush2.msra.mxu0 %v1366
        %3029 = vmatprep.subr.mxu0 %v1365
        %3030 = vmatpush2.msra.mxu0 %v1364
        %3031 = vmatprep.subr.mxu0 %v1363
        %3032 = vmatpush2.msra.mxu0 %v1362
        %3033 = vmatprep.mubr.f32.mxu0 %v2227
        %3034 = vmatmul.mubr.f32.gmra.mxu0 %v2226
        %v3035 = vpop.f32.mrf.mxu0
        %v3036 = vadd.f32 0.0, %v3035
        %v3037 = vpop.f32.mrf.mxu0
        %v3038 = vadd.f32 0.0, %v3037
        %3039 = vdwg.mxu0
        %s3040 = scalar_lea.vmem %s2, 40
        %v3041 = vld [vmem:[%s3040] sm:$0xff]
        %v3043 = vsel %vm2373, %v3041, 0
        %3045 = vmatprep.subr.mxu0 0.0
        %3046 = vmatpush1.msra.mxu0 0.0
        %3047 = vmatprep.subr.mxu0 0.0
        %3048 = vmatpush1.msra.mxu0 0.0
        %3049 = vmatprep.subr.mxu0 0.0
        %3050 = vmatpush1.msra.mxu0 0.0
        %3051 = vmatprep.subr.mxu0 0.0
        %3052 = vmatpush1.msra.mxu0 0.0
        %3053 = vmatprep.subr.mxu0 0.0
        %3054 = vmatpush1.msra.mxu0 0.0
        %3055 = vmatprep.subr.mxu0 0.0
        %3056 = vmatpush1.msra.mxu0 0.0
        %3057 = vmatprep.subr.mxu0 0.0
        %3058 = vmatpush1.msra.mxu0 0.0
        %3059 = vmatprep.subr.mxu0 0.0
        %3060 = vmatpush1.msra.mxu0 0.0
        %3061 = vmatprep.subr.mxu0 0.0
        %3062 = vmatpush1.msra.mxu0 0.0
        %3063 = vmatprep.subr.mxu0 0.0
        %3064 = vmatpush1.msra.mxu0 0.0
        %3065 = vmatprep.subr.mxu0 0.0
        %3066 = vmatpush1.msra.mxu0 0.0
        %3067 = vmatprep.subr.mxu0 0.0
        %3068 = vmatpush1.msra.mxu0 0.0
        %3069 = vmatprep.subr.mxu0 0.0
        %3070 = vmatpush1.msra.mxu0 0.0
        %3071 = vmatprep.subr.mxu0 0.0
        %3072 = vmatpush1.msra.mxu0 0.0
        %3073 = vmatprep.subr.mxu0 0.0
        %3074 = vmatpush1.msra.mxu0 0.0
        %3075 = vmatprep.subr.mxu0 %v3038
        %3076 = vmatpush1.msra.mxu0 %v3036
        %3077 = vmatprep.subr.mxu0 0.0
        %3078 = vmatpush2.msra.mxu0 0.0
        %3079 = vmatprep.subr.mxu0 0.0
        %3080 = vmatpush2.msra.mxu0 0.0
        %3081 = vmatprep.subr.mxu0 0.0
        %3082 = vmatpush2.msra.mxu0 0.0
        %3083 = vmatprep.subr.mxu0 0.0
        %3084 = vmatpush2.msra.mxu0 0.0
        %3085 = vmatprep.subr.mxu0 0.0
        %3086 = vmatpush2.msra.mxu0 0.0
        %3087 = vmatprep.subr.mxu0 0.0
        %3088 = vmatpush2.msra.mxu0 0.0
        %3089 = vmatprep.subr.mxu0 0.0
        %3090 = vmatpush2.msra.mxu0 0.0
        %3091 = vmatprep.subr.mxu0 0.0
        %3092 = vmatpush2.msra.mxu0 0.0
        %3093 = vmatprep.subr.mxu0 0.0
        %3094 = vmatpush2.msra.mxu0 0.0
        %3095 = vmatprep.subr.mxu0 0.0
        %3096 = vmatpush2.msra.mxu0 0.0
        %3097 = vmatprep.subr.mxu0 0.0
        %3098 = vmatpush2.msra.mxu0 0.0
        %3099 = vmatprep.subr.mxu0 0.0
        %3100 = vmatpush2.msra.mxu0 0.0
        %3101 = vmatprep.subr.mxu0 0.0
        %3102 = vmatpush2.msra.mxu0 0.0
        %3103 = vmatprep.subr.mxu0 0.0
        %3104 = vmatpush2.msra.mxu0 0.0
        %3105 = vmatprep.subr.mxu0 0.0
        %3106 = vmatpush2.msra.mxu0 0.0
        %3107 = vmatprep.subr.mxu0 0.0
        %3108 = vmatpush2.msra.mxu0 0.0
        %3109 = vmatprep.mubr.f32.mxu0 0.0
        %3110 = vmatmul.mubr.f32.gmra.mxu0 %v3043
        %v3111 = vpop.f32.mrf.mxu0
        %v3112 = vadd.f32 0.0, %v3111
        %v3113 = vpop.f32.mrf.mxu0
        %v3114 = vadd.f32 0.0, %v3113
        %3115 = vdwg.mxu0
        %v3116 = vadd.f32 %v2967, %v3112
        %v3117 = vadd.f32 %v2968, %v3114
        %3118 = vmatprep.subr.mxu0 %v1581
        %3119 = vmatpush1.msra.mxu0 %v1580
        %3120 = vmatprep.subr.mxu0 %v1579
        %3121 = vmatpush1.msra.mxu0 %v1578
        %3122 = vmatprep.subr.mxu0 %v1577
        %3123 = vmatpush1.msra.mxu0 %v1576
        %3124 = vmatprep.subr.mxu0 %v1575
        %3125 = vmatpush1.msra.mxu0 %v1574
        %3126 = vmatprep.subr.mxu0 %v1573
        %3127 = vmatpush1.msra.mxu0 %v1572
        %3128 = vmatprep.subr.mxu0 %v1571
        %3129 = vmatpush1.msra.mxu0 %v1570
        %3130 = vmatprep.subr.mxu0 %v1569
        %3131 = vmatpush1.msra.mxu0 %v1568
        %3132 = vmatprep.subr.mxu0 %v1567
        %3133 = vmatpush1.msra.mxu0 %v1566
        %3134 = vmatprep.subr.mxu0 %v1565
        %3135 = vmatpush1.msra.mxu0 %v1564
        %3136 = vmatprep.subr.mxu0 %v1563
        %3137 = vmatpush1.msra.mxu0 %v1562
        %3138 = vmatprep.subr.mxu0 %v1561
        %3139 = vmatpush1.msra.mxu0 %v1560
        %3140 = vmatprep.subr.mxu0 %v1559
        %3141 = vmatpush1.msra.mxu0 %v1558
        %3142 = vmatprep.subr.mxu0 %v1557
        %3143 = vmatpush1.msra.mxu0 %v1556
        %3144 = vmatprep.subr.mxu0 %v1555
        %3145 = vmatpush1.msra.mxu0 %v1554
        %3146 = vmatprep.subr.mxu0 %v1553
        %3147 = vmatpush1.msra.mxu0 %v1552
        %3148 = vmatprep.subr.mxu0 %v1551
        %3149 = vmatpush1.msra.mxu0 %v1550
        %3150 = vmatprep.subr.mxu0 %v1613
        %3151 = vmatpush2.msra.mxu0 %v1612
        %3152 = vmatprep.subr.mxu0 %v1611
        %3153 = vmatpush2.msra.mxu0 %v1610
        %3154 = vmatprep.subr.mxu0 %v1609
        %3155 = vmatpush2.msra.mxu0 %v1608
        %3156 = vmatprep.subr.mxu0 %v1607
        %3157 = vmatpush2.msra.mxu0 %v1606
        %3158 = vmatprep.subr.mxu0 %v1605
        %3159 = vmatpush2.msra.mxu0 %v1604
        %3160 = vmatprep.subr.mxu0 %v1603
        %3161 = vmatpush2.msra.mxu0 %v1602
        %3162 = vmatprep.subr.mxu0 %v1601
        %3163 = vmatpush2.msra.mxu0 %v1600
        %3164 = vmatprep.subr.mxu0 %v1599
        %3165 = vmatpush2.msra.mxu0 %v1598
        %3166 = vmatprep.subr.mxu0 %v1597
        %3167 = vmatpush2.msra.mxu0 %v1596
        %3168 = vmatprep.subr.mxu0 %v1595
        %3169 = vmatpush2.msra.mxu0 %v1594
        %3170 = vmatprep.subr.mxu0 %v1593
        %3171 = vmatpush2.msra.mxu0 %v1592
        %3172 = vmatprep.subr.mxu0 %v1591
        %3173 = vmatpush2.msra.mxu0 %v1590
        %3174 = vmatprep.subr.mxu0 %v1589
        %3175 = vmatpush2.msra.mxu0 %v1588
        %3176 = vmatprep.subr.mxu0 %v1587
        %3177 = vmatpush2.msra.mxu0 %v1586
        %3178 = vmatprep.subr.mxu0 %v1585
        %3179 = vmatpush2.msra.mxu0 %v1584
        %3180 = vmatprep.subr.mxu0 %v1583
        %3181 = vmatpush2.msra.mxu0 %v1582
        %3182 = vmatprep.mubr.f32.mxu0 %v2227
        %3183 = vmatmul.mubr.f32.gmra.mxu0 %v2226
        %v3184 = vpop.f32.mrf.mxu0
        %v3185 = vadd.f32 0.0, %v3184
        %v3186 = vpop.f32.mrf.mxu0
        %v3187 = vadd.f32 0.0, %v3186
        %3188 = vdwg.mxu0
        %s3189 = scalar_lea.vmem %s2, 48
        %v3190 = vld [vmem:[%s3189] sm:$0xff]
        %v3192 = vsel %vm2373, %v3190, 0
        %3194 = vmatprep.subr.mxu0 0.0
        %3195 = vmatpush1.msra.mxu0 0.0
        %3196 = vmatprep.subr.mxu0 0.0
        %3197 = vmatpush1.msra.mxu0 0.0
        %3198 = vmatprep.subr.mxu0 0.0
        %3199 = vmatpush1.msra.mxu0 0.0
        %3200 = vmatprep.subr.mxu0 0.0
        %3201 = vmatpush1.msra.mxu0 0.0
        %3202 = vmatprep.subr.mxu0 0.0
        %3203 = vmatpush1.msra.mxu0 0.0
        %3204 = vmatprep.subr.mxu0 0.0
        %3205 = vmatpush1.msra.mxu0 0.0
        %3206 = vmatprep.subr.mxu0 0.0
        %3207 = vmatpush1.msra.mxu0 0.0
        %3208 = vmatprep.subr.mxu0 0.0
        %3209 = vmatpush1.msra.mxu0 0.0
        %3210 = vmatprep.subr.mxu0 0.0
        %3211 = vmatpush1.msra.mxu0 0.0
        %3212 = vmatprep.subr.mxu0 0.0
        %3213 = vmatpush1.msra.mxu0 0.0
        %3214 = vmatprep.subr.mxu0 0.0
        %3215 = vmatpush1.msra.mxu0 0.0
        %3216 = vmatprep.subr.mxu0 0.0
        %3217 = vmatpush1.msra.mxu0 0.0
        %3218 = vmatprep.subr.mxu0 0.0
        %3219 = vmatpush1.msra.mxu0 0.0
        %3220 = vmatprep.subr.mxu0 0.0
        %3221 = vmatpush1.msra.mxu0 0.0
        %3222 = vmatprep.subr.mxu0 0.0
        %3223 = vmatpush1.msra.mxu0 0.0
        %3224 = vmatprep.subr.mxu0 %v3187
        %3225 = vmatpush1.msra.mxu0 %v3185
        %3226 = vmatprep.subr.mxu0 0.0
        %3227 = vmatpush2.msra.mxu0 0.0
        %3228 = vmatprep.subr.mxu0 0.0
        %3229 = vmatpush2.msra.mxu0 0.0
        %3230 = vmatprep.subr.mxu0 0.0
        %3231 = vmatpush2.msra.mxu0 0.0
        %3232 = vmatprep.subr.mxu0 0.0
        %3233 = vmatpush2.msra.mxu0 0.0
        %3234 = vmatprep.subr.mxu0 0.0
        %3235 = vmatpush2.msra.mxu0 0.0
        %3236 = vmatprep.subr.mxu0 0.0
        %3237 = vmatpush2.msra.mxu0 0.0
        %3238 = vmatprep.subr.mxu0 0.0
        %3239 = vmatpush2.msra.mxu0 0.0
        %3240 = vmatprep.subr.mxu0 0.0
        %3241 = vmatpush2.msra.mxu0 0.0
        %3242 = vmatprep.subr.mxu0 0.0
        %3243 = vmatpush2.msra.mxu0 0.0
        %3244 = vmatprep.subr.mxu0 0.0
        %3245 = vmatpush2.msra.mxu0 0.0
        %3246 = vmatprep.subr.mxu0 0.0
        %3247 = vmatpush2.msra.mxu0 0.0
        %3248 = vmatprep.subr.mxu0 0.0
        %3249 = vmatpush2.msra.mxu0 0.0
        %3250 = vmatprep.subr.mxu0 0.0
        %3251 = vmatpush2.msra.mxu0 0.0
        %3252 = vmatprep.subr.mxu0 0.0
        %3253 = vmatpush2.msra.mxu0 0.0
        %3254 = vmatprep.subr.mxu0 0.0
        %3255 = vmatpush2.msra.mxu0 0.0
        %3256 = vmatprep.subr.mxu0 0.0
        %3257 = vmatpush2.msra.mxu0 0.0
        %3258 = vmatprep.mubr.f32.mxu0 0.0
        %3259 = vmatmul.mubr.f32.gmra.mxu0 %v3192
        %v3260 = vpop.f32.mrf.mxu0
        %v3261 = vadd.f32 0.0, %v3260
        %v3262 = vpop.f32.mrf.mxu0
        %v3263 = vadd.f32 0.0, %v3262
        %3264 = vdwg.mxu0
        %v3265 = vadd.f32 %v3116, %v3261
        %v3266 = vadd.f32 %v3117, %v3263
        %3267 = vmatprep.subr.mxu0 %v1801
        %3268 = vmatpush1.msra.mxu0 %v1800
        %3269 = vmatprep.subr.mxu0 %v1799
        %3270 = vmatpush1.msra.mxu0 %v1798
        %3271 = vmatprep.subr.mxu0 %v1797
        %3272 = vmatpush1.msra.mxu0 %v1796
        %3273 = vmatprep.subr.mxu0 %v1795
        %3274 = vmatpush1.msra.mxu0 %v1794
        %3275 = vmatprep.subr.mxu0 %v1793
        %3276 = vmatpush1.msra.mxu0 %v1792
        %3277 = vmatprep.subr.mxu0 %v1791
        %3278 = vmatpush1.msra.mxu0 %v1790
        %3279 = vmatprep.subr.mxu0 %v1789
        %3280 = vmatpush1.msra.mxu0 %v1788
        %3281 = vmatprep.subr.mxu0 %v1787
        %3282 = vmatpush1.msra.mxu0 %v1786
        %3283 = vmatprep.subr.mxu0 %v1785
        %3284 = vmatpush1.msra.mxu0 %v1784
        %3285 = vmatprep.subr.mxu0 %v1783
        %3286 = vmatpush1.msra.mxu0 %v1782
        %3287 = vmatprep.subr.mxu0 %v1781
        %3288 = vmatpush1.msra.mxu0 %v1780
        %3289 = vmatprep.subr.mxu0 %v1779
        %3290 = vmatpush1.msra.mxu0 %v1778
        %3291 = vmatprep.subr.mxu0 %v1777
        %3292 = vmatpush1.msra.mxu0 %v1776
        %3293 = vmatprep.subr.mxu0 %v1775
        %3294 = vmatpush1.msra.mxu0 %v1774
        %3295 = vmatprep.subr.mxu0 %v1773
        %3296 = vmatpush1.msra.mxu0 %v1772
        %3297 = vmatprep.subr.mxu0 %v1771
        %3298 = vmatpush1.msra.mxu0 %v1770
        %3299 = vmatprep.subr.mxu0 %v1833
        %3300 = vmatpush2.msra.mxu0 %v1832
        %3301 = vmatprep.subr.mxu0 %v1831
        %3302 = vmatpush2.msra.mxu0 %v1830
        %3303 = vmatprep.subr.mxu0 %v1829
        %3304 = vmatpush2.msra.mxu0 %v1828
        %3305 = vmatprep.subr.mxu0 %v1827
        %3306 = vmatpush2.msra.mxu0 %v1826
        %3307 = vmatprep.subr.mxu0 %v1825
        %3308 = vmatpush2.msra.mxu0 %v1824
        %3309 = vmatprep.subr.mxu0 %v1823
        %3310 = vmatpush2.msra.mxu0 %v1822
        %3311 = vmatprep.subr.mxu0 %v1821
        %3312 = vmatpush2.msra.mxu0 %v1820
        %3313 = vmatprep.subr.mxu0 %v1819
        %3314 = vmatpush2.msra.mxu0 %v1818
        %3315 = vmatprep.subr.mxu0 %v1817
        %3316 = vmatpush2.msra.mxu0 %v1816
        %3317 = vmatprep.subr.mxu0 %v1815
        %3318 = vmatpush2.msra.mxu0 %v1814
        %3319 = vmatprep.subr.mxu0 %v1813
        %3320 = vmatpush2.msra.mxu0 %v1812
        %3321 = vmatprep.subr.mxu0 %v1811
        %3322 = vmatpush2.msra.mxu0 %v1810
        %3323 = vmatprep.subr.mxu0 %v1809
        %3324 = vmatpush2.msra.mxu0 %v1808
        %3325 = vmatprep.subr.mxu0 %v1807
        %3326 = vmatpush2.msra.mxu0 %v1806
        %3327 = vmatprep.subr.mxu0 %v1805
        %3328 = vmatpush2.msra.mxu0 %v1804
        %3329 = vmatprep.subr.mxu0 %v1803
        %3330 = vmatpush2.msra.mxu0 %v1802
        %3331 = vmatprep.mubr.f32.mxu0 %v2227
        %3332 = vmatmul.mubr.f32.gmra.mxu0 %v2226
        %v3333 = vpop.f32.mrf.mxu0
        %v3334 = vadd.f32 0.0, %v3333
        %v3335 = vpop.f32.mrf.mxu0
        %v3336 = vadd.f32 0.0, %v3335
        %3337 = vdwg.mxu0
        %s3338 = scalar_lea.vmem %s2, 56
        %v3339 = vld [vmem:[%s3338] sm:$0xff]
        %v3341 = vsel %vm2373, %v3339, 0
        %3343 = vmatprep.subr.mxu0 0.0
        %3344 = vmatpush1.msra.mxu0 0.0
        %3345 = vmatprep.subr.mxu0 0.0
        %3346 = vmatpush1.msra.mxu0 0.0
        %3347 = vmatprep.subr.mxu0 0.0
        %3348 = vmatpush1.msra.mxu0 0.0
        %3349 = vmatprep.subr.mxu0 0.0
        %3350 = vmatpush1.msra.mxu0 0.0
        %3351 = vmatprep.subr.mxu0 0.0
        %3352 = vmatpush1.msra.mxu0 0.0
        %3353 = vmatprep.subr.mxu0 0.0
        %3354 = vmatpush1.msra.mxu0 0.0
        %3355 = vmatprep.subr.mxu0 0.0
        %3356 = vmatpush1.msra.mxu0 0.0
        %3357 = vmatprep.subr.mxu0 0.0
        %3358 = vmatpush1.msra.mxu0 0.0
        %3359 = vmatprep.subr.mxu0 0.0
        %3360 = vmatpush1.msra.mxu0 0.0
        %3361 = vmatprep.subr.mxu0 0.0
        %3362 = vmatpush1.msra.mxu0 0.0
        %3363 = vmatprep.subr.mxu0 0.0
        %3364 = vmatpush1.msra.mxu0 0.0
        %3365 = vmatprep.subr.mxu0 0.0
        %3366 = vmatpush1.msra.mxu0 0.0
        %3367 = vmatprep.subr.mxu0 0.0
        %3368 = vmatpush1.msra.mxu0 0.0
        %3369 = vmatprep.subr.mxu0 0.0
        %3370 = vmatpush1.msra.mxu0 0.0
        %3371 = vmatprep.subr.mxu0 0.0
        %3372 = vmatpush1.msra.mxu0 0.0
        %3373 = vmatprep.subr.mxu0 %v3336
        %3374 = vmatpush1.msra.mxu0 %v3334
        %3375 = vmatprep.subr.mxu0 0.0
        %3376 = vmatpush2.msra.mxu0 0.0
        %3377 = vmatprep.subr.mxu0 0.0
        %3378 = vmatpush2.msra.mxu0 0.0
        %3379 = vmatprep.subr.mxu0 0.0
        %3380 = vmatpush2.msra.mxu0 0.0
        %3381 = vmatprep.subr.mxu0 0.0
        %3382 = vmatpush2.msra.mxu0 0.0
        %3383 = vmatprep.subr.mxu0 0.0
        %3384 = vmatpush2.msra.mxu0 0.0
        %3385 = vmatprep.subr.mxu0 0.0
        %3386 = vmatpush2.msra.mxu0 0.0
        %3387 = vmatprep.subr.mxu0 0.0
        %3388 = vmatpush2.msra.mxu0 0.0
        %3389 = vmatprep.subr.mxu0 0.0
        %3390 = vmatpush2.msra.mxu0 0.0
        %3391 = vmatprep.subr.mxu0 0.0
        %3392 = vmatpush2.msra.mxu0 0.0
        %3393 = vmatprep.subr.mxu0 0.0
        %3394 = vmatpush2.msra.mxu0 0.0
        %3395 = vmatprep.subr.mxu0 0.0
        %3396 = vmatpush2.msra.mxu0 0.0
        %3397 = vmatprep.subr.mxu0 0.0
        %3398 = vmatpush2.msra.mxu0 0.0
        %3399 = vmatprep.subr.mxu0 0.0
        %3400 = vmatpush2.msra.mxu0 0.0
        %3401 = vmatprep.subr.mxu0 0.0
        %3402 = vmatpush2.msra.mxu0 0.0
        %3403 = vmatprep.subr.mxu0 0.0
        %3404 = vmatpush2.msra.mxu0 0.0
        %3405 = vmatprep.subr.mxu0 0.0
        %3406 = vmatpush2.msra.mxu0 0.0
        %3407 = vmatprep.mubr.f32.mxu0 0.0
        %3408 = vmatmul.mubr.f32.gmra.mxu0 %v3341
        %v3409 = vpop.f32.mrf.mxu0
        %v3410 = vadd.f32 0.0, %v3409
        %v3411 = vpop.f32.mrf.mxu0
        %v3412 = vadd.f32 0.0, %v3411
        %3413 = vdwg.mxu0
        %v3414 = vadd.f32 %v3265, %v3410
        %v3415 = vadd.f32 %v3266, %v3412
        %3416 = vmatprep.subr.mxu0 %v2021
        %3417 = vmatpush1.msra.mxu0 %v2020
        %3418 = vmatprep.subr.mxu0 %v2019
        %3419 = vmatpush1.msra.mxu0 %v2018
        %3420 = vmatprep.subr.mxu0 %v2017
        %3421 = vmatpush1.msra.mxu0 %v2016
        %3422 = vmatprep.subr.mxu0 %v2015
        %3423 = vmatpush1.msra.mxu0 %v2014
        %3424 = vmatprep.subr.mxu0 %v2013
        %3425 = vmatpush1.msra.mxu0 %v2012
        %3426 = vmatprep.subr.mxu0 %v2011
        %3427 = vmatpush1.msra.mxu0 %v2010
        %3428 = vmatprep.subr.mxu0 %v2009
        %3429 = vmatpush1.msra.mxu0 %v2008
        %3430 = vmatprep.subr.mxu0 %v2007
        %3431 = vmatpush1.msra.mxu0 %v2006
        %3432 = vmatprep.subr.mxu0 %v2005
        %3433 = vmatpush1.msra.mxu0 %v2004
        %3434 = vmatprep.subr.mxu0 %v2003
        %3435 = vmatpush1.msra.mxu0 %v2002
        %3436 = vmatprep.subr.mxu0 %v2001
        %3437 = vmatpush1.msra.mxu0 %v2000
        %3438 = vmatprep.subr.mxu0 %v1999
        %3439 = vmatpush1.msra.mxu0 %v1998
        %3440 = vmatprep.subr.mxu0 %v1997
        %3441 = vmatpush1.msra.mxu0 %v1996
        %3442 = vmatprep.subr.mxu0 %v1995
        %3443 = vmatpush1.msra.mxu0 %v1994
        %3444 = vmatprep.subr.mxu0 %v1993
        %3445 = vmatpush1.msra.mxu0 %v1992
        %3446 = vmatprep.subr.mxu0 %v1991
        %3447 = vmatpush1.msra.mxu0 %v1990
        %3448 = vmatprep.subr.mxu0 %v2053
        %3449 = vmatpush2.msra.mxu0 %v2052
        %3450 = vmatprep.subr.mxu0 %v2051
        %3451 = vmatpush2.msra.mxu0 %v2050
        %3452 = vmatprep.subr.mxu0 %v2049
        %3453 = vmatpush2.msra.mxu0 %v2048
        %3454 = vmatprep.subr.mxu0 %v2047
        %3455 = vmatpush2.msra.mxu0 %v2046
        %3456 = vmatprep.subr.mxu0 %v2045
        %3457 = vmatpush2.msra.mxu0 %v2044
        %3458 = vmatprep.subr.mxu0 %v2043
        %3459 = vmatpush2.msra.mxu0 %v2042
        %3460 = vmatprep.subr.mxu0 %v2041
        %3461 = vmatpush2.msra.mxu0 %v2040
        %3462 = vmatprep.subr.mxu0 %v2039
        %3463 = vmatpush2.msra.mxu0 %v2038
        %3464 = vmatprep.subr.mxu0 %v2037
        %3465 = vmatpush2.msra.mxu0 %v2036
        %3466 = vmatprep.subr.mxu0 %v2035
        %3467 = vmatpush2.msra.mxu0 %v2034
        %3468 = vmatprep.subr.mxu0 %v2033
        %3469 = vmatpush2.msra.mxu0 %v2032
        %3470 = vmatprep.subr.mxu0 %v2031
        %3471 = vmatpush2.msra.mxu0 %v2030
        %3472 = vmatprep.subr.mxu0 %v2029
        %3473 = vmatpush2.msra.mxu0 %v2028
        %3474 = vmatprep.subr.mxu0 %v2027
        %3475 = vmatpush2.msra.mxu0 %v2026
        %3476 = vmatprep.subr.mxu0 %v2025
        %3477 = vmatpush2.msra.mxu0 %v2024
        %3478 = vmatprep.subr.mxu0 %v2023
        %3479 = vmatpush2.msra.mxu0 %v2022
        %3480 = vmatprep.mubr.f32.mxu0 %v2227
        %3481 = vmatmul.mubr.f32.gmra.mxu0 %v2226
        %v3482 = vpop.f32.mrf.mxu0
        %v3483 = vadd.f32 0.0, %v3482
        %v3484 = vpop.f32.mrf.mxu0
        %v3485 = vadd.f32 0.0, %v3484
        %3486 = vdwg.mxu0
        %s3487 = scalar_lea.vmem %s2, 64
        %v3488 = vld [vmem:[%s3487] sm:$0xff]
        %v3490 = vsel %vm2373, %v3488, 0
        %3492 = vmatprep.subr.mxu0 0.0
        %3493 = vmatpush1.msra.mxu0 0.0
        %3494 = vmatprep.subr.mxu0 0.0
        %3495 = vmatpush1.msra.mxu0 0.0
        %3496 = vmatprep.subr.mxu0 0.0
        %3497 = vmatpush1.msra.mxu0 0.0
        %3498 = vmatprep.subr.mxu0 0.0
        %3499 = vmatpush1.msra.mxu0 0.0
        %3500 = vmatprep.subr.mxu0 0.0
        %3501 = vmatpush1.msra.mxu0 0.0
        %3502 = vmatprep.subr.mxu0 0.0
        %3503 = vmatpush1.msra.mxu0 0.0
        %3504 = vmatprep.subr.mxu0 0.0
        %3505 = vmatpush1.msra.mxu0 0.0
        %3506 = vmatprep.subr.mxu0 0.0
        %3507 = vmatpush1.msra.mxu0 0.0
        %3508 = vmatprep.subr.mxu0 0.0
        %3509 = vmatpush1.msra.mxu0 0.0
        %3510 = vmatprep.subr.mxu0 0.0
        %3511 = vmatpush1.msra.mxu0 0.0
        %3512 = vmatprep.subr.mxu0 0.0
        %3513 = vmatpush1.msra.mxu0 0.0
        %3514 = vmatprep.subr.mxu0 0.0
        %3515 = vmatpush1.msra.mxu0 0.0
        %3516 = vmatprep.subr.mxu0 0.0
        %3517 = vmatpush1.msra.mxu0 0.0
        %3518 = vmatprep.subr.mxu0 0.0
        %3519 = vmatpush1.msra.mxu0 0.0
        %3520 = vmatprep.subr.mxu0 0.0
        %3521 = vmatpush1.msra.mxu0 0.0
        %3522 = vmatprep.subr.mxu0 %v3485
        %3523 = vmatpush1.msra.mxu0 %v3483
        %3524 = vmatprep.subr.mxu0 0.0
        %3525 = vmatpush2.msra.mxu0 0.0
        %3526 = vmatprep.subr.mxu0 0.0
        %3527 = vmatpush2.msra.mxu0 0.0
        %3528 = vmatprep.subr.mxu0 0.0
        %3529 = vmatpush2.msra.mxu0 0.0
        %3530 = vmatprep.subr.mxu0 0.0
        %3531 = vmatpush2.msra.mxu0 0.0
        %3532 = vmatprep.subr.mxu0 0.0
        %3533 = vmatpush2.msra.mxu0 0.0
        %3534 = vmatprep.subr.mxu0 0.0
        %3535 = vmatpush2.msra.mxu0 0.0
        %3536 = vmatprep.subr.mxu0 0.0
        %3537 = vmatpush2.msra.mxu0 0.0
        %3538 = vmatprep.subr.mxu0 0.0
        %3539 = vmatpush2.msra.mxu0 0.0
        %3540 = vmatprep.subr.mxu0 0.0
        %3541 = vmatpush2.msra.mxu0 0.0
        %3542 = vmatprep.subr.mxu0 0.0
        %3543 = vmatpush2.msra.mxu0 0.0
        %3544 = vmatprep.subr.mxu0 0.0
        %3545 = vmatpush2.msra.mxu0 0.0
        %3546 = vmatprep.subr.mxu0 0.0
        %3547 = vmatpush2.msra.mxu0 0.0
        %3548 = vmatprep.subr.mxu0 0.0
        %3549 = vmatpush2.msra.mxu0 0.0
        %3550 = vmatprep.subr.mxu0 0.0
        %3551 = vmatpush2.msra.mxu0 0.0
        %3552 = vmatprep.subr.mxu0 0.0
        %3553 = vmatpush2.msra.mxu0 0.0
        %3554 = vmatprep.subr.mxu0 0.0
        %3555 = vmatpush2.msra.mxu0 0.0
        %3556 = vmatprep.mubr.f32.mxu0 0.0
        %3557 = vmatmul.mubr.f32.gmra.mxu0 %v3490
        %v3558 = vpop.f32.mrf.mxu0
        %v3559 = vadd.f32 0.0, %v3558
        %v3560 = vpop.f32.mrf.mxu0
        %v3561 = vadd.f32 0.0, %v3560
        %3562 = vdwg.mxu0
        %v3563 = vadd.f32 %v3414, %v3559
        %v3564 = vadd.f32 %v3415, %v3561
        %v3565 = vadd.f32 %v3563, %v3564
        %3566 = vadd.xlane.f32.xlu0 %v3565
        %v3567 = vpop.xlane.xlu0 %3566
        %v3568 = vmul.f32 %v3567, %v2212
        %v3569 = vsub.f32 %v3563, %v3568
        %v3570 = vsub.f32 %v3564, %v3568
        %v3571 = vmul.f32 %v3569, %v3569
        %v3572 = vmul.f32 %v3570, %v3570
        %v3573 = vadd.f32 %v3571, %v3572
        %3574 = vadd.xlane.f32.xlu0 %v3573
        %v3575 = vpop.xlane.xlu0 %3574
        %v3576 = vmul.f32 %v3575, %v2212
        %v3577 = vadd.f32 %v3576, 1e-05
        %v3578 = vrsqrt.pop %v3577
        %v3579 = vmul.f32 %v3569, %v3578
        %v3580 = vmul.f32 %v3570, %v3578
        %v3581 = vmax.f32 %v3579, 0.0
        %v3582 = vmax.f32 %v3580, 0.0
        %3583 = vst [vmem:[%s228] sm:$0xff] %v3581
        %3584 = vst [vmem:[%s228 + $0x8] sm:$0xff] %v3582
        %s3585 = sand.u32 %s119, 1
        %s3586 = scalar_lea.sflag [#allocation4], %s3585
        %s3587 = sand.u32 %s119, 1
        %s3588 = smul.addr %s3587, 16
        %s3589 = scalar_lea.vmem [#allocation7], %s3588
        // Predicated region
        $region45: #{tpu_custom_call.1} parent=35 // pred_check
          %p3590 = pneg %p129
        $region46: #{tpu_custom_call.1} parent=35 // pred_check_branch
          %3592 = sbr.rel (%p3590) target = $region48
        $region47: #{tpu_custom_call.1} parent=35 // pred_region
          %s3594 = ssub.s32 256, 256
          %3595 = vsyncadd %s3586, %s3594
          %s3596 = smul.addr %s22, 2
          %s3597 = smul.addr %s3596, 128
          %s3598 = scalar_lea.hbm %s4, %s3597
          %s3600 = sshll.u32 %s3589, 4
          %s3601 = int_to_ptr.vmem [resolvable:$true] %s3600
          %3603 = dma.vmem_to_hbm [thread:$0]  %s3601, 256, %s3598, %s3586
        $region48: #{tpu_custom_call.1} parent=35 // pred_fallthru
          _
      $region36: #{tpu_custom_call.1} parent=5 // pred_fallthru
        _
      %p3604 = scmp.le.s32.totalorder 2, %s17
      // Predicated region
      $region49: #{tpu_custom_call.1} parent=5 // pred_check
        %p3605 = pneg %p3604
      $region50: #{tpu_custom_call.1} parent=5 // pred_check_branch
        %3607 = sbr.rel (%p3605) target = $region52
      $region51: #{tpu_custom_call.1} parent=5 // pred_region
        %s3608 = ssub.s32 %s17, 2
        // Predicated region
        $region53: #{tpu_custom_call.1} parent=51 // pred_check
          %p3609 = pneg %p135
        $region54: #{tpu_custom_call.1} parent=51 // pred_check_branch
          %3611 = sbr.rel (%p3609) target = $region56
        $region55: #{tpu_custom_call.1} parent=51 // pred_region
          %s3612 = sand.u32 %s120, 1
          %s3613 = scalar_lea.sflag [#allocation4], %s3612
          %s3614 = sand.u32 %s120, 1
          %s3615 = smul.addr %s3614, 16
          %s3616 = scalar_lea.vmem [#allocation7], %s3615
          %3617 = dma.done %s3613, 256
        $region56: #{tpu_custom_call.1} parent=51 // pred_fallthru
          _
      $region52: #{tpu_custom_call.1} parent=5 // pred_fallthru
        _
    $region6: #{tpu_custom_call.1} parent=1 // loop_footer
      %s21 = sadd.s32 1, %s17
    $region7: #{tpu_custom_call.1} parent=1 // loop_footer_branch
      %16 = sbr.rel target = $region3
    $region8: #{tpu_custom_call.1} parent=1 // loop_exit
      _
    %3618 = vsyncpa [#allocation3], 1
    %s3619 = scalar_lea.sflag [#allocation3], 1
    %3620 = vsyncpa %s3619, 1
    %3621 = vsyncpa [#allocation6], 1
    %3622 = vsyncpa [#allocation4], 1
    %s3623 = scalar_lea.sflag [#allocation4], 1
    %3624 = vsyncpa %s3623, 1

</llo_original>
